<compile_context>
chip_gen: v7x
topology: tpu7x:2x2x1
jax: 0.10.0
libtpu: 0.0.40
codegen_flags: <defaults>
</compile_context>

<pallas_src>
import jax
import jax.numpy as jnp
from jax import lax
from jax.experimental import pallas as pl
from jax.experimental.pallas import tpu as pltpu

HIDDEN = 20               # fixed by the module (self.n_hidden = 20)
HP = 32                   # hidden padded per gate -> 4*HP = 128 lanes
OUT_PAD = 128             # lane-dense output slab; sliced to n_classes outside
VMEM_BUDGET_BYTES = 20 * 2**20   # conservative working-set budget (v7x: 64 MiB phys)
VMEM_LIMIT_BYTES = 32 * 2**20


def _round_up(n, m):
    return ((n + m - 1) // m) * m


def _mv_lstm_kernel(x_ref, w_ih_ref, w_hh_ref, b_ref, w_fc_ref, b_fc_ref,
                    out_ref, xp_ref, h_all_ref):
    """x_ref:     (T, TB, F)      time-major batch tile (pipelined)
       w_ih_ref:  (F, 4*HP)       w_hh_ref: (HP, 4*HP)    b_ref: (1, 4*HP)
       w_fc_ref:  (T, HP, OUT_PAD)                        b_fc_ref: (1, OUT_PAD)
       out_ref:   (TB, OUT_PAD)
       xp_ref:    VMEM (T, TB, 4*HP)  hoisted input projection
       h_all_ref: VMEM (T, TB, HP)    per-timestep hidden states (deferred FC)."""
    T, TB, F = x_ref.shape
    hp = w_hh_ref.shape[0]

    # Hoist the tiny-K input projection for ALL timesteps out of the recurrent
    # loop: one (T*TB, F) @ (F, 128) matmul. Combined bias b_ih + b_hh folded in.
    # TODO(synk): for very large T, chunk this projection over T to bound the
    # xp scratch instead of materializing all timesteps at once.
    x2d = x_ref[...].reshape(T * TB, F)
    xp = jnp.dot(x2d, w_ih_ref[...], preferred_element_type=jnp.float32)
    xp_ref[...] = (xp + b_ref[...]).reshape(T, TB, 4 * hp)

    w_hh = w_hh_ref[...]

    def step(t, carry):
        h, c = carry
        gates = xp_ref[t] + jnp.dot(h, w_hh, preferred_element_type=jnp.float32)
        # PyTorch gate order: input, forget, cell(g), output — blocks of HP lanes.
        # One full-slab sigmoid (lane-dense) instead of three (TB, 32) ones.
        sig = jax.nn.sigmoid(gates)
        i = sig[:, 0 * hp:1 * hp]
        f = sig[:, 1 * hp:2 * hp]
        o = sig[:, 3 * hp:4 * hp]
        g = jnp.tanh(gates[:, 2 * hp:3 * hp])
        c = f * c + i * g
        h = o * jnp.tanh(c)
        h_all_ref[t] = h          # stash h_t; the FC head runs after the loop
        return h, c

    h0 = jnp.zeros((TB, hp), jnp.float32)
    c0 = jnp.zeros((TB, hp), jnp.float32)
    lax.fori_loop(0, T, step, (h0, c0), unroll=min(T, 8))

    # Deferred FC head (== Linear(lstm_out.view(B, T*H))): off the serial
    # recurrence, T independent matmuls accumulating into one (TB, 128) slab.
    acc = jnp.zeros(out_ref.shape, jnp.float32)
    for t in range(T):            # static indices; matmuls pipeline on the MXU
        acc = acc + jnp.dot(h_all_ref[t], w_fc_ref[t],
                            preferred_element_type=jnp.float32)

    # TODO(synk): final (h_T, c_T) are not written out (PyTorch stashes them in
    # self.hidden as a side effect); add extra out_specs if they are needed.
    out_ref[...] = (acc + b_fc_ref[...]).astype(out_ref.dtype)


def pack_params(raw, seq_len):
    """Repack PyTorch-layout params into zero-padded (in, out) kernel layout."""
    w_ih, w_hh = raw["w_ih"], raw["w_hh"]          # (4H, F), (4H, H)
    b_ih, b_hh = raw["b_ih"], raw["b_hh"]          # (4H,),  (4H,)
    w_fc, b_fc = raw["w_fc"], raw["b_fc"]          # (C, T*H), (C,)
    F = w_ih.shape[1]
    C = w_fc.shape[0]
    H, hp = HIDDEN, HP

    w_ih_p = jnp.zeros((F, 4, hp), jnp.float32)
    w_hh_p = jnp.zeros((hp, 4, hp), jnp.float32)
    b_p = jnp.zeros((4, hp), jnp.float32)
    for g in range(4):                              # gate order: i, f, g, o
        w_ih_p = w_ih_p.at[:, g, :H].set(w_ih[g * H:(g + 1) * H, :].T)
        w_hh_p = w_hh_p.at[:H, g, :H].set(w_hh[g * H:(g + 1) * H, :].T)
        b_p = b_p.at[g, :H].set(b_ih[g * H:(g + 1) * H] + b_hh[g * H:(g + 1) * H])

    # Linear(T*H -> C): flat index t*H + h, reshaped to per-timestep slices.
    w_fc_p = jnp.zeros((seq_len, hp, OUT_PAD), jnp.float32)
    w_fc_p = w_fc_p.at[:, :H, :C].set(w_fc.T.reshape(seq_len, H, C))
    b_fc_p = jnp.zeros((1, OUT_PAD), jnp.float32).at[0, :C].set(b_fc)

    return {
        "w_ih": w_ih_p.reshape(F, 4 * hp),
        "w_hh": w_hh_p.reshape(hp, 4 * hp),
        "b": b_p.reshape(1, 4 * hp),
        "w_fc": w_fc_p,
        "b_fc": b_fc_p,
    }


def _choose_batch_tile(B, T, block_b):
    """Batch tile: >=2 grid programs (v7x megacore), VMEM-budgeted, mult of 8."""
    tb = _round_up(max(1, -(-B // 2)), 8)            # ceil(B/2) -> >=2 programs
    tb = min(tb, max(8, _round_up(block_b, 8)))
    # ~2 KiB VMEM per (timestep, batch-row): double-buffered x tile + xp
    # scratch + h scratch, all padded to 128 lanes in VMEM.
    cap = (VMEM_BUDGET_BYTES // (T * 2048)) // 8 * 8
    return max(8, min(tb, cap))


def mv_lstm_forward(x, raw_params, *, block_b=256):
    """x: (B, seq_len, n_features) float32 (batch_first). Returns (B, n_classes)."""
    B, T, F = x.shape
    C = raw_params["w_fc"].shape[0]
    p = pack_params(raw_params, T)

    TB = _choose_batch_tile(B, T, block_b)
    B_pad = _round_up(B, TB)
    grid = (B_pad // TB,)

    # Time-major layout so the per-step xp/h accesses inside the kernel are
    # contiguous (TB, 128) slabs (leading-axis time index). The transpose is a
    # single cheap extra pass over a tensor whose last dim is only F.
    xt = jnp.swapaxes(x, 0, 1)                          # (T, B, F)
    if B_pad != B:
        xt = jnp.pad(xt, ((0, 0), (0, B_pad - B), (0, 0)))

    out = pl.pallas_call(
        _mv_lstm_kernel,
        out_shape=jax.ShapeDtypeStruct((B_pad, OUT_PAD), jnp.float32),
        grid=grid,
        in_specs=[
            pl.BlockSpec((T, TB, F), lambda i: (0, i, 0)),       # x tile (pipelined)
            pl.BlockSpec((F, 4 * HP), lambda i: (0, 0)),         # weights: VMEM-resident
            pl.BlockSpec((HP, 4 * HP), lambda i: (0, 0)),
            pl.BlockSpec((1, 4 * HP), lambda i: (0, 0)),
            pl.BlockSpec((T, HP, OUT_PAD), lambda i: (0, 0, 0)),
            pl.BlockSpec((1, OUT_PAD), lambda i: (0, 0)),
        ],
        out_specs=pl.BlockSpec((TB, OUT_PAD), lambda i: (i, 0)),
        scratch_shapes=[pltpu.VMEM((T, TB, 4 * HP), jnp.float32),   # xp
                        pltpu.VMEM((T, TB, HP), jnp.float32)],      # h_t history
        compiler_params=pltpu.CompilerParams(
            dimension_semantics=("parallel",),
            vmem_limit_bytes=VMEM_LIMIT_BYTES),
    )(xt, p["w_ih"], p["w_hh"], p["b"], p["w_fc"], p["b_fc"])

    return out[:B, :C]


def init_raw_params(key, n_features, seq_length, n_classes):
    """PyTorch-layout parameters with PyTorch-default uniform(+-1/sqrt(fan)) init."""
    H = HIDDEN
    k = 1.0 / jnp.sqrt(jnp.float32(H))
    key, k1, k2, k3, k4 = jax.random.split(key, 5)
    w_ih = jax.random.uniform(k1, (4 * H, n_features), jnp.float32, -k, k)
    w_hh = jax.random.uniform(k2, (4 * H, H), jnp.float32, -k, k)
    b_ih = jax.random.uniform(k3, (4 * H,), jnp.float32, -k, k)
    b_hh = jax.random.uniform(k4, (4 * H,), jnp.float32, -k, k)
    fan_in = H * seq_length
    kf = 1.0 / jnp.sqrt(jnp.float32(fan_in))
    key, k5, k6 = jax.random.split(key, 3)
    w_fc = jax.random.uniform(k5, (n_classes, fan_in), jnp.float32, -kf, kf)
    b_fc = jax.random.uniform(k6, (n_classes,), jnp.float32, -kf, kf)
    return {"w_ih": w_ih, "w_hh": w_hh, "b_ih": b_ih, "b_hh": b_hh,
            "w_fc": w_fc, "b_fc": b_fc}


def _reference_forward(x, raw):
    """Pure-JAX reference replicating PyTorch LSTM + flatten + Linear (f32)."""
    B, T, F = x.shape
    H = HIDDEN
    h = jnp.zeros((B, H), jnp.float32)
    c = jnp.zeros((B, H), jnp.float32)
    outs = []
    for t in range(T):
        gates = (x[:, t, :] @ raw["w_ih"].T + raw["b_ih"]
                 + h @ raw["w_hh"].T + raw["b_hh"])
        i, f, g, o = jnp.split(gates, 4, axis=-1)
        i, f, o = jax.nn.sigmoid(i), jax.nn.sigmoid(f), jax.nn.sigmoid(o)
        g = jnp.tanh(g)
        c = f * c + i * g
        h = o * jnp.tanh(c)
        outs.append(h)
    flat = jnp.concatenate(outs, axis=-1)               # == lstm_out.view(B, -1)
    return flat @ raw["w_fc"].T + raw["b_fc"]


if __name__ == "__main__":
    key = jax.random.PRNGKey(0)
    B, T, F, C = 64, 8, 5, 3          # batch, seq_length, n_features, n_classes
    key, kx = jax.random.split(key)
    x = jax.random.normal(kx, (B, T, F), jnp.float32)
    raw = init_raw_params(key, n_features=F, seq_length=T, n_classes=C)

    out = mv_lstm_forward(x, raw)     # TB=32 -> 2 batch tiles, exercises the grid
    out = jax.block_until_ready(out)

    ref = _reference_forward(x, raw)
    assert out.shape == (B, C)
    err = float(jnp.max(jnp.abs(out - ref)))
    assert jnp.allclose(out, ref, atol=1e-3, rtol=1e-3), f"max abs err {err}"

    print("KERNEL_OK")
</pallas_src>

<mosaic_0001>
module attributes {stable_mosaic.version = 11 : i64} {
  func.func @_mv_lstm_kernel(%arg0: i32, %arg1: memref<8x32x5xf32, #tpu.memory_space<vmem>>, %arg2: memref<5x128xf32, #tpu.memory_space<vmem>>, %arg3: memref<32x128xf32, #tpu.memory_space<vmem>>, %arg4: memref<1x128xf32, #tpu.memory_space<vmem>>, %arg5: memref<8x32x128xf32, #tpu.memory_space<vmem>>, %arg6: memref<1x128xf32, #tpu.memory_space<vmem>>, %arg7: memref<32x128xf32, #tpu.memory_space<vmem>>, %arg8: memref<8x32x128xf32, #tpu.memory_space<vmem>>, %arg9: memref<8x32x32xf32, #tpu.memory_space<vmem>>) attributes {dimension_semantics = [#tpu.dimension_semantics<parallel>], iteration_bounds = array<i64: 2>, scalar_prefetch = 0 : i64, scratch_operands = 2 : i64, tpu.core_type = #tpu.core_type<tc>, window_params = [{transform_indices = @transform_0, window_bounds = array<i64: 8, 32, 5>}, {pipeline_mode = #tpu.pipeline_mode<synchronous>, transform_indices = @transform_1, window_bounds = array<i64: 5, 128>}, {pipeline_mode = #tpu.pipeline_mode<synchronous>, transform_indices = @transform_2, window_bounds = array<i64: 32, 128>}, {pipeline_mode = #tpu.pipeline_mode<synchronous>, transform_indices = @transform_3, window_bounds = array<i64: 1, 128>}, {pipeline_mode = #tpu.pipeline_mode<synchronous>, transform_indices = @transform_4, window_bounds = array<i64: 8, 32, 128>}, {pipeline_mode = #tpu.pipeline_mode<synchronous>, transform_indices = @transform_5, window_bounds = array<i64: 1, 128>}, {transform_indices = @transform_6, window_bounds = array<i64: 32, 128>}]} {
    %c0 = arith.constant 0 : index
    %c0_0 = arith.constant 0 : index
    %c0_1 = arith.constant 0 : index
    %0 = vector.load %arg1[%c0, %c0_0, %c0_1] : memref<8x32x5xf32, #tpu.memory_space<vmem>>, vector<8x32x5xf32>
    %1 = vector.shape_cast %0 : vector<8x32x5xf32> to vector<256x5xf32>
    %c0_2 = arith.constant 0 : index
    %c0_3 = arith.constant 0 : index
    %2 = vector.load %arg2[%c0_2, %c0_3] : memref<5x128xf32, #tpu.memory_space<vmem>>, vector<5x128xf32>
    %cst = arith.constant dense<0.000000e+00> : vector<256x128xf32>
    %3 = tpu.matmul %1, %2, %cst {dimension_numbers = #tpu.dot_dimension_numbers<[1], [0], [0], [1], [0, 0, 1, 1], [], []>} : vector<256x5xf32>, vector<5x128xf32>, vector<256x128xf32> -> vector<256x128xf32>
    %c0_4 = arith.constant 0 : index
    %c0_5 = arith.constant 0 : index
    %4 = vector.load %arg4[%c0_4, %c0_5] : memref<1x128xf32, #tpu.memory_space<vmem>>, vector<1x128xf32>
    %5 = vector.broadcast %4 : vector<1x128xf32> to vector<256x128xf32>
    %6 = arith.addf %3, %5 : vector<256x128xf32>
    %7 = vector.shape_cast %6 : vector<256x128xf32> to vector<8x32x128xf32>
    %c0_6 = arith.constant 0 : index
    %c0_7 = arith.constant 0 : index
    %c0_8 = arith.constant 0 : index
    %8 = vector.load %arg8[%c0_6, %c0_7, %c0_8] : memref<8x32x128xf32, #tpu.memory_space<vmem>>, vector<8x32x128xf32>
    tpu.vector_store %arg8[%c0_6, %c0_7, %c0_8], %7 {strides = array<i32>} : memref<8x32x128xf32, #tpu.memory_space<vmem>>, vector<8x32x128xf32>,
    %c0_9 = arith.constant 0 : index
    %c0_10 = arith.constant 0 : index
    %9 = vector.load %arg3[%c0_9, %c0_10] : memref<32x128xf32, #tpu.memory_space<vmem>>, vector<32x128xf32>
    %cst_11 = arith.constant 0.000000e+00 : f32
    %10 = vector.broadcast %cst_11 : f32 to vector<32x32xf32>
    %cst_12 = arith.constant 0.000000e+00 : f32
    %11 = vector.broadcast %cst_12 : f32 to vector<32x32xf32>
    %c0_i32 = arith.constant 0 : i32
    %12 = arith.index_cast %c0_i32 : i32 to index
    %c0_13 = arith.constant 0 : index
    %c0_14 = arith.constant 0 : index
    %13 = vector.load %arg8[%12, %c0_13, %c0_14] : memref<8x32x128xf32, #tpu.memory_space<vmem>>, vector<1x32x128xf32>
    %14 = vector.shape_cast %13 : vector<1x32x128xf32> to vector<32x128xf32>
    %cst_15 = arith.constant dense<0.000000e+00> : vector<32x128xf32>
    %15 = tpu.matmul %10, %9, %cst_15 {dimension_numbers = #tpu.dot_dimension_numbers<[1], [0], [0], [1], [0, 0, 1, 1], [], []>} : vector<32x32xf32>, vector<32x128xf32>, vector<32x128xf32> -> vector<32x128xf32>
    %16 = arith.addf %14, %15 : vector<32x128xf32>
    %17 = arith.negf %16 : vector<32x128xf32>
    %18 = math.exp %17 : vector<32x128xf32>
    %cst_16 = arith.constant 1.000000e+00 : f32
    %19 = vector.broadcast %cst_16 : f32 to vector<32x128xf32>
    %20 = arith.addf %19, %18 : vector<32x128xf32>
    %21 = arith.divf %19, %20 : vector<32x128xf32>
    %22 = vector.extract_strided_slice %21 {offsets = [0, 0], sizes = [32, 32], strides = [1, 1]} : vector<32x128xf32> to vector<32x32xf32>
    %23 = vector.extract_strided_slice %21 {offsets = [0, 32], sizes = [32, 32], strides = [1, 1]} : vector<32x128xf32> to vector<32x32xf32>
    %24 = vector.extract_strided_slice %21 {offsets = [0, 96], sizes = [32, 32], strides = [1, 1]} : vector<32x128xf32> to vector<32x32xf32>
    %25 = vector.extract_strided_slice %16 {offsets = [0, 64], sizes = [32, 32], strides = [1, 1]} : vector<32x128xf32> to vector<32x32xf32>
    %26 = math.tanh %25 : vector<32x32xf32>
    %27 = arith.mulf %23, %11 : vector<32x32xf32>
    %28 = arith.mulf %22, %26 : vector<32x32xf32>
    %29 = arith.addf %27, %28 : vector<32x32xf32>
    %30 = math.tanh %29 : vector<32x32xf32>
    %31 = arith.mulf %24, %30 : vector<32x32xf32>
    %32 = arith.index_cast %c0_i32 : i32 to index
    %c0_17 = arith.constant 0 : index
    %c0_18 = arith.constant 0 : index
    %33 = vector.load %arg9[%32, %c0_17, %c0_18] : memref<8x32x32xf32, #tpu.memory_space<vmem>>, vector<1x32x32xf32>
    %34 = vector.shape_cast %33 : vector<1x32x32xf32> to vector<32x32xf32>
    %35 = vector.shape_cast %31 : vector<32x32xf32> to vector<1x32x32xf32>
    tpu.vector_store %arg9[%32, %c0_17, %c0_18], %35 {strides = array<i32>} : memref<8x32x32xf32, #tpu.memory_space<vmem>>, vector<1x32x32xf32>,
    %c1_i32 = arith.constant 1 : i32
    %36 = arith.index_cast %c1_i32 : i32 to index
    %c0_19 = arith.constant 0 : index
    %c0_20 = arith.constant 0 : index
    %37 = vector.load %arg8[%36, %c0_19, %c0_20] : memref<8x32x128xf32, #tpu.memory_space<vmem>>, vector<1x32x128xf32>
    %38 = vector.shape_cast %37 : vector<1x32x128xf32> to vector<32x128xf32>
    %cst_21 = arith.constant dense<0.000000e+00> : vector<32x128xf32>
    %39 = tpu.matmul %31, %9, %cst_21 {dimension_numbers = #tpu.dot_dimension_numbers<[1], [0], [0], [1], [0, 0, 1, 1], [], []>} : vector<32x32xf32>, vector<32x128xf32>, vector<32x128xf32> -> vector<32x128xf32>
    %40 = arith.addf %38, %39 : vector<32x128xf32>
    %41 = arith.negf %40 : vector<32x128xf32>
    %42 = math.exp %41 : vector<32x128xf32>
    %cst_22 = arith.constant 1.000000e+00 : f32
    %43 = vector.broadcast %cst_22 : f32 to vector<32x128xf32>
    %44 = arith.addf %43, %42 : vector<32x128xf32>
    %45 = arith.divf %43, %44 : vector<32x128xf32>
    %46 = vector.extract_strided_slice %45 {offsets = [0, 0], sizes = [32, 32], strides = [1, 1]} : vector<32x128xf32> to vector<32x32xf32>
    %47 = vector.extract_strided_slice %45 {offsets = [0, 32], sizes = [32, 32], strides = [1, 1]} : vector<32x128xf32> to vector<32x32xf32>
    %48 = vector.extract_strided_slice %45 {offsets = [0, 96], sizes = [32, 32], strides = [1, 1]} : vector<32x128xf32> to vector<32x32xf32>
    %49 = vector.extract_strided_slice %40 {offsets = [0, 64], sizes = [32, 32], strides = [1, 1]} : vector<32x128xf32> to vector<32x32xf32>
    %50 = math.tanh %49 : vector<32x32xf32>
    %51 = arith.mulf %47, %29 : vector<32x32xf32>
    %52 = arith.mulf %46, %50 : vector<32x32xf32>
    %53 = arith.addf %51, %52 : vector<32x32xf32>
    %54 = math.tanh %53 : vector<32x32xf32>
    %55 = arith.mulf %48, %54 : vector<32x32xf32>
    %56 = arith.index_cast %c1_i32 : i32 to index
    %c0_23 = arith.constant 0 : index
    %c0_24 = arith.constant 0 : index
    %57 = vector.load %arg9[%56, %c0_23, %c0_24] : memref<8x32x32xf32, #tpu.memory_space<vmem>>, vector<1x32x32xf32>
    %58 = vector.shape_cast %57 : vector<1x32x32xf32> to vector<32x32xf32>
    %59 = vector.shape_cast %55 : vector<32x32xf32> to vector<1x32x32xf32>
    tpu.vector_store %arg9[%56, %c0_23, %c0_24], %59 {strides = array<i32>} : memref<8x32x32xf32, #tpu.memory_space<vmem>>, vector<1x32x32xf32>,
    %c2_i32 = arith.constant 2 : i32
    %60 = arith.index_cast %c2_i32 : i32 to index
    %c0_25 = arith.constant 0 : index
    %c0_26 = arith.constant 0 : index
    %61 = vector.load %arg8[%60, %c0_25, %c0_26] : memref<8x32x128xf32, #tpu.memory_space<vmem>>, vector<1x32x128xf32>
    %62 = vector.shape_cast %61 : vector<1x32x128xf32> to vector<32x128xf32>
    %cst_27 = arith.constant dense<0.000000e+00> : vector<32x128xf32>
    %63 = tpu.matmul %55, %9, %cst_27 {dimension_numbers = #tpu.dot_dimension_numbers<[1], [0], [0], [1], [0, 0, 1, 1], [], []>} : vector<32x32xf32>, vector<32x128xf32>, vector<32x128xf32> -> vector<32x128xf32>
    %64 = arith.addf %62, %63 : vector<32x128xf32>
    %65 = arith.negf %64 : vector<32x128xf32>
    %66 = math.exp %65 : vector<32x128xf32>
    %cst_28 = arith.constant 1.000000e+00 : f32
    %67 = vector.broadcast %cst_28 : f32 to vector<32x128xf32>
    %68 = arith.addf %67, %66 : vector<32x128xf32>
    %69 = arith.divf %67, %68 : vector<32x128xf32>
    %70 = vector.extract_strided_slice %69 {offsets = [0, 0], sizes = [32, 32], strides = [1, 1]} : vector<32x128xf32> to vector<32x32xf32>
    %71 = vector.extract_strided_slice %69 {offsets = [0, 32], sizes = [32, 32], strides = [1, 1]} : vector<32x128xf32> to vector<32x32xf32>
    %72 = vector.extract_strided_slice %69 {offsets = [0, 96], sizes = [32, 32], strides = [1, 1]} : vector<32x128xf32> to vector<32x32xf32>
    %73 = vector.extract_strided_slice %64 {offsets = [0, 64], sizes = [32, 32], strides = [1, 1]} : vector<32x128xf32> to vector<32x32xf32>
    %74 = math.tanh %73 : vector<32x32xf32>
    %75 = arith.mulf %71, %53 : vector<32x32xf32>
    %76 = arith.mulf %70, %74 : vector<32x32xf32>
    %77 = arith.addf %75, %76 : vector<32x32xf32>
    %78 = math.tanh %77 : vector<32x32xf32>
    %79 = arith.mulf %72, %78 : vector<32x32xf32>
    %80 = arith.index_cast %c2_i32 : i32 to index
    %c0_29 = arith.constant 0 : index
    %c0_30 = arith.constant 0 : index
    %81 = vector.load %arg9[%80, %c0_29, %c0_30] : memref<8x32x32xf32, #tpu.memory_space<vmem>>, vector<1x32x32xf32>
    %82 = vector.shape_cast %81 : vector<1x32x32xf32> to vector<32x32xf32>
    %83 = vector.shape_cast %79 : vector<32x32xf32> to vector<1x32x32xf32>
    tpu.vector_store %arg9[%80, %c0_29, %c0_30], %83 {strides = array<i32>} : memref<8x32x32xf32, #tpu.memory_space<vmem>>, vector<1x32x32xf32>,
    %c3_i32 = arith.constant 3 : i32
    %84 = arith.index_cast %c3_i32 : i32 to index
    %c0_31 = arith.constant 0 : index
    %c0_32 = arith.constant 0 : index
    %85 = vector.load %arg8[%84, %c0_31, %c0_32] : memref<8x32x128xf32, #tpu.memory_space<vmem>>, vector<1x32x128xf32>
    %86 = vector.shape_cast %85 : vector<1x32x128xf32> to vector<32x128xf32>
    %cst_33 = arith.constant dense<0.000000e+00> : vector<32x128xf32>
    %87 = tpu.matmul %79, %9, %cst_33 {dimension_numbers = #tpu.dot_dimension_numbers<[1], [0], [0], [1], [0, 0, 1, 1], [], []>} : vector<32x32xf32>, vector<32x128xf32>, vector<32x128xf32> -> vector<32x128xf32>
    %88 = arith.addf %86, %87 : vector<32x128xf32>
    %89 = arith.negf %88 : vector<32x128xf32>
    %90 = math.exp %89 : vector<32x128xf32>
    %cst_34 = arith.constant 1.000000e+00 : f32
    %91 = vector.broadcast %cst_34 : f32 to vector<32x128xf32>
    %92 = arith.addf %91, %90 : vector<32x128xf32>
    %93 = arith.divf %91, %92 : vector<32x128xf32>
    %94 = vector.extract_strided_slice %93 {offsets = [0, 0], sizes = [32, 32], strides = [1, 1]} : vector<32x128xf32> to vector<32x32xf32>
    %95 = vector.extract_strided_slice %93 {offsets = [0, 32], sizes = [32, 32], strides = [1, 1]} : vector<32x128xf32> to vector<32x32xf32>
    %96 = vector.extract_strided_slice %93 {offsets = [0, 96], sizes = [32, 32], strides = [1, 1]} : vector<32x128xf32> to vector<32x32xf32>
    %97 = vector.extract_strided_slice %88 {offsets = [0, 64], sizes = [32, 32], strides = [1, 1]} : vector<32x128xf32> to vector<32x32xf32>
    %98 = math.tanh %97 : vector<32x32xf32>
    %99 = arith.mulf %95, %77 : vector<32x32xf32>
    %100 = arith.mulf %94, %98 : vector<32x32xf32>
    %101 = arith.addf %99, %100 : vector<32x32xf32>
    %102 = math.tanh %101 : vector<32x32xf32>
    %103 = arith.mulf %96, %102 : vector<32x32xf32>
    %104 = arith.index_cast %c3_i32 : i32 to index
    %c0_35 = arith.constant 0 : index
    %c0_36 = arith.constant 0 : index
    %105 = vector.load %arg9[%104, %c0_35, %c0_36] : memref<8x32x32xf32, #tpu.memory_space<vmem>>, vector<1x32x32xf32>
    %106 = vector.shape_cast %105 : vector<1x32x32xf32> to vector<32x32xf32>
    %107 = vector.shape_cast %103 : vector<32x32xf32> to vector<1x32x32xf32>
    tpu.vector_store %arg9[%104, %c0_35, %c0_36], %107 {strides = array<i32>} : memref<8x32x32xf32, #tpu.memory_space<vmem>>, vector<1x32x32xf32>,
    %c4_i32 = arith.constant 4 : i32
    %108 = arith.index_cast %c4_i32 : i32 to index
    %c0_37 = arith.constant 0 : index
    %c0_38 = arith.constant 0 : index
    %109 = vector.load %arg8[%108, %c0_37, %c0_38] : memref<8x32x128xf32, #tpu.memory_space<vmem>>, vector<1x32x128xf32>
    %110 = vector.shape_cast %109 : vector<1x32x128xf32> to vector<32x128xf32>
    %cst_39 = arith.constant dense<0.000000e+00> : vector<32x128xf32>
    %111 = tpu.matmul %103, %9, %cst_39 {dimension_numbers = #tpu.dot_dimension_numbers<[1], [0], [0], [1], [0, 0, 1, 1], [], []>} : vector<32x32xf32>, vector<32x128xf32>, vector<32x128xf32> -> vector<32x128xf32>
    %112 = arith.addf %110, %111 : vector<32x128xf32>
    %113 = arith.negf %112 : vector<32x128xf32>
    %114 = math.exp %113 : vector<32x128xf32>
    %cst_40 = arith.constant 1.000000e+00 : f32
    %115 = vector.broadcast %cst_40 : f32 to vector<32x128xf32>
    %116 = arith.addf %115, %114 : vector<32x128xf32>
    %117 = arith.divf %115, %116 : vector<32x128xf32>
    %118 = vector.extract_strided_slice %117 {offsets = [0, 0], sizes = [32, 32], strides = [1, 1]} : vector<32x128xf32> to vector<32x32xf32>
    %119 = vector.extract_strided_slice %117 {offsets = [0, 32], sizes = [32, 32], strides = [1, 1]} : vector<32x128xf32> to vector<32x32xf32>
    %120 = vector.extract_strided_slice %117 {offsets = [0, 96], sizes = [32, 32], strides = [1, 1]} : vector<32x128xf32> to vector<32x32xf32>
    %121 = vector.extract_strided_slice %112 {offsets = [0, 64], sizes = [32, 32], strides = [1, 1]} : vector<32x128xf32> to vector<32x32xf32>
    %122 = math.tanh %121 : vector<32x32xf32>
    %123 = arith.mulf %119, %101 : vector<32x32xf32>
    %124 = arith.mulf %118, %122 : vector<32x32xf32>
    %125 = arith.addf %123, %124 : vector<32x32xf32>
    %126 = math.tanh %125 : vector<32x32xf32>
    %127 = arith.mulf %120, %126 : vector<32x32xf32>
    %128 = arith.index_cast %c4_i32 : i32 to index
    %c0_41 = arith.constant 0 : index
    %c0_42 = arith.constant 0 : index
    %129 = vector.load %arg9[%128, %c0_41, %c0_42] : memref<8x32x32xf32, #tpu.memory_space<vmem>>, vector<1x32x32xf32>
    %130 = vector.shape_cast %129 : vector<1x32x32xf32> to vector<32x32xf32>
    %131 = vector.shape_cast %127 : vector<32x32xf32> to vector<1x32x32xf32>
    tpu.vector_store %arg9[%128, %c0_41, %c0_42], %131 {strides = array<i32>} : memref<8x32x32xf32, #tpu.memory_space<vmem>>, vector<1x32x32xf32>,
    %c5_i32 = arith.constant 5 : i32
    %132 = arith.index_cast %c5_i32 : i32 to index
    %c0_43 = arith.constant 0 : index
    %c0_44 = arith.constant 0 : index
    %133 = vector.load %arg8[%132, %c0_43, %c0_44] : memref<8x32x128xf32, #tpu.memory_space<vmem>>, vector<1x32x128xf32>
    %134 = vector.shape_cast %133 : vector<1x32x128xf32> to vector<32x128xf32>
    %cst_45 = arith.constant dense<0.000000e+00> : vector<32x128xf32>
    %135 = tpu.matmul %127, %9, %cst_45 {dimension_numbers = #tpu.dot_dimension_numbers<[1], [0], [0], [1], [0, 0, 1, 1], [], []>} : vector<32x32xf32>, vector<32x128xf32>, vector<32x128xf32> -> vector<32x128xf32>
    %136 = arith.addf %134, %135 : vector<32x128xf32>
    %137 = arith.negf %136 : vector<32x128xf32>
    %138 = math.exp %137 : vector<32x128xf32>
    %cst_46 = arith.constant 1.000000e+00 : f32
    %139 = vector.broadcast %cst_46 : f32 to vector<32x128xf32>
    %140 = arith.addf %139, %138 : vector<32x128xf32>
    %141 = arith.divf %139, %140 : vector<32x128xf32>
    %142 = vector.extract_strided_slice %141 {offsets = [0, 0], sizes = [32, 32], strides = [1, 1]} : vector<32x128xf32> to vector<32x32xf32>
    %143 = vector.extract_strided_slice %141 {offsets = [0, 32], sizes = [32, 32], strides = [1, 1]} : vector<32x128xf32> to vector<32x32xf32>
    %144 = vector.extract_strided_slice %141 {offsets = [0, 96], sizes = [32, 32], strides = [1, 1]} : vector<32x128xf32> to vector<32x32xf32>
    %145 = vector.extract_strided_slice %136 {offsets = [0, 64], sizes = [32, 32], strides = [1, 1]} : vector<32x128xf32> to vector<32x32xf32>
    %146 = math.tanh %145 : vector<32x32xf32>
    %147 = arith.mulf %143, %125 : vector<32x32xf32>
    %148 = arith.mulf %142, %146 : vector<32x32xf32>
    %149 = arith.addf %147, %148 : vector<32x32xf32>
    %150 = math.tanh %149 : vector<32x32xf32>
    %151 = arith.mulf %144, %150 : vector<32x32xf32>
    %152 = arith.index_cast %c5_i32 : i32 to index
    %c0_47 = arith.constant 0 : index
    %c0_48 = arith.constant 0 : index
    %153 = vector.load %arg9[%152, %c0_47, %c0_48] : memref<8x32x32xf32, #tpu.memory_space<vmem>>, vector<1x32x32xf32>
    %154 = vector.shape_cast %153 : vector<1x32x32xf32> to vector<32x32xf32>
    %155 = vector.shape_cast %151 : vector<32x32xf32> to vector<1x32x32xf32>
    tpu.vector_store %arg9[%152, %c0_47, %c0_48], %155 {strides = array<i32>} : memref<8x32x32xf32, #tpu.memory_space<vmem>>, vector<1x32x32xf32>,
    %c6_i32 = arith.constant 6 : i32
    %156 = arith.index_cast %c6_i32 : i32 to index
    %c0_49 = arith.constant 0 : index
    %c0_50 = arith.constant 0 : index
    %157 = vector.load %arg8[%156, %c0_49, %c0_50] : memref<8x32x128xf32, #tpu.memory_space<vmem>>, vector<1x32x128xf32>
    %158 = vector.shape_cast %157 : vector<1x32x128xf32> to vector<32x128xf32>
    %cst_51 = arith.constant dense<0.000000e+00> : vector<32x128xf32>
    %159 = tpu.matmul %151, %9, %cst_51 {dimension_numbers = #tpu.dot_dimension_numbers<[1], [0], [0], [1], [0, 0, 1, 1], [], []>} : vector<32x32xf32>, vector<32x128xf32>, vector<32x128xf32> -> vector<32x128xf32>
    %160 = arith.addf %158, %159 : vector<32x128xf32>
    %161 = arith.negf %160 : vector<32x128xf32>
    %162 = math.exp %161 : vector<32x128xf32>
    %cst_52 = arith.constant 1.000000e+00 : f32
    %163 = vector.broadcast %cst_52 : f32 to vector<32x128xf32>
    %164 = arith.addf %163, %162 : vector<32x128xf32>
    %165 = arith.divf %163, %164 : vector<32x128xf32>
    %166 = vector.extract_strided_slice %165 {offsets = [0, 0], sizes = [32, 32], strides = [1, 1]} : vector<32x128xf32> to vector<32x32xf32>
    %167 = vector.extract_strided_slice %165 {offsets = [0, 32], sizes = [32, 32], strides = [1, 1]} : vector<32x128xf32> to vector<32x32xf32>
    %168 = vector.extract_strided_slice %165 {offsets = [0, 96], sizes = [32, 32], strides = [1, 1]} : vector<32x128xf32> to vector<32x32xf32>
    %169 = vector.extract_strided_slice %160 {offsets = [0, 64], sizes = [32, 32], strides = [1, 1]} : vector<32x128xf32> to vector<32x32xf32>
    %170 = math.tanh %169 : vector<32x32xf32>
    %171 = arith.mulf %167, %149 : vector<32x32xf32>
    %172 = arith.mulf %166, %170 : vector<32x32xf32>
    %173 = arith.addf %171, %172 : vector<32x32xf32>
    %174 = math.tanh %173 : vector<32x32xf32>
    %175 = arith.mulf %168, %174 : vector<32x32xf32>
    %176 = arith.index_cast %c6_i32 : i32 to index
    %c0_53 = arith.constant 0 : index
    %c0_54 = arith.constant 0 : index
    %177 = vector.load %arg9[%176, %c0_53, %c0_54] : memref<8x32x32xf32, #tpu.memory_space<vmem>>, vector<1x32x32xf32>
    %178 = vector.shape_cast %177 : vector<1x32x32xf32> to vector<32x32xf32>
    %179 = vector.shape_cast %175 : vector<32x32xf32> to vector<1x32x32xf32>
    tpu.vector_store %arg9[%176, %c0_53, %c0_54], %179 {strides = array<i32>} : memref<8x32x32xf32, #tpu.memory_space<vmem>>, vector<1x32x32xf32>,
    %c7_i32 = arith.constant 7 : i32
    %180 = arith.index_cast %c7_i32 : i32 to index
    %c0_55 = arith.constant 0 : index
    %c0_56 = arith.constant 0 : index
    %181 = vector.load %arg8[%180, %c0_55, %c0_56] : memref<8x32x128xf32, #tpu.memory_space<vmem>>, vector<1x32x128xf32>
    %182 = vector.shape_cast %181 : vector<1x32x128xf32> to vector<32x128xf32>
    %cst_57 = arith.constant dense<0.000000e+00> : vector<32x128xf32>
    %183 = tpu.matmul %175, %9, %cst_57 {dimension_numbers = #tpu.dot_dimension_numbers<[1], [0], [0], [1], [0, 0, 1, 1], [], []>} : vector<32x32xf32>, vector<32x128xf32>, vector<32x128xf32> -> vector<32x128xf32>
    %184 = arith.addf %182, %183 : vector<32x128xf32>
    %185 = arith.negf %184 : vector<32x128xf32>
    %186 = math.exp %185 : vector<32x128xf32>
    %cst_58 = arith.constant 1.000000e+00 : f32
    %187 = vector.broadcast %cst_58 : f32 to vector<32x128xf32>
    %188 = arith.addf %187, %186 : vector<32x128xf32>
    %189 = arith.divf %187, %188 : vector<32x128xf32>
    %190 = vector.extract_strided_slice %189 {offsets = [0, 0], sizes = [32, 32], strides = [1, 1]} : vector<32x128xf32> to vector<32x32xf32>
    %191 = vector.extract_strided_slice %189 {offsets = [0, 32], sizes = [32, 32], strides = [1, 1]} : vector<32x128xf32> to vector<32x32xf32>
    %192 = vector.extract_strided_slice %189 {offsets = [0, 96], sizes = [32, 32], strides = [1, 1]} : vector<32x128xf32> to vector<32x32xf32>
    %193 = vector.extract_strided_slice %184 {offsets = [0, 64], sizes = [32, 32], strides = [1, 1]} : vector<32x128xf32> to vector<32x32xf32>
    %194 = math.tanh %193 : vector<32x32xf32>
    %195 = arith.mulf %191, %173 : vector<32x32xf32>
    %196 = arith.mulf %190, %194 : vector<32x32xf32>
    %197 = arith.addf %195, %196 : vector<32x32xf32>
    %198 = math.tanh %197 : vector<32x32xf32>
    %199 = arith.mulf %192, %198 : vector<32x32xf32>
    %200 = arith.index_cast %c7_i32 : i32 to index
    %c0_59 = arith.constant 0 : index
    %c0_60 = arith.constant 0 : index
    %201 = vector.load %arg9[%200, %c0_59, %c0_60] : memref<8x32x32xf32, #tpu.memory_space<vmem>>, vector<1x32x32xf32>
    %202 = vector.shape_cast %201 : vector<1x32x32xf32> to vector<32x32xf32>
    %203 = vector.shape_cast %199 : vector<32x32xf32> to vector<1x32x32xf32>
    tpu.vector_store %arg9[%200, %c0_59, %c0_60], %203 {strides = array<i32>} : memref<8x32x32xf32, #tpu.memory_space<vmem>>, vector<1x32x32xf32>,
    %c8_i32 = arith.constant 8 : i32
    %cst_61 = arith.constant 0.000000e+00 : f32
    %204 = vector.broadcast %cst_61 : f32 to vector<32x128xf32>
    %c0_62 = arith.constant 0 : index
    %c0_63 = arith.constant 0 : index
    %c0_64 = arith.constant 0 : index
    %205 = vector.load %arg9[%c0_62, %c0_63, %c0_64] : memref<8x32x32xf32, #tpu.memory_space<vmem>>, vector<1x32x32xf32>
    %206 = vector.shape_cast %205 : vector<1x32x32xf32> to vector<32x32xf32>
    %c0_65 = arith.constant 0 : index
    %c0_66 = arith.constant 0 : index
    %c0_67 = arith.constant 0 : index
    %207 = vector.load %arg5[%c0_65, %c0_66, %c0_67] : memref<8x32x128xf32, #tpu.memory_space<vmem>>, vector<1x32x128xf32>
    %208 = vector.shape_cast %207 : vector<1x32x128xf32> to vector<32x128xf32>
    %cst_68 = arith.constant dense<0.000000e+00> : vector<32x128xf32>
    %209 = tpu.matmul %206, %208, %cst_68 {dimension_numbers = #tpu.dot_dimension_numbers<[1], [0], [0], [1], [0, 0, 1, 1], [], []>} : vector<32x32xf32>, vector<32x128xf32>, vector<32x128xf32> -> vector<32x128xf32>
    %210 = arith.addf %204, %209 : vector<32x128xf32>
    %c1 = arith.constant 1 : index
    %c0_69 = arith.constant 0 : index
    %c0_70 = arith.constant 0 : index
    %211 = vector.load %arg9[%c1, %c0_69, %c0_70] : memref<8x32x32xf32, #tpu.memory_space<vmem>>, vector<1x32x32xf32>
    %212 = vector.shape_cast %211 : vector<1x32x32xf32> to vector<32x32xf32>
    %c1_71 = arith.constant 1 : index
    %c0_72 = arith.constant 0 : index
    %c0_73 = arith.constant 0 : index
    %213 = vector.load %arg5[%c1_71, %c0_72, %c0_73] : memref<8x32x128xf32, #tpu.memory_space<vmem>>, vector<1x32x128xf32>
    %214 = vector.shape_cast %213 : vector<1x32x128xf32> to vector<32x128xf32>
    %cst_74 = arith.constant dense<0.000000e+00> : vector<32x128xf32>
    %215 = tpu.matmul %212, %214, %cst_74 {dimension_numbers = #tpu.dot_dimension_numbers<[1], [0], [0], [1], [0, 0, 1, 1], [], []>} : vector<32x32xf32>, vector<32x128xf32>, vector<32x128xf32> -> vector<32x128xf32>
    %216 = arith.addf %210, %215 : vector<32x128xf32>
    %c2 = arith.constant 2 : index
    %c0_75 = arith.constant 0 : index
    %c0_76 = arith.constant 0 : index
    %217 = vector.load %arg9[%c2, %c0_75, %c0_76] : memref<8x32x32xf32, #tpu.memory_space<vmem>>, vector<1x32x32xf32>
    %218 = vector.shape_cast %217 : vector<1x32x32xf32> to vector<32x32xf32>
    %c2_77 = arith.constant 2 : index
    %c0_78 = arith.constant 0 : index
    %c0_79 = arith.constant 0 : index
    %219 = vector.load %arg5[%c2_77, %c0_78, %c0_79] : memref<8x32x128xf32, #tpu.memory_space<vmem>>, vector<1x32x128xf32>
    %220 = vector.shape_cast %219 : vector<1x32x128xf32> to vector<32x128xf32>
    %cst_80 = arith.constant dense<0.000000e+00> : vector<32x128xf32>
    %221 = tpu.matmul %218, %220, %cst_80 {dimension_numbers = #tpu.dot_dimension_numbers<[1], [0], [0], [1], [0, 0, 1, 1], [], []>} : vector<32x32xf32>, vector<32x128xf32>, vector<32x128xf32> -> vector<32x128xf32>
    %222 = arith.addf %216, %221 : vector<32x128xf32>
    %c3 = arith.constant 3 : index
    %c0_81 = arith.constant 0 : index
    %c0_82 = arith.constant 0 : index
    %223 = vector.load %arg9[%c3, %c0_81, %c0_82] : memref<8x32x32xf32, #tpu.memory_space<vmem>>, vector<1x32x32xf32>
    %224 = vector.shape_cast %223 : vector<1x32x32xf32> to vector<32x32xf32>
    %c3_83 = arith.constant 3 : index
    %c0_84 = arith.constant 0 : index
    %c0_85 = arith.constant 0 : index
    %225 = vector.load %arg5[%c3_83, %c0_84, %c0_85] : memref<8x32x128xf32, #tpu.memory_space<vmem>>, vector<1x32x128xf32>
    %226 = vector.shape_cast %225 : vector<1x32x128xf32> to vector<32x128xf32>
    %cst_86 = arith.constant dense<0.000000e+00> : vector<32x128xf32>
    %227 = tpu.matmul %224, %226, %cst_86 {dimension_numbers = #tpu.dot_dimension_numbers<[1], [0], [0], [1], [0, 0, 1, 1], [], []>} : vector<32x32xf32>, vector<32x128xf32>, vector<32x128xf32> -> vector<32x128xf32>
    %228 = arith.addf %222, %227 : vector<32x128xf32>
    %c4 = arith.constant 4 : index
    %c0_87 = arith.constant 0 : index
    %c0_88 = arith.constant 0 : index
    %229 = vector.load %arg9[%c4, %c0_87, %c0_88] : memref<8x32x32xf32, #tpu.memory_space<vmem>>, vector<1x32x32xf32>
    %230 = vector.shape_cast %229 : vector<1x32x32xf32> to vector<32x32xf32>
    %c4_89 = arith.constant 4 : index
    %c0_90 = arith.constant 0 : index
    %c0_91 = arith.constant 0 : index
    %231 = vector.load %arg5[%c4_89, %c0_90, %c0_91] : memref<8x32x128xf32, #tpu.memory_space<vmem>>, vector<1x32x128xf32>
    %232 = vector.shape_cast %231 : vector<1x32x128xf32> to vector<32x128xf32>
    %cst_92 = arith.constant dense<0.000000e+00> : vector<32x128xf32>
    %233 = tpu.matmul %230, %232, %cst_92 {dimension_numbers = #tpu.dot_dimension_numbers<[1], [0], [0], [1], [0, 0, 1, 1], [], []>} : vector<32x32xf32>, vector<32x128xf32>, vector<32x128xf32> -> vector<32x128xf32>
    %234 = arith.addf %228, %233 : vector<32x128xf32>
    %c5 = arith.constant 5 : index
    %c0_93 = arith.constant 0 : index
    %c0_94 = arith.constant 0 : index
    %235 = vector.load %arg9[%c5, %c0_93, %c0_94] : memref<8x32x32xf32, #tpu.memory_space<vmem>>, vector<1x32x32xf32>
    %236 = vector.shape_cast %235 : vector<1x32x32xf32> to vector<32x32xf32>
    %c5_95 = arith.constant 5 : index
    %c0_96 = arith.constant 0 : index
    %c0_97 = arith.constant 0 : index
    %237 = vector.load %arg5[%c5_95, %c0_96, %c0_97] : memref<8x32x128xf32, #tpu.memory_space<vmem>>, vector<1x32x128xf32>
    %238 = vector.shape_cast %237 : vector<1x32x128xf32> to vector<32x128xf32>
    %cst_98 = arith.constant dense<0.000000e+00> : vector<32x128xf32>
    %239 = tpu.matmul %236, %238, %cst_98 {dimension_numbers = #tpu.dot_dimension_numbers<[1], [0], [0], [1], [0, 0, 1, 1], [], []>} : vector<32x32xf32>, vector<32x128xf32>, vector<32x128xf32> -> vector<32x128xf32>
    %240 = arith.addf %234, %239 : vector<32x128xf32>
    %c6 = arith.constant 6 : index
    %c0_99 = arith.constant 0 : index
    %c0_100 = arith.constant 0 : index
    %241 = vector.load %arg9[%c6, %c0_99, %c0_100] : memref<8x32x32xf32, #tpu.memory_space<vmem>>, vector<1x32x32xf32>
    %242 = vector.shape_cast %241 : vector<1x32x32xf32> to vector<32x32xf32>
    %c6_101 = arith.constant 6 : index
    %c0_102 = arith.constant 0 : index
    %c0_103 = arith.constant 0 : index
    %243 = vector.load %arg5[%c6_101, %c0_102, %c0_103] : memref<8x32x128xf32, #tpu.memory_space<vmem>>, vector<1x32x128xf32>
    %244 = vector.shape_cast %243 : vector<1x32x128xf32> to vector<32x128xf32>
    %cst_104 = arith.constant dense<0.000000e+00> : vector<32x128xf32>
    %245 = tpu.matmul %242, %244, %cst_104 {dimension_numbers = #tpu.dot_dimension_numbers<[1], [0], [0], [1], [0, 0, 1, 1], [], []>} : vector<32x32xf32>, vector<32x128xf32>, vector<32x128xf32> -> vector<32x128xf32>
    %246 = arith.addf %240, %245 : vector<32x128xf32>
    %c7 = arith.constant 7 : index
    %c0_105 = arith.constant 0 : index
    %c0_106 = arith.constant 0 : index
    %247 = vector.load %arg9[%c7, %c0_105, %c0_106] : memref<8x32x32xf32, #tpu.memory_space<vmem>>, vector<1x32x32xf32>
    %248 = vector.shape_cast %247 : vector<1x32x32xf32> to vector<32x32xf32>
    %c7_107 = arith.constant 7 : index
    %c0_108 = arith.constant 0 : index
    %c0_109 = arith.constant 0 : index
    %249 = vector.load %arg5[%c7_107, %c0_108, %c0_109] : memref<8x32x128xf32, #tpu.memory_space<vmem>>, vector<1x32x128xf32>
    %250 = vector.shape_cast %249 : vector<1x32x128xf32> to vector<32x128xf32>
    %cst_110 = arith.constant dense<0.000000e+00> : vector<32x128xf32>
    %251 = tpu.matmul %248, %250, %cst_110 {dimension_numbers = #tpu.dot_dimension_numbers<[1], [0], [0], [1], [0, 0, 1, 1], [], []>} : vector<32x32xf32>, vector<32x128xf32>, vector<32x128xf32> -> vector<32x128xf32>
    %252 = arith.addf %246, %251 : vector<32x128xf32>
    %c0_111 = arith.constant 0 : index
    %c0_112 = arith.constant 0 : index
    %253 = vector.load %arg6[%c0_111, %c0_112] : memref<1x128xf32, #tpu.memory_space<vmem>>, vector<1x128xf32>
    %254 = vector.broadcast %253 : vector<1x128xf32> to vector<32x128xf32>
    %255 = arith.addf %252, %254 : vector<32x128xf32>
    %c0_113 = arith.constant 0 : index
    %c0_114 = arith.constant 0 : index
    %256 = vector.load %arg7[%c0_113, %c0_114] : memref<32x128xf32, #tpu.memory_space<vmem>>, vector<32x128xf32>
    tpu.vector_store %arg7[%c0_113, %c0_114], %255 {strides = array<i32>} : memref<32x128xf32, #tpu.memory_space<vmem>>, vector<32x128xf32>,
    return
  }
  func.func @transform_0(%arg0: i32) -> (i32, i32, i32) {
    %c0_i32 = arith.constant 0 : i32
    %c0_i32_0 = arith.constant 0 : i32
    %c0_i32_1 = arith.constant 0 : i32
    return %c0_i32, %arg0, %c0_i32_0 : i32, i32, i32
  }
  func.func @transform_1(%arg0: i32) -> (i32, i32) {
    %c0_i32 = arith.constant 0 : i32
    %c0_i32_0 = arith.constant 0 : i32
    %c0_i32_1 = arith.constant 0 : i32
    return %c0_i32, %c0_i32_0 : i32, i32
  }
  func.func @transform_2(%arg0: i32) -> (i32, i32) {
    %c0_i32 = arith.constant 0 : i32
    %c0_i32_0 = arith.constant 0 : i32
    %c0_i32_1 = arith.constant 0 : i32
    return %c0_i32, %c0_i32_0 : i32, i32
  }
  func.func @transform_3(%arg0: i32) -> (i32, i32) {
    %c0_i32 = arith.constant 0 : i32
    %c0_i32_0 = arith.constant 0 : i32
    %c0_i32_1 = arith.constant 0 : i32
    return %c0_i32, %c0_i32_0 : i32, i32
  }
  func.func @transform_4(%arg0: i32) -> (i32, i32, i32) {
    %c0_i32 = arith.constant 0 : i32
    %c0_i32_0 = arith.constant 0 : i32
    %c0_i32_1 = arith.constant 0 : i32
    %c0_i32_2 = arith.constant 0 : i32
    return %c0_i32, %c0_i32_0, %c0_i32_1 : i32, i32, i32
  }
  func.func @transform_5(%arg0: i32) -> (i32, i32) {
    %c0_i32 = arith.constant 0 : i32
    %c0_i32_0 = arith.constant 0 : i32
    %c0_i32_1 = arith.constant 0 : i32
    return %c0_i32, %c0_i32_0 : i32, i32
  }
  func.func @transform_6(%arg0: i32) -> (i32, i32) {
    %c0_i32 = arith.constant 0 : i32
    %c0_i32_0 = arith.constant 0 : i32
    return %arg0, %c0_i32 : i32, i32
  }
}

</mosaic_0001>

<llo_original>
// kernel: tpu_custom_call.1
$region0: #{tpu_custom_call.1}
  #allocation0 [shape = 'u32[]', space=smem, size = 0x4, offset = 0x4, fixed_abs, tag = 'smem constant byte address 0x4 - core index']
  #allocation1 [shape = 'u32[144,128]{1,0:T(1,128)}', space=vmem, size = 0x12000, scoped, tag = 'internal scratch']
  #allocation2 [shape = 'f32[8,32,128]{2,1,0:T(8,128)}', space=vmem, size = 0x20000, scoped, tag = 'scratch operand']
  #allocation3 [shape = 'f32[8,32,32]{2,1,0:T(8,128)}', space=vmem, size = 0x20000, scoped, tag = 'scratch operand']
  %s0 = inlined_call_operand.vmem [shape: f32[8,64,5], index: 0, kind: input, shape index: {}]
  %s1 = inlined_call_operand.vmem [shape: f32[5,128], index: 1, kind: input, shape index: {}]
  %s2 = inlined_call_operand.vmem [shape: f32[32,128], index: 2, kind: input, shape index: {}]
  %s3 = inlined_call_operand.vmem [shape: f32[1,128], index: 3, kind: input, shape index: {}]
  %s4 = inlined_call_operand.vmem [shape: f32[8,32,128], index: 4, kind: input, shape index: {}]
  %s5 = inlined_call_operand.vmem [shape: f32[1,128], index: 5, kind: input, shape index: {}]
  %s6 = inlined_call_operand.hbm [shape: f32[64,128], index: 6, kind: output, shape index: {}]
  %s7 = sld [smem:[#allocation0]]
  $region95: #{tpu_custom_call.1} parent=0
    _
  %s9 = ssub.s32 1, %s7
  %s10 = scalar_select 0, %s9, %s7
  $region1: #{tpu_custom_call.1} parent=0
    #allocation4 [shape = 'u8[262144]{0}', space=vmem, size = 0x40000, scoped, tag = 'input window, operand 0']
    #allocation5 [shape = 'u8[32768]{0}', space=vmem, size = 0x8000, scoped, tag = 'output window, operand 0']
    #allocation6 [shape = 's32[2]{0}', space=sflag, size = 0x8, scoped, tag = 'scoped memory for tpu_custom_call.1']
    %11 = vsyncpa [#allocation6], 0
    %s12 = scalar_lea.sflag [#allocation6], 1
    %13 = vsyncpa %s12, 0
    loop: start=0, step=1, limit=4
    $region2: #{tpu_custom_call.1} parent=1 // loop_pre_header
      _
    $region3: #{tpu_custom_call.1} parent=1 // loop_header
      %s15 = sphi 0, %s19
      %p16 = scmp.ge.s32.totalorder %s15, 4
      %s25 = sphi 0, %s27
      %s28 = sphi 0, %s25
      %s29 = sphi 0, %s28
      %s45 = sphi 0, %s29
      %s49 = sphi 0, %s49
      %s51 = sphi 0, %s49
      %s52 = sphi 0, %s51
      %s66 = sphi 0, %s52
      %s70 = sphi 0, %s70
      %s72 = sphi 0, %s70
      %s73 = sphi 0, %s72
      %s87 = sphi 0, %s73
      %s91 = sphi 0, %s91
      %s93 = sphi 0, %s91
      %s94 = sphi 0, %s93
      %s108 = sphi 0, %s94
      %s112 = sphi 0, %s112
      %s114 = sphi 0, %s112
      %s115 = sphi 0, %s114
      %s129 = sphi 0, %s115
      %s133 = sphi 0, %s133
      %s135 = sphi 0, %s133
      %s136 = sphi 0, %s135
      %s150 = sphi 0, %s136
      %s156 = sphi 0, %s158
      %s159 = sphi 0, %s156
      %s160 = sphi 0, %s159
      %s176 = sphi 0, %s160
    $region4: #{tpu_custom_call.1} parent=1 // loop_header_branch
      %18 = sbr.rel (%p16) target = $region8
    $region5: #{tpu_custom_call.1} parent=1 // loop_body
      %s20 = ssub.s32 %s15, 1
      %s21 = ssub.s32 %s15, 2
      %s22 = sadd.s32 %s15, 1
      %s23 = ssub.s32 %s15, %s22
      %p24 = scmp.eq.s32.totalorder %s23, 0
      %s26 = sadd.s32 %s25, 1
      %s27 = scalar_select %p24, %s25, %s26
      %p30 = pneg %p24
      %p31 = scmp.eq.s32.totalorder %s15, 1
      %p32 = por %p30, %p31
      %p33 = scmp.ne.s32.totalorder %s25, %s28
      %p34 = scmp.eq.s32.totalorder %s15, 0
      %p35 = por %p33, %p34
      %p36 = scmp.ne.s32.totalorder %s25, %s28
      %p37 = scmp.eq.s32.totalorder %s20, 1
      %p38 = por %p36, %p37
      %p39 = scmp.ne.s32.totalorder %s28, %s29
      %p40 = scmp.eq.s32.totalorder %s20, 0
      %p41 = por %p39, %p40
      %p42 = scmp.ne.s32.totalorder %s28, %s29
      %p43 = scmp.eq.s32.totalorder %s21, 1
      %p44 = por %p42, %p43
      %p46 = scmp.ne.s32.totalorder %s29, %s45
      %p47 = scmp.eq.s32.totalorder %s21, 0
      %p48 = por %p46, %p47
      %s50 = sadd.s32 %s49, 1
      %p53 = scmp.eq.s32.totalorder %s15, 1
      %p54 = scmp.ne.s32.totalorder %s49, %s51
      %p55 = scmp.eq.s32.totalorder %s15, 0
      %p56 = por %p54, %p55
      %p57 = scmp.ne.s32.totalorder %s49, %s51
      %p58 = scmp.eq.s32.totalorder %s20, 1
      %p59 = por %p57, %p58
      %p60 = scmp.ne.s32.totalorder %s51, %s52
      %p61 = scmp.eq.s32.totalorder %s20, 0
      %p62 = por %p60, %p61
      %p63 = scmp.ne.s32.totalorder %s51, %s52
      %p64 = scmp.eq.s32.totalorder %s21, 1
      %p65 = por %p63, %p64
      %p67 = scmp.ne.s32.totalorder %s52, %s66
      %p68 = scmp.eq.s32.totalorder %s21, 0
      %p69 = por %p67, %p68
      %s71 = sadd.s32 %s70, 1
      %p74 = scmp.eq.s32.totalorder %s15, 1
      %p75 = scmp.ne.s32.totalorder %s70, %s72
      %p76 = scmp.eq.s32.totalorder %s15, 0
      %p77 = por %p75, %p76
      %p78 = scmp.ne.s32.totalorder %s70, %s72
      %p79 = scmp.eq.s32.totalorder %s20, 1
      %p80 = por %p78, %p79
      %p81 = scmp.ne.s32.totalorder %s72, %s73
      %p82 = scmp.eq.s32.totalorder %s20, 0
      %p83 = por %p81, %p82
      %p84 = scmp.ne.s32.totalorder %s72, %s73
      %p85 = scmp.eq.s32.totalorder %s21, 1
      %p86 = por %p84, %p85
      %p88 = scmp.ne.s32.totalorder %s73, %s87
      %p89 = scmp.eq.s32.totalorder %s21, 0
      %p90 = por %p88, %p89
      %s92 = sadd.s32 %s91, 1
      %p95 = scmp.eq.s32.totalorder %s15, 1
      %p96 = scmp.ne.s32.totalorder %s91, %s93
      %p97 = scmp.eq.s32.totalorder %s15, 0
      %p98 = por %p96, %p97
      %p99 = scmp.ne.s32.totalorder %s91, %s93
      %p100 = scmp.eq.s32.totalorder %s20, 1
      %p101 = por %p99, %p100
      %p102 = scmp.ne.s32.totalorder %s93, %s94
      %p103 = scmp.eq.s32.totalorder %s20, 0
      %p104 = por %p102, %p103
      %p105 = scmp.ne.s32.totalorder %s93, %s94
      %p106 = scmp.eq.s32.totalorder %s21, 1
      %p107 = por %p105, %p106
      %p109 = scmp.ne.s32.totalorder %s94, %s108
      %p110 = scmp.eq.s32.totalorder %s21, 0
      %p111 = por %p109, %p110
      %s113 = sadd.s32 %s112, 1
      %p116 = scmp.eq.s32.totalorder %s15, 1
      %p117 = scmp.ne.s32.totalorder %s112, %s114
      %p118 = scmp.eq.s32.totalorder %s15, 0
      %p119 = por %p117, %p118
      %p120 = scmp.ne.s32.totalorder %s112, %s114
      %p121 = scmp.eq.s32.totalorder %s20, 1
      %p122 = por %p120, %p121
      %p123 = scmp.ne.s32.totalorder %s114, %s115
      %p124 = scmp.eq.s32.totalorder %s20, 0
      %p125 = por %p123, %p124
      %p126 = scmp.ne.s32.totalorder %s114, %s115
      %p127 = scmp.eq.s32.totalorder %s21, 1
      %p128 = por %p126, %p127
      %p130 = scmp.ne.s32.totalorder %s115, %s129
      %p131 = scmp.eq.s32.totalorder %s21, 0
      %p132 = por %p130, %p131
      %s134 = sadd.s32 %s133, 1
      %p137 = scmp.eq.s32.totalorder %s15, 1
      %p138 = scmp.ne.s32.totalorder %s133, %s135
      %p139 = scmp.eq.s32.totalorder %s15, 0
      %p140 = por %p138, %p139
      %p141 = scmp.ne.s32.totalorder %s133, %s135
      %p142 = scmp.eq.s32.totalorder %s20, 1
      %p143 = por %p141, %p142
      %p144 = scmp.ne.s32.totalorder %s135, %s136
      %p145 = scmp.eq.s32.totalorder %s20, 0
      %p146 = por %p144, %p145
      %p147 = scmp.ne.s32.totalorder %s135, %s136
      %p148 = scmp.eq.s32.totalorder %s21, 1
      %p149 = por %p147, %p148
      %p151 = scmp.ne.s32.totalorder %s136, %s150
      %p152 = scmp.eq.s32.totalorder %s21, 0
      %p153 = por %p151, %p152
      %s154 = ssub.s32 %s15, %s22
      %p155 = scmp.eq.s32.totalorder %s154, 0
      %s157 = sadd.s32 %s156, 1
      %s158 = scalar_select %p155, %s156, %s157
      %p161 = pneg %p155
      %p162 = scmp.eq.s32.totalorder %s15, 1
      %p163 = por %p161, %p162
      %p164 = scmp.ne.s32.totalorder %s156, %s159
      %p165 = scmp.eq.s32.totalorder %s15, 0
      %p166 = por %p164, %p165
      %p167 = scmp.ne.s32.totalorder %s156, %s159
      %p168 = scmp.eq.s32.totalorder %s20, 1
      %p169 = por %p167, %p168
      %p170 = scmp.ne.s32.totalorder %s159, %s160
      %p171 = scmp.eq.s32.totalorder %s20, 0
      %p172 = por %p170, %p171
      %p173 = scmp.ne.s32.totalorder %s159, %s160
      %p174 = scmp.eq.s32.totalorder %s21, 1
      %p175 = por %p173, %p174
      %p177 = scmp.ne.s32.totalorder %s160, %s176
      %p178 = scmp.eq.s32.totalorder %s21, 0
      %p179 = por %p177, %p178
      %p180 = scmp.le.s32.totalorder 1, %s15
      %p181 = scmp.lt.s32.totalorder %s15, 3
      %p182 = pnand %p180, %p181
      %p183 = pneg %p182
      // Predicated region
      $region9: #{tpu_custom_call.1} parent=5 // pred_check
        _
      $region10: #{tpu_custom_call.1} parent=5 // pred_check_branch
        %185 = sbr.rel (%p182) target = $region12
      $region11: #{tpu_custom_call.1} parent=5 // pred_region
        %s186 = ssub.s32 %s15, 1
        // Predicated region
        $region13: #{tpu_custom_call.1} parent=11 // pred_check
          %p187 = pneg %p62
        $region14: #{tpu_custom_call.1} parent=11 // pred_check_branch
          %189 = sbr.rel (%p187) target = $region16
        $region15: #{tpu_custom_call.1} parent=11 // pred_region
          _
        $region16: #{tpu_custom_call.1} parent=11 // pred_fallthru
          _
        // Predicated region
        $region17: #{tpu_custom_call.1} parent=11 // pred_check
          %p190 = pneg %p83
        $region18: #{tpu_custom_call.1} parent=11 // pred_check_branch
          %192 = sbr.rel (%p190) target = $region20
        $region19: #{tpu_custom_call.1} parent=11 // pred_region
          _
        $region20: #{tpu_custom_call.1} parent=11 // pred_fallthru
          _
        // Predicated region
        $region21: #{tpu_custom_call.1} parent=11 // pred_check
          %p193 = pneg %p104
        $region22: #{tpu_custom_call.1} parent=11 // pred_check_branch
          %195 = sbr.rel (%p193) target = $region24
        $region23: #{tpu_custom_call.1} parent=11 // pred_region
          _
        $region24: #{tpu_custom_call.1} parent=11 // pred_fallthru
          _
        // Predicated region
        $region25: #{tpu_custom_call.1} parent=11 // pred_check
          %p196 = pneg %p125
        $region26: #{tpu_custom_call.1} parent=11 // pred_check_branch
          %198 = sbr.rel (%p196) target = $region28
        $region27: #{tpu_custom_call.1} parent=11 // pred_region
          _
        $region28: #{tpu_custom_call.1} parent=11 // pred_fallthru
          _
        // Predicated region
        $region29: #{tpu_custom_call.1} parent=11 // pred_check
          %p199 = pneg %p146
        $region30: #{tpu_custom_call.1} parent=11 // pred_check_branch
          %201 = sbr.rel (%p199) target = $region32
        $region31: #{tpu_custom_call.1} parent=11 // pred_region
          _
        $region32: #{tpu_custom_call.1} parent=11 // pred_fallthru
          _
      $region12: #{tpu_custom_call.1} parent=5 // pred_fallthru
        _
      %p202 = scmp.lt.s32.totalorder %s15, 2
      // Predicated region
      $region33: #{tpu_custom_call.1} parent=5 // pred_check
        %p203 = pneg %p202
      $region34: #{tpu_custom_call.1} parent=5 // pred_check_branch
        %205 = sbr.rel (%p203) target = $region36
      $region35: #{tpu_custom_call.1} parent=5 // pred_region
        // Predicated region
        $region37: #{tpu_custom_call.1} parent=35 // pred_check
          %p206 = pneg %p35
        $region38: #{tpu_custom_call.1} parent=35 // pred_check_branch
          %208 = sbr.rel (%p206) target = $region40
        $region39: #{tpu_custom_call.1} parent=35 // pred_region
          %s209 = sand.u32 %s25, 1
          %s210 = sand.u32 %s25, 1
          %s211 = smul.addr %s210, 256
          %s212 = scalar_lea.vmem [#allocation4], %s211
          %s213 = smul.u32 4, %s15
          %s214 = smul.addr %s213, 8
          %s215 = scalar_lea.vmem %s0, %s214
          // Predicated region
          $region41: #{tpu_custom_call.1} parent=39 // pred_check
            _
          $region42: #{tpu_custom_call.1} parent=39 // pred_check_branch
            %217 = sbr.rel (0) target = $region44
          $region43: #{tpu_custom_call.1} parent=39 // pred_region
            // Predicated region
            $region45: #{tpu_custom_call.1} parent=43 // pred_check
              _
            $region46: #{tpu_custom_call.1} parent=43 // pred_check_branch
              %219 = sbr.rel (0) target = $region48
            $region47: #{tpu_custom_call.1} parent=43 // pred_region
              // Predicated region
              $region60: #{tpu_custom_call.1} parent=47 // pred_check
                _
              $region61: #{tpu_custom_call.1} parent=47 // pred_check_branch
                %296 = sbr.rel (0) target = $region63
              $region62: #{tpu_custom_call.1} parent=47 // pred_region
                loop: start=0, step=1, limit=1
                $region64: #{tpu_custom_call.1} parent=62 // loop_pre_header
                  _
                $region65: #{tpu_custom_call.1} parent=62 // loop_header
                  %s298 = sphi 0, %s302
                  %p299 = scmp.ge.s32.totalorder %s298, 1
                  %s303 = sphi %s215, %s215
                  %s304 = sphi %s212, %s212
                $region66: #{tpu_custom_call.1} parent=62 // loop_header_branch
                  %301 = sbr.rel (%p299) target = $region70
                $region67: #{tpu_custom_call.1} parent=62 // loop_body
                  %v305 = vld [vmem:[%s303] sm:$0xff]
                  %306 = vst [vmem:[%s304] sm:$0xff] %v305
                  %v307 = vld [vmem:[%s303 + $0x8] sm:$0xff]
                  %308 = vst [vmem:[%s304 + $0x8] sm:$0xff] %v307
                  %v309 = vld [vmem:[%s303 + $0x10] sm:$0xff]
                  %310 = vst [vmem:[%s304 + $0x10] sm:$0xff] %v309
                  %v311 = vld [vmem:[%s303 + $0x18] sm:$0xff]
                  %312 = vst [vmem:[%s304 + $0x18] sm:$0xff] %v311
                  %v313 = vld [vmem:[%s303 + $0x40] sm:$0xff]
                  %314 = vst [vmem:[%s304 + $0x20] sm:$0xff] %v313
                  %v315 = vld [vmem:[%s303 + $0x48] sm:$0xff]
                  %316 = vst [vmem:[%s304 + $0x28] sm:$0xff] %v315
                  %v317 = vld [vmem:[%s303 + $0x50] sm:$0xff]
                  %318 = vst [vmem:[%s304 + $0x30] sm:$0xff] %v317
                  %v319 = vld [vmem:[%s303 + $0x58] sm:$0xff]
                  %320 = vst [vmem:[%s304 + $0x38] sm:$0xff] %v319
                  %v321 = vld [vmem:[%s303 + $0x80] sm:$0xff]
                  %322 = vst [vmem:[%s304 + $0x40] sm:$0xff] %v321
                  %v323 = vld [vmem:[%s303 + $0x88] sm:$0xff]
                  %324 = vst [vmem:[%s304 + $0x48] sm:$0xff] %v323
                  %v325 = vld [vmem:[%s303 + $0x90] sm:$0xff]
                  %326 = vst [vmem:[%s304 + $0x50] sm:$0xff] %v325
                  %v327 = vld [vmem:[%s303 + $0x98] sm:$0xff]
                  %328 = vst [vmem:[%s304 + $0x58] sm:$0xff] %v327
                  %v329 = vld [vmem:[%s303 + $0xc0] sm:$0xff]
                  %330 = vst [vmem:[%s304 + $0x60] sm:$0xff] %v329
                  %v331 = vld [vmem:[%s303 + $0xc8] sm:$0xff]
                  %332 = vst [vmem:[%s304 + $0x68] sm:$0xff] %v331
                  %v333 = vld [vmem:[%s303 + $0xd0] sm:$0xff]
                  %334 = vst [vmem:[%s304 + $0x70] sm:$0xff] %v333
                  %v335 = vld [vmem:[%s303 + $0xd8] sm:$0xff]
                  %336 = vst [vmem:[%s304 + $0x78] sm:$0xff] %v335
                  %v337 = vld [vmem:[%s303 + $0x100] sm:$0xff]
                  %338 = vst [vmem:[%s304 + $0x80] sm:$0xff] %v337
                  %v339 = vld [vmem:[%s303 + $0x108] sm:$0xff]
                  %340 = vst [vmem:[%s304 + $0x88] sm:$0xff] %v339
                  %v341 = vld [vmem:[%s303 + $0x110] sm:$0xff]
                  %342 = vst [vmem:[%s304 + $0x90] sm:$0xff] %v341
                  %v343 = vld [vmem:[%s303 + $0x118] sm:$0xff]
                  %344 = vst [vmem:[%s304 + $0x98] sm:$0xff] %v343
                  %v345 = vld [vmem:[%s303 + $0x140] sm:$0xff]
                  %346 = vst [vmem:[%s304 + $0xa0] sm:$0xff] %v345
                  %v347 = vld [vmem:[%s303 + $0x148] sm:$0xff]
                  %348 = vst [vmem:[%s304 + $0xa8] sm:$0xff] %v347
                  %v349 = vld [vmem:[%s303 + $0x150] sm:$0xff]
                  %350 = vst [vmem:[%s304 + $0xb0] sm:$0xff] %v349
                  %v351 = vld [vmem:[%s303 + $0x158] sm:$0xff]
                  %352 = vst [vmem:[%s304 + $0xb8] sm:$0xff] %v351
                  %v353 = vld [vmem:[%s303 + $0x180] sm:$0xff]
                  %354 = vst [vmem:[%s304 + $0xc0] sm:$0xff] %v353
                  %v355 = vld [vmem:[%s303 + $0x188] sm:$0xff]
                  %356 = vst [vmem:[%s304 + $0xc8] sm:$0xff] %v355
                  %v357 = vld [vmem:[%s303 + $0x190] sm:$0xff]
                  %358 = vst [vmem:[%s304 + $0xd0] sm:$0xff] %v357
                  %v359 = vld [vmem:[%s303 + $0x198] sm:$0xff]
                  %360 = vst [vmem:[%s304 + $0xd8] sm:$0xff] %v359
                  %v361 = vld [vmem:[%s303 + $0x1c0] sm:$0xff]
                  %362 = vst [vmem:[%s304 + $0xe0] sm:$0xff] %v361
                  %v363 = vld [vmem:[%s303 + $0x1c8] sm:$0xff]
                  %364 = vst [vmem:[%s304 + $0xe8] sm:$0xff] %v363
                  %v365 = vld [vmem:[%s303 + $0x1d0] sm:$0xff]
                  %366 = vst [vmem:[%s304 + $0xf0] sm:$0xff] %v365
                  %v367 = vld [vmem:[%s303 + $0x1d8] sm:$0xff]
                  %368 = vst [vmem:[%s304 + $0xf8] sm:$0xff] %v367
                $region68: #{tpu_custom_call.1} parent=62 // loop_footer
                  %s302 = sadd.s32 1, %s298
                $region69: #{tpu_custom_call.1} parent=62 // loop_footer_branch
                  %297 = sbr.rel target = $region65
                $region70: #{tpu_custom_call.1} parent=62 // loop_exit
                  _
              $region63: #{tpu_custom_call.1} parent=47 // pred_fallthru
                _
              // Predicated region
              $region71: #{tpu_custom_call.1} parent=47 // pred_check
                _
              $region72: #{tpu_custom_call.1} parent=47 // pred_check_branch
                %370 = sbr.rel target = $region74
              $region73: #{tpu_custom_call.1} parent=47 // pred_region
                _
              $region74: #{tpu_custom_call.1} parent=47 // pred_fallthru
                _
            $region48: #{tpu_custom_call.1} parent=43 // pred_fallthru
              _
            // Predicated region
            $region49: #{tpu_custom_call.1} parent=43 // pred_check
              _
            $region50: #{tpu_custom_call.1} parent=43 // pred_check_branch
              %221 = sbr.rel target = $region52
            $region51: #{tpu_custom_call.1} parent=43 // pred_region
              loop: start=0, step=1, limit=1
              $region53: #{tpu_custom_call.1} parent=51 // loop_pre_header
                _
              $region54: #{tpu_custom_call.1} parent=51 // loop_header
                %s224 = sphi 0, %s228
                %p225 = scmp.ge.s32.totalorder %s224, 1
                %s229 = sphi %s215, %s215
                %s230 = sphi %s212, %s212
              $region55: #{tpu_custom_call.1} parent=51 // loop_header_branch
                %227 = sbr.rel (%p225) target = $region59
              $region56: #{tpu_custom_call.1} parent=51 // loop_body
                %v231 = vld [vmem:[%s229] sm:$0xff]
                %232 = vst [vmem:[%s230] sm:$0xff] %v231
                %v233 = vld [vmem:[%s229 + $0x8] sm:$0xff]
                %234 = vst [vmem:[%s230 + $0x8] sm:$0xff] %v233
                %v235 = vld [vmem:[%s229 + $0x10] sm:$0xff]
                %236 = vst [vmem:[%s230 + $0x10] sm:$0xff] %v235
                %v237 = vld [vmem:[%s229 + $0x18] sm:$0xff]
                %238 = vst [vmem:[%s230 + $0x18] sm:$0xff] %v237
                %v239 = vld [vmem:[%s229 + $0x40] sm:$0xff]
                %240 = vst [vmem:[%s230 + $0x20] sm:$0xff] %v239
                %v241 = vld [vmem:[%s229 + $0x48] sm:$0xff]
                %242 = vst [vmem:[%s230 + $0x28] sm:$0xff] %v241
                %v243 = vld [vmem:[%s229 + $0x50] sm:$0xff]
                %244 = vst [vmem:[%s230 + $0x30] sm:$0xff] %v243
                %v245 = vld [vmem:[%s229 + $0x58] sm:$0xff]
                %246 = vst [vmem:[%s230 + $0x38] sm:$0xff] %v245
                %v247 = vld [vmem:[%s229 + $0x80] sm:$0xff]
                %248 = vst [vmem:[%s230 + $0x40] sm:$0xff] %v247
                %v249 = vld [vmem:[%s229 + $0x88] sm:$0xff]
                %250 = vst [vmem:[%s230 + $0x48] sm:$0xff] %v249
                %v251 = vld [vmem:[%s229 + $0x90] sm:$0xff]
                %252 = vst [vmem:[%s230 + $0x50] sm:$0xff] %v251
                %v253 = vld [vmem:[%s229 + $0x98] sm:$0xff]
                %254 = vst [vmem:[%s230 + $0x58] sm:$0xff] %v253
                %v255 = vld [vmem:[%s229 + $0xc0] sm:$0xff]
                %256 = vst [vmem:[%s230 + $0x60] sm:$0xff] %v255
                %v257 = vld [vmem:[%s229 + $0xc8] sm:$0xff]
                %258 = vst [vmem:[%s230 + $0x68] sm:$0xff] %v257
                %v259 = vld [vmem:[%s229 + $0xd0] sm:$0xff]
                %260 = vst [vmem:[%s230 + $0x70] sm:$0xff] %v259
                %v261 = vld [vmem:[%s229 + $0xd8] sm:$0xff]
                %262 = vst [vmem:[%s230 + $0x78] sm:$0xff] %v261
                %v263 = vld [vmem:[%s229 + $0x100] sm:$0xff]
                %264 = vst [vmem:[%s230 + $0x80] sm:$0xff] %v263
                %v265 = vld [vmem:[%s229 + $0x108] sm:$0xff]
                %266 = vst [vmem:[%s230 + $0x88] sm:$0xff] %v265
                %v267 = vld [vmem:[%s229 + $0x110] sm:$0xff]
                %268 = vst [vmem:[%s230 + $0x90] sm:$0xff] %v267
                %v269 = vld [vmem:[%s229 + $0x118] sm:$0xff]
                %270 = vst [vmem:[%s230 + $0x98] sm:$0xff] %v269
                %v271 = vld [vmem:[%s229 + $0x140] sm:$0xff]
                %272 = vst [vmem:[%s230 + $0xa0] sm:$0xff] %v271
                %v273 = vld [vmem:[%s229 + $0x148] sm:$0xff]
                %274 = vst [vmem:[%s230 + $0xa8] sm:$0xff] %v273
                %v275 = vld [vmem:[%s229 + $0x150] sm:$0xff]
                %276 = vst [vmem:[%s230 + $0xb0] sm:$0xff] %v275
                %v277 = vld [vmem:[%s229 + $0x158] sm:$0xff]
                %278 = vst [vmem:[%s230 + $0xb8] sm:$0xff] %v277
                %v279 = vld [vmem:[%s229 + $0x180] sm:$0xff]
                %280 = vst [vmem:[%s230 + $0xc0] sm:$0xff] %v279
                %v281 = vld [vmem:[%s229 + $0x188] sm:$0xff]
                %282 = vst [vmem:[%s230 + $0xc8] sm:$0xff] %v281
                %v283 = vld [vmem:[%s229 + $0x190] sm:$0xff]
                %284 = vst [vmem:[%s230 + $0xd0] sm:$0xff] %v283
                %v285 = vld [vmem:[%s229 + $0x198] sm:$0xff]
                %286 = vst [vmem:[%s230 + $0xd8] sm:$0xff] %v285
                %v287 = vld [vmem:[%s229 + $0x1c0] sm:$0xff]
                %288 = vst [vmem:[%s230 + $0xe0] sm:$0xff] %v287
                %v289 = vld [vmem:[%s229 + $0x1c8] sm:$0xff]
                %290 = vst [vmem:[%s230 + $0xe8] sm:$0xff] %v289
                %v291 = vld [vmem:[%s229 + $0x1d0] sm:$0xff]
                %292 = vst [vmem:[%s230 + $0xf0] sm:$0xff] %v291
                %v293 = vld [vmem:[%s229 + $0x1d8] sm:$0xff]
                %294 = vst [vmem:[%s230 + $0xf8] sm:$0xff] %v293
              $region57: #{tpu_custom_call.1} parent=51 // loop_footer
                %s228 = sadd.s32 1, %s224
              $region58: #{tpu_custom_call.1} parent=51 // loop_footer_branch
                %223 = sbr.rel target = $region54
              $region59: #{tpu_custom_call.1} parent=51 // loop_exit
                _
            $region52: #{tpu_custom_call.1} parent=43 // pred_fallthru
              _
          $region44: #{tpu_custom_call.1} parent=39 // pred_fallthru
            _
          %371 = vnop
        $region40: #{tpu_custom_call.1} parent=35 // pred_fallthru
          _
      $region36: #{tpu_custom_call.1} parent=5 // pred_fallthru
        _
      %p372 = scmp.le.s32.totalorder 1, %s15
      %p373 = scmp.lt.s32.totalorder %s15, 3
      %p374 = pnand %p372, %p373
      %p375 = pneg %p374
      // Predicated region
      $region75: #{tpu_custom_call.1} parent=5 // pred_check
        _
      $region76: #{tpu_custom_call.1} parent=5 // pred_check_branch
        %377 = sbr.rel (%p374) target = $region78
      $region77: #{tpu_custom_call.1} parent=5 // pred_region
        %s378 = ssub.s32 %s15, 1
        %s379 = sand.u32 %s28, 1
        %s380 = sand.u32 %s28, 1
        %s381 = smul.addr %s380, 256
        %s382 = scalar_lea.vmem [#allocation4], %s381
        // Predicated region
        $region79: #{tpu_custom_call.1} parent=77 // pred_check
          %p383 = pneg %p41
        $region80: #{tpu_custom_call.1} parent=77 // pred_check_branch
          %385 = sbr.rel (%p383) target = $region82
        $region81: #{tpu_custom_call.1} parent=77 // pred_region
          _
        $region82: #{tpu_custom_call.1} parent=77 // pred_fallthru
          _
        %s386 = sand.u32 %s28, 1
        %s387 = sand.u32 %s28, 1
        %s388 = smul.addr %s387, 256
        %s389 = scalar_lea.vmem [#allocation4], %s388
        %p390 = pneg %p41
        %p391 = pneg %p38
        %p392 = pneg %p62
        %p393 = pneg %p59
        %p394 = pneg %p83
        %p395 = pneg %p80
        %p396 = pneg %p104
        %p397 = pneg %p101
        %p398 = pneg %p125
        %p399 = pneg %p122
        %p400 = pneg %p146
        %p401 = pneg %p143
        %p402 = pneg %p172
        %p403 = pneg %p169
        %s404 = sand.u32 %s159, 1
        %s405 = scalar_lea.sflag [#allocation6], %s404
        %s406 = sand.u32 %s159, 1
        %s407 = smul.addr %s406, 32
        %s408 = scalar_lea.vmem [#allocation5], %s407
        %s409 = smul.u32 4, %s20
        %s410 = smul.u32 4, %s20
        %v411 = vld [vmem:[%s382] sm:$0xff]
        %v412 = vld [vmem:[%s382 + $0x8] sm:$0xff]
        %v413 = vld [vmem:[%s382 + $0x10] sm:$0xff]
        %v414 = vld [vmem:[%s382 + $0x18] sm:$0xff]
        %v415 = vld [vmem:[%s382 + $0x20] sm:$0xff]
        %v416 = vld [vmem:[%s382 + $0x28] sm:$0xff]
        %v417 = vld [vmem:[%s382 + $0x30] sm:$0xff]
        %v418 = vld [vmem:[%s382 + $0x38] sm:$0xff]
        %v419 = vld [vmem:[%s382 + $0x40] sm:$0xff]
        %v420 = vld [vmem:[%s382 + $0x48] sm:$0xff]
        %v421 = vld [vmem:[%s382 + $0x50] sm:$0xff]
        %v422 = vld [vmem:[%s382 + $0x58] sm:$0xff]
        %v423 = vld [vmem:[%s382 + $0x60] sm:$0xff]
        %v424 = vld [vmem:[%s382 + $0x68] sm:$0xff]
        %v425 = vld [vmem:[%s382 + $0x70] sm:$0xff]
        %v426 = vld [vmem:[%s382 + $0x78] sm:$0xff]
        %v427 = vld [vmem:[%s382 + $0x80] sm:$0xff]
        %v428 = vld [vmem:[%s382 + $0x88] sm:$0xff]
        %v429 = vld [vmem:[%s382 + $0x90] sm:$0xff]
        %v430 = vld [vmem:[%s382 + $0x98] sm:$0xff]
        %v431 = vld [vmem:[%s382 + $0xa0] sm:$0xff]
        %v432 = vld [vmem:[%s382 + $0xa8] sm:$0xff]
        %v433 = vld [vmem:[%s382 + $0xb0] sm:$0xff]
        %v434 = vld [vmem:[%s382 + $0xb8] sm:$0xff]
        %v435 = vld [vmem:[%s382 + $0xc0] sm:$0xff]
        %v436 = vld [vmem:[%s382 + $0xc8] sm:$0xff]
        %v437 = vld [vmem:[%s382 + $0xd0] sm:$0xff]
        %v438 = vld [vmem:[%s382 + $0xd8] sm:$0xff]
        %v439 = vld [vmem:[%s382 + $0xe0] sm:$0xff]
        %v440 = vld [vmem:[%s382 + $0xe8] sm:$0xff]
        %v441 = vld [vmem:[%s382 + $0xf0] sm:$0xff]
        %v442 = vld [vmem:[%s382 + $0xf8] sm:$0xff]
        %v443 = vld [vmem:[%s1] sm:$0x1f]
        %v444 = vld [vmem:[%s3] sm:$0x1]
        %v446 = vlaneseq
        %v447 = vshrl.u32 %v446, 7
        %v448 = vsub.s32 0, %v447
        %v449 = vrot.slane %v444, %v448
        %vm451 = vcmask 39936
        %v453 = vsel %vm451, %v411, 0
        %v456 = vsel %vm451, %v412, 0
        %v459 = vsel %vm451, %v413, 0
        %v462 = vsel %vm451, %v414, 0
        %v465 = vsel %vm451, %v415, 0
        %v468 = vsel %vm451, %v416, 0
        %v471 = vsel %vm451, %v417, 0
        %v474 = vsel %vm451, %v418, 0
        %v477 = vsel %vm451, %v419, 0
        %v480 = vsel %vm451, %v420, 0
        %v483 = vsel %vm451, %v421, 0
        %v486 = vsel %vm451, %v422, 0
        %v489 = vsel %vm451, %v423, 0
        %v492 = vsel %vm451, %v424, 0
        %v495 = vsel %vm451, %v425, 0
        %v498 = vsel %vm451, %v426, 0
        %v501 = vsel %vm451, %v427, 0
        %v504 = vsel %vm451, %v428, 0
        %v507 = vsel %vm451, %v429, 0
        %v510 = vsel %vm451, %v430, 0
        %v513 = vsel %vm451, %v431, 0
        %v516 = vsel %vm451, %v432, 0
        %v519 = vsel %vm451, %v433, 0
        %v522 = vsel %vm451, %v434, 0
        %v525 = vsel %vm451, %v435, 0
        %v528 = vsel %vm451, %v436, 0
        %v531 = vsel %vm451, %v437, 0
        %v534 = vsel %vm451, %v438, 0
        %v537 = vsel %vm451, %v439, 0
        %v540 = vsel %vm451, %v440, 0
        %v543 = vsel %vm451, %v441, 0
        %v546 = vsel %vm451, %v442, 0
        %vm548 = vcmask 1044480
        %v550 = vsel %vm548, %v443, 0
        %552 = vmatprep.subr.mxu0 0.0
        %553 = vmatpush1.msra.mxu0 %v550
        %554 = vmatprep.subr.mxu0 0.0
        %555 = vmatpush1.msra.mxu0 0.0
        %556 = vmatprep.subr.mxu0 0.0
        %557 = vmatpush1.msra.mxu0 0.0
        %558 = vmatprep.subr.mxu0 0.0
        %559 = vmatpush1.msra.mxu0 0.0
        %560 = vmatprep.subr.mxu0 0.0
        %561 = vmatpush1.msra.mxu0 0.0
        %562 = vmatprep.subr.mxu0 0.0
        %563 = vmatpush1.msra.mxu0 0.0
        %564 = vmatprep.subr.mxu0 0.0
        %565 = vmatpush1.msra.mxu0 0.0
        %566 = vmatprep.subr.mxu0 0.0
        %567 = vmatpush1.msra.mxu0 0.0
        %568 = vmatprep.subr.mxu0 0.0
        %569 = vmatpush1.msra.mxu0 0.0
        %570 = vmatprep.subr.mxu0 0.0
        %571 = vmatpush1.msra.mxu0 0.0
        %572 = vmatprep.subr.mxu0 0.0
        %573 = vmatpush1.msra.mxu0 0.0
        %574 = vmatprep.subr.mxu0 0.0
        %575 = vmatpush1.msra.mxu0 0.0
        %576 = vmatprep.subr.mxu0 0.0
        %577 = vmatpush1.msra.mxu0 0.0
        %578 = vmatprep.subr.mxu0 0.0
        %579 = vmatpush1.msra.mxu0 0.0
        %580 = vmatprep.subr.mxu0 0.0
        %581 = vmatpush1.msra.mxu0 0.0
        %582 = vmatprep.subr.mxu0 0.0
        %583 = vmatpush1.msra.mxu0 0.0
        %584 = vmatprep.subr.mxu0 0.0
        %585 = vmatpush1.msra.mxu0 0.0
        %586 = vmatprep.subr.mxu0 0.0
        %587 = vmatpush1.msra.mxu0 0.0
        %588 = vmatprep.subr.mxu0 0.0
        %589 = vmatpush1.msra.mxu0 0.0
        %590 = vmatprep.subr.mxu0 0.0
        %591 = vmatpush1.msra.mxu0 0.0
        %592 = vmatprep.subr.mxu0 0.0
        %593 = vmatpush1.msra.mxu0 0.0
        %594 = vmatprep.subr.mxu0 0.0
        %595 = vmatpush1.msra.mxu0 0.0
        %596 = vmatprep.subr.mxu0 0.0
        %597 = vmatpush1.msra.mxu0 0.0
        %598 = vmatprep.subr.mxu0 0.0
        %599 = vmatpush1.msra.mxu0 0.0
        %600 = vmatprep.subr.mxu0 0.0
        %601 = vmatpush1.msra.mxu0 0.0
        %602 = vmatprep.subr.mxu0 0.0
        %603 = vmatpush1.msra.mxu0 0.0
        %604 = vmatprep.subr.mxu0 0.0
        %605 = vmatpush1.msra.mxu0 0.0
        %606 = vmatprep.subr.mxu0 0.0
        %607 = vmatpush1.msra.mxu0 0.0
        %608 = vmatprep.subr.mxu0 0.0
        %609 = vmatpush1.msra.mxu0 0.0
        %610 = vmatprep.subr.mxu0 0.0
        %611 = vmatpush1.msra.mxu0 0.0
        %612 = vmatprep.subr.mxu0 0.0
        %613 = vmatpush1.msra.mxu0 0.0
        %614 = vmatprep.subr.mxu0 0.0
        %615 = vmatpush1.msra.mxu0 0.0
        %616 = vmatprep.mubr.f32.mxu0 0.0
        %617 = vmatmul.mubr.f32.gmra.mrb[0].mxu0 %v453
        %v618 = vpop.f32.mrb[0].mxu0
        %v619 = vadd.f32 %v449, %v618
        %v620 = vpop.f32.mrb[0].mxu0
        %621 = vmatprep.mubr.f32.mxu0 0.0
        %622 = vmatmul.mubr.f32.gmra.mrb[0].mxu0 %v456
        %v623 = vpop.f32.mrb[0].mxu0
        %v624 = vadd.f32 %v449, %v623
        %v625 = vpop.f32.mrb[0].mxu0
        %626 = vmatprep.mubr.f32.mxu0 0.0
        %627 = vmatmul.mubr.f32.gmra.mrb[0].mxu0 %v459
        %v628 = vpop.f32.mrb[0].mxu0
        %v629 = vadd.f32 %v449, %v628
        %v630 = vpop.f32.mrb[0].mxu0
        %631 = vmatprep.mubr.f32.mxu0 0.0
        %632 = vmatmul.mubr.f32.gmra.mrb[0].mxu0 %v462
        %v633 = vpop.f32.mrb[0].mxu0
        %v634 = vadd.f32 %v449, %v633
        %v635 = vpop.f32.mrb[0].mxu0
        %636 = vmatprep.mubr.f32.mxu0 0.0
        %637 = vmatmul.mubr.f32.gmra.mrb[0].mxu0 %v465
        %v638 = vpop.f32.mrb[0].mxu0
        %v639 = vadd.f32 %v449, %v638
        %v640 = vpop.f32.mrb[0].mxu0
        %641 = vmatprep.mubr.f32.mxu0 0.0
        %642 = vmatmul.mubr.f32.gmra.mrb[0].mxu0 %v468
        %v643 = vpop.f32.mrb[0].mxu0
        %v644 = vadd.f32 %v449, %v643
        %v645 = vpop.f32.mrb[0].mxu0
        %646 = vmatprep.mubr.f32.mxu0 0.0
        %647 = vmatmul.mubr.f32.gmra.mrb[0].mxu0 %v471
        %v648 = vpop.f32.mrb[0].mxu0
        %v649 = vadd.f32 %v449, %v648
        %v650 = vpop.f32.mrb[0].mxu0
        %651 = vmatprep.mubr.f32.mxu0 0.0
        %652 = vmatmul.mubr.f32.gmra.mrb[0].mxu0 %v474
        %v653 = vpop.f32.mrb[0].mxu0
        %v654 = vadd.f32 %v449, %v653
        %v655 = vpop.f32.mrb[0].mxu0
        %656 = vmatprep.mubr.f32.mxu0 0.0
        %657 = vmatmul.mubr.f32.gmra.mrb[0].mxu0 %v477
        %v658 = vpop.f32.mrb[0].mxu0
        %v659 = vadd.f32 %v449, %v658
        %v660 = vpop.f32.mrb[0].mxu0
        %661 = vmatprep.mubr.f32.mxu0 0.0
        %662 = vmatmul.mubr.f32.gmra.mrb[0].mxu0 %v480
        %v663 = vpop.f32.mrb[0].mxu0
        %v664 = vadd.f32 %v449, %v663
        %v665 = vpop.f32.mrb[0].mxu0
        %666 = vmatprep.mubr.f32.mxu0 0.0
        %667 = vmatmul.mubr.f32.gmra.mrb[0].mxu0 %v483
        %v668 = vpop.f32.mrb[0].mxu0
        %v669 = vadd.f32 %v449, %v668
        %v670 = vpop.f32.mrb[0].mxu0
        %671 = vmatprep.mubr.f32.mxu0 0.0
        %672 = vmatmul.mubr.f32.gmra.mrb[0].mxu0 %v486
        %v673 = vpop.f32.mrb[0].mxu0
        %v674 = vadd.f32 %v449, %v673
        %v675 = vpop.f32.mrb[0].mxu0
        %676 = vmatprep.mubr.f32.mxu0 0.0
        %677 = vmatmul.mubr.f32.gmra.mrb[0].mxu0 %v489
        %v678 = vpop.f32.mrb[0].mxu0
        %v679 = vadd.f32 %v449, %v678
        %v680 = vpop.f32.mrb[0].mxu0
        %681 = vmatprep.mubr.f32.mxu0 0.0
        %682 = vmatmul.mubr.f32.gmra.mrb[0].mxu0 %v492
        %v683 = vpop.f32.mrb[0].mxu0
        %v684 = vadd.f32 %v449, %v683
        %v685 = vpop.f32.mrb[0].mxu0
        %686 = vmatprep.mubr.f32.mxu0 0.0
        %687 = vmatmul.mubr.f32.gmra.mrb[0].mxu0 %v495
        %v688 = vpop.f32.mrb[0].mxu0
        %v689 = vadd.f32 %v449, %v688
        %v690 = vpop.f32.mrb[0].mxu0
        %691 = vmatprep.mubr.f32.mxu0 0.0
        %692 = vmatmul.mubr.f32.gmra.mrb[0].mxu0 %v498
        %v693 = vpop.f32.mrb[0].mxu0
        %v694 = vadd.f32 %v449, %v693
        %v695 = vpop.f32.mrb[0].mxu0
        %696 = vmatprep.mubr.f32.mxu0 0.0
        %697 = vmatmul.mubr.f32.gmra.mrb[0].mxu0 %v501
        %v698 = vpop.f32.mrb[0].mxu0
        %v699 = vadd.f32 %v449, %v698
        %v700 = vpop.f32.mrb[0].mxu0
        %701 = vmatprep.mubr.f32.mxu0 0.0
        %702 = vmatmul.mubr.f32.gmra.mrb[0].mxu0 %v504
        %v703 = vpop.f32.mrb[0].mxu0
        %v704 = vadd.f32 %v449, %v703
        %v705 = vpop.f32.mrb[0].mxu0
        %706 = vmatprep.mubr.f32.mxu0 0.0
        %707 = vmatmul.mubr.f32.gmra.mrb[0].mxu0 %v507
        %v708 = vpop.f32.mrb[0].mxu0
        %v709 = vadd.f32 %v449, %v708
        %v710 = vpop.f32.mrb[0].mxu0
        %711 = vmatprep.mubr.f32.mxu0 0.0
        %712 = vmatmul.mubr.f32.gmra.mrb[0].mxu0 %v510
        %v713 = vpop.f32.mrb[0].mxu0
        %v714 = vadd.f32 %v449, %v713
        %v715 = vpop.f32.mrb[0].mxu0
        %716 = vmatprep.mubr.f32.mxu0 0.0
        %717 = vmatmul.mubr.f32.gmra.mrb[0].mxu0 %v513
        %v718 = vpop.f32.mrb[0].mxu0
        %v719 = vadd.f32 %v449, %v718
        %v720 = vpop.f32.mrb[0].mxu0
        %721 = vmatprep.mubr.f32.mxu0 0.0
        %722 = vmatmul.mubr.f32.gmra.mrb[0].mxu0 %v516
        %v723 = vpop.f32.mrb[0].mxu0
        %v724 = vadd.f32 %v449, %v723
        %v725 = vpop.f32.mrb[0].mxu0
        %726 = vmatprep.mubr.f32.mxu0 0.0
        %727 = vmatmul.mubr.f32.gmra.mrb[0].mxu0 %v519
        %v728 = vpop.f32.mrb[0].mxu0
        %v729 = vadd.f32 %v449, %v728
        %v730 = vpop.f32.mrb[0].mxu0
        %731 = vmatprep.mubr.f32.mxu0 0.0
        %732 = vmatmul.mubr.f32.gmra.mrb[0].mxu0 %v522
        %v733 = vpop.f32.mrb[0].mxu0
        %v734 = vadd.f32 %v449, %v733
        %v735 = vpop.f32.mrb[0].mxu0
        %736 = vmatprep.mubr.f32.mxu0 0.0
        %737 = vmatmul.mubr.f32.gmra.mrb[0].mxu0 %v525
        %v738 = vpop.f32.mrb[0].mxu0
        %v739 = vadd.f32 %v449, %v738
        %v740 = vpop.f32.mrb[0].mxu0
        %741 = vmatprep.mubr.f32.mxu0 0.0
        %742 = vmatmul.mubr.f32.gmra.mrb[0].mxu0 %v528
        %v743 = vpop.f32.mrb[0].mxu0
        %v744 = vadd.f32 %v449, %v743
        %v745 = vpop.f32.mrb[0].mxu0
        %746 = vmatprep.mubr.f32.mxu0 0.0
        %747 = vmatmul.mubr.f32.gmra.mrb[0].mxu0 %v531
        %v748 = vpop.f32.mrb[0].mxu0
        %v749 = vadd.f32 %v449, %v748
        %v750 = vpop.f32.mrb[0].mxu0
        %751 = vmatprep.mubr.f32.mxu0 0.0
        %752 = vmatmul.mubr.f32.gmra.mrb[0].mxu0 %v534
        %v753 = vpop.f32.mrb[0].mxu0
        %v754 = vadd.f32 %v449, %v753
        %v755 = vpop.f32.mrb[0].mxu0
        %756 = vmatprep.mubr.f32.mxu0 0.0
        %757 = vmatmul.mubr.f32.gmra.mrb[0].mxu0 %v537
        %v758 = vpop.f32.mrb[0].mxu0
        %v759 = vadd.f32 %v449, %v758
        %v760 = vpop.f32.mrb[0].mxu0
        %761 = vmatprep.mubr.f32.mxu0 0.0
        %762 = vmatmul.mubr.f32.gmra.mrb[0].mxu0 %v540
        %v763 = vpop.f32.mrb[0].mxu0
        %v764 = vadd.f32 %v449, %v763
        %v765 = vpop.f32.mrb[0].mxu0
        %766 = vmatprep.mubr.f32.mxu0 0.0
        %767 = vmatmul.mubr.f32.gmra.mrb[0].mxu0 %v543
        %v768 = vpop.f32.mrb[0].mxu0
        %v769 = vadd.f32 %v449, %v768
        %v770 = vpop.f32.mrb[0].mxu0
        %771 = vmatprep.mubr.f32.mxu0 0.0
        %772 = vmatmul.mubr.f32.gmra.mrb[0].mxu0 %v546
        %v773 = vpop.f32.mrb[0].mxu0
        %v774 = vadd.f32 %v449, %v773
        %v775 = vpop.f32.mrb[0].mxu0
        %776 = vdwg.mxu0
        %777 = vst [vmem:[#allocation2] sm:$0xff] %v619
        %778 = vst [vmem:[#allocation2 + $0x8] sm:$0xff] %v624
        %779 = vst [vmem:[#allocation2 + $0x10] sm:$0xff] %v629
        %780 = vst [vmem:[#allocation2 + $0x18] sm:$0xff] %v634
        %781 = vst [vmem:[#allocation2 + $0x20] sm:$0xff] %v639
        %782 = vst [vmem:[#allocation2 + $0x28] sm:$0xff] %v644
        %783 = vst [vmem:[#allocation2 + $0x30] sm:$0xff] %v649
        %784 = vst [vmem:[#allocation2 + $0x38] sm:$0xff] %v654
        %785 = vst [vmem:[#allocation2 + $0x40] sm:$0xff] %v659
        %786 = vst [vmem:[#allocation2 + $0x48] sm:$0xff] %v664
        %787 = vst [vmem:[#allocation2 + $0x50] sm:$0xff] %v669
        %788 = vst [vmem:[#allocation2 + $0x58] sm:$0xff] %v674
        %789 = vst [vmem:[#allocation2 + $0x60] sm:$0xff] %v679
        %790 = vst [vmem:[#allocation2 + $0x68] sm:$0xff] %v684
        %791 = vst [vmem:[#allocation2 + $0x70] sm:$0xff] %v689
        %792 = vst [vmem:[#allocation2 + $0x78] sm:$0xff] %v694
        %793 = vst [vmem:[#allocation2 + $0x80] sm:$0xff] %v699
        %794 = vst [vmem:[#allocation2 + $0x88] sm:$0xff] %v704
        %795 = vst [vmem:[#allocation2 + $0x90] sm:$0xff] %v709
        %796 = vst [vmem:[#allocation2 + $0x98] sm:$0xff] %v714
        %797 = vst [vmem:[#allocation2 + $0xa0] sm:$0xff] %v719
        %798 = vst [vmem:[#allocation2 + $0xa8] sm:$0xff] %v724
        %799 = vst [vmem:[#allocation2 + $0xb0] sm:$0xff] %v729
        %800 = vst [vmem:[#allocation2 + $0xb8] sm:$0xff] %v734
        %801 = vst [vmem:[#allocation2 + $0xc0] sm:$0xff] %v739
        %802 = vst [vmem:[#allocation2 + $0xc8] sm:$0xff] %v744
        %803 = vst [vmem:[#allocation2 + $0xd0] sm:$0xff] %v749
        %804 = vst [vmem:[#allocation2 + $0xd8] sm:$0xff] %v754
        %805 = vst [vmem:[#allocation2 + $0xe0] sm:$0xff] %v759
        %806 = vst [vmem:[#allocation2 + $0xe8] sm:$0xff] %v764
        %807 = vst [vmem:[#allocation2 + $0xf0] sm:$0xff] %v769
        %808 = vst [vmem:[#allocation2 + $0xf8] sm:$0xff] %v774
        %v809 = vld [vmem:[%s2] sm:$0xff]
        %v810 = vld [vmem:[%s2 + $0x8] sm:$0xff]
        %v811 = vld [vmem:[%s2 + $0x10] sm:$0xff]
        %v812 = vld [vmem:[%s2 + $0x18] sm:$0xff]
        %v813 = vld [vmem:[#allocation2] sm:$0xff]
        %v814 = vld [vmem:[#allocation2 + $0x8] sm:$0xff]
        %v815 = vld [vmem:[#allocation2 + $0x10] sm:$0xff]
        %v816 = vld [vmem:[#allocation2 + $0x18] sm:$0xff]
        %vm817 = vcmask 261120
        %v819 = vsel %vm817, 0.0, 0
        %821 = vmatprep.subr.mxu0 0.0
        %822 = vmatpush1.msra.mxu0 %v809
        %823 = vmatprep.subr.mxu0 0.0
        %824 = vmatpush1.msra.mxu0 %v810
        %825 = vmatprep.subr.mxu0 0.0
        %826 = vmatpush1.msra.mxu0 %v811
        %827 = vmatprep.subr.mxu0 0.0
        %828 = vmatpush1.msra.mxu0 %v812
        %829 = vmatprep.subr.mxu0 0.0
        %830 = vmatpush1.msra.mxu0 0.0
        %831 = vmatprep.subr.mxu0 0.0
        %832 = vmatpush1.msra.mxu0 0.0
        %833 = vmatprep.subr.mxu0 0.0
        %834 = vmatpush1.msra.mxu0 0.0
        %835 = vmatprep.subr.mxu0 0.0
        %836 = vmatpush1.msra.mxu0 0.0
        %837 = vmatprep.subr.mxu0 0.0
        %838 = vmatpush1.msra.mxu0 0.0
        %839 = vmatprep.subr.mxu0 0.0
        %840 = vmatpush1.msra.mxu0 0.0
        %841 = vmatprep.subr.mxu0 0.0
        %842 = vmatpush1.msra.mxu0 0.0
        %843 = vmatprep.subr.mxu0 0.0
        %844 = vmatpush1.msra.mxu0 0.0
        %845 = vmatprep.subr.mxu0 0.0
        %846 = vmatpush1.msra.mxu0 0.0
        %847 = vmatprep.subr.mxu0 0.0
        %848 = vmatpush1.msra.mxu0 0.0
        %849 = vmatprep.subr.mxu0 0.0
        %850 = vmatpush1.msra.mxu0 0.0
        %851 = vmatprep.subr.mxu0 0.0
        %852 = vmatpush1.msra.mxu0 0.0
        %853 = vmatprep.subr.mxu0 0.0
        %854 = vmatpush1.msra.mxu0 0.0
        %855 = vmatprep.subr.mxu0 0.0
        %856 = vmatpush1.msra.mxu0 0.0
        %857 = vmatprep.subr.mxu0 0.0
        %858 = vmatpush1.msra.mxu0 0.0
        %859 = vmatprep.subr.mxu0 0.0
        %860 = vmatpush1.msra.mxu0 0.0
        %861 = vmatprep.subr.mxu0 0.0
        %862 = vmatpush1.msra.mxu0 0.0
        %863 = vmatprep.subr.mxu0 0.0
        %864 = vmatpush1.msra.mxu0 0.0
        %865 = vmatprep.subr.mxu0 0.0
        %866 = vmatpush1.msra.mxu0 0.0
        %867 = vmatprep.subr.mxu0 0.0
        %868 = vmatpush1.msra.mxu0 0.0
        %869 = vmatprep.subr.mxu0 0.0
        %870 = vmatpush1.msra.mxu0 0.0
        %871 = vmatprep.subr.mxu0 0.0
        %872 = vmatpush1.msra.mxu0 0.0
        %873 = vmatprep.subr.mxu0 0.0
        %874 = vmatpush1.msra.mxu0 0.0
        %875 = vmatprep.subr.mxu0 0.0
        %876 = vmatpush1.msra.mxu0 0.0
        %877 = vmatprep.subr.mxu0 0.0
        %878 = vmatpush1.msra.mxu0 0.0
        %879 = vmatprep.subr.mxu0 0.0
        %880 = vmatpush1.msra.mxu0 0.0
        %881 = vmatprep.subr.mxu0 0.0
        %882 = vmatpush1.msra.mxu0 0.0
        %883 = vmatprep.subr.mxu0 0.0
        %884 = vmatpush1.msra.mxu0 0.0
        %885 = vmatprep.mubr.f32.mxu0 0.0
        %886 = vmatmul.mubr.f32.gmra.mrb[0].mxu0 %v819
        %v887 = vpop.f32.mrb[0].mxu0
        %v888 = vadd.f32 0.0, %v887
        %v889 = vpop.f32.mrb[0].mxu0
        %890 = vmatprep.mubr.f32.mxu0 0.0
        %891 = vmatmul.mubr.f32.gmra.mrb[0].mxu0 %v819
        %v892 = vpop.f32.mrb[0].mxu0
        %v893 = vadd.f32 0.0, %v892
        %v894 = vpop.f32.mrb[0].mxu0
        %895 = vmatprep.mubr.f32.mxu0 0.0
        %896 = vmatmul.mubr.f32.gmra.mrb[0].mxu0 %v819
        %v897 = vpop.f32.mrb[0].mxu0
        %v898 = vadd.f32 0.0, %v897
        %v899 = vpop.f32.mrb[0].mxu0
        %900 = vmatprep.mubr.f32.mxu0 0.0
        %901 = vmatmul.mubr.f32.gmra.mrb[0].mxu0 %v819
        %v902 = vpop.f32.mrb[0].mxu0
        %v903 = vadd.f32 0.0, %v902
        %v904 = vpop.f32.mrb[0].mxu0
        %905 = vdwg.mxu0
        %v906 = vadd.f32 %v813, %v888
        %v907 = vadd.f32 %v814, %v893
        %v908 = vadd.f32 %v815, %v898
        %v909 = vadd.f32 %v816, %v903
        %v910 = vxor.u32 %v906, 2147483648
        %v911 = vxor.u32 %v907, 2147483648
        %v912 = vxor.u32 %v908, 2147483648
        %v913 = vxor.u32 %v909, 2147483648
        %v914 = vmul.f32 %v910, 1.442695
        %v915 = vpow.pop %v914
        %v916 = vmul.f32 %v911, 1.442695
        %v917 = vpow.pop %v916
        %v918 = vmul.f32 %v912, 1.442695
        %v919 = vpow.pop %v918
        %v920 = vmul.f32 %v913, 1.442695
        %v921 = vpow.pop %v920
        %v922 = vadd.f32 %v915, 1.0
        %v923 = vadd.f32 %v917, 1.0
        %v924 = vadd.f32 %v919, 1.0
        %v925 = vadd.f32 %v921, 1.0
        %v926 = vrcp.pop %v922
        %v927 = vmul.f32 1.0, %v926
        %v928 = vrcp.pop %v923
        %v929 = vmul.f32 1.0, %v928
        %v930 = vrcp.pop %v924
        %v931 = vmul.f32 1.0, %v930
        %v932 = vrcp.pop %v925
        %v933 = vmul.f32 1.0, %v932
        %v934 = vtanh.pop %v906
        %v935 = vtanh.pop %v907
        %v936 = vtanh.pop %v908
        %v937 = vtanh.pop %v909
        %v938 = vmul.f32 %v927, 0.0
        %v939 = vmul.f32 %v929, 0.0
        %v940 = vmul.f32 %v931, 0.0
        %v941 = vmul.f32 %v933, 0.0
        %946 = vrot.lane.b32.xlu0 %v934, 64
        %v947 = vpop.permute.xlu0 %946
        %948 = vrot.lane.b32.xlu0 %v935, 64
        %v949 = vpop.permute.xlu0 %948
        %950 = vrot.lane.b32.xlu0 %v936, 64
        %v951 = vpop.permute.xlu0 %950
        %952 = vrot.lane.b32.xlu0 %v937, 64
        %v953 = vpop.permute.xlu0 %952
        %v958 = vmul.f32 %v927, %v947
        %v959 = vmul.f32 %v929, %v949
        %v960 = vmul.f32 %v931, %v951
        %v961 = vmul.f32 %v933, %v953
        %966 = vrot.lane.b32.xlu0 %v958, 32
        %v967 = vpop.permute.xlu0 %966
        %968 = vrot.lane.b32.xlu0 %v959, 32
        %v969 = vpop.permute.xlu0 %968
        %970 = vrot.lane.b32.xlu0 %v960, 32
        %v971 = vpop.permute.xlu0 %970
        %972 = vrot.lane.b32.xlu0 %v961, 32
        %v973 = vpop.permute.xlu0 %972
        %v978 = vadd.f32 %v938, %v967
        %v979 = vadd.f32 %v939, %v969
        %v980 = vadd.f32 %v940, %v971
        %v981 = vadd.f32 %v941, %v973
        %v982 = vtanh.pop %v978
        %v983 = vtanh.pop %v979
        %v984 = vtanh.pop %v980
        %v985 = vtanh.pop %v981
        %990 = vrot.lane.b32.xlu0 %v982, 64
        %v991 = vpop.permute.xlu0 %990
        %992 = vrot.lane.b32.xlu0 %v983, 64
        %v993 = vpop.permute.xlu0 %992
        %994 = vrot.lane.b32.xlu0 %v984, 64
        %v995 = vpop.permute.xlu0 %994
        %996 = vrot.lane.b32.xlu0 %v985, 64
        %v997 = vpop.permute.xlu0 %996
        %v1002 = vmul.f32 %v927, %v991
        %v1003 = vmul.f32 %v929, %v993
        %v1004 = vmul.f32 %v931, %v995
        %v1005 = vmul.f32 %v933, %v997
        %1010 = vrot.lane.b32.xlu0 %v1002, 32
        %v1011 = vpop.permute.xlu0 %1010
        %1012 = vrot.lane.b32.xlu0 %v1003, 32
        %v1013 = vpop.permute.xlu0 %1012
        %1014 = vrot.lane.b32.xlu0 %v1004, 32
        %v1015 = vpop.permute.xlu0 %1014
        %1016 = vrot.lane.b32.xlu0 %v1005, 32
        %v1017 = vpop.permute.xlu0 %1016
        %1022 = vst.msk [vmem:[#allocation3] sm:$0xff] %vm817, %v1011
        %1023 = vst.msk [vmem:[#allocation3 + $0x8] sm:$0xff] %vm817, %v1013
        %1024 = vst.msk [vmem:[#allocation3 + $0x10] sm:$0xff] %vm817, %v1015
        %1025 = vst.msk [vmem:[#allocation3 + $0x18] sm:$0xff] %vm817, %v1017
        %s1026 = scalar_lea.vmem [#allocation2], 32
        %v1027 = vld [vmem:[%s1026] sm:$0xff]
        %v1028 = vld [vmem:[%s1026 + $0x8] sm:$0xff]
        %v1029 = vld [vmem:[%s1026 + $0x10] sm:$0xff]
        %v1030 = vld [vmem:[%s1026 + $0x18] sm:$0xff]
        %v1031 = vsel %vm817, %v1011, 0
        %v1033 = vsel %vm817, %v1013, 0
        %v1035 = vsel %vm817, %v1015, 0
        %v1037 = vsel %vm817, %v1017, 0
        %1039 = vmatprep.subr.mxu0 0.0
        %1040 = vmatpush1.msra.mxu0 %v809
        %1041 = vmatprep.subr.mxu0 0.0
        %1042 = vmatpush1.msra.mxu0 %v810
        %1043 = vmatprep.subr.mxu0 0.0
        %1044 = vmatpush1.msra.mxu0 %v811
        %1045 = vmatprep.subr.mxu0 0.0
        %1046 = vmatpush1.msra.mxu0 %v812
        %1047 = vmatprep.subr.mxu0 0.0
        %1048 = vmatpush1.msra.mxu0 0.0
        %1049 = vmatprep.subr.mxu0 0.0
        %1050 = vmatpush1.msra.mxu0 0.0
        %1051 = vmatprep.subr.mxu0 0.0
        %1052 = vmatpush1.msra.mxu0 0.0
        %1053 = vmatprep.subr.mxu0 0.0
        %1054 = vmatpush1.msra.mxu0 0.0
        %1055 = vmatprep.subr.mxu0 0.0
        %1056 = vmatpush1.msra.mxu0 0.0
        %1057 = vmatprep.subr.mxu0 0.0
        %1058 = vmatpush1.msra.mxu0 0.0
        %1059 = vmatprep.subr.mxu0 0.0
        %1060 = vmatpush1.msra.mxu0 0.0
        %1061 = vmatprep.subr.mxu0 0.0
        %1062 = vmatpush1.msra.mxu0 0.0
        %1063 = vmatprep.subr.mxu0 0.0
        %1064 = vmatpush1.msra.mxu0 0.0
        %1065 = vmatprep.subr.mxu0 0.0
        %1066 = vmatpush1.msra.mxu0 0.0
        %1067 = vmatprep.subr.mxu0 0.0
        %1068 = vmatpush1.msra.mxu0 0.0
        %1069 = vmatprep.subr.mxu0 0.0
        %1070 = vmatpush1.msra.mxu0 0.0
        %1071 = vmatprep.subr.mxu0 0.0
        %1072 = vmatpush1.msra.mxu0 0.0
        %1073 = vmatprep.subr.mxu0 0.0
        %1074 = vmatpush1.msra.mxu0 0.0
        %1075 = vmatprep.subr.mxu0 0.0
        %1076 = vmatpush1.msra.mxu0 0.0
        %1077 = vmatprep.subr.mxu0 0.0
        %1078 = vmatpush1.msra.mxu0 0.0
        %1079 = vmatprep.subr.mxu0 0.0
        %1080 = vmatpush1.msra.mxu0 0.0
        %1081 = vmatprep.subr.mxu0 0.0
        %1082 = vmatpush1.msra.mxu0 0.0
        %1083 = vmatprep.subr.mxu0 0.0
        %1084 = vmatpush1.msra.mxu0 0.0
        %1085 = vmatprep.subr.mxu0 0.0
        %1086 = vmatpush1.msra.mxu0 0.0
        %1087 = vmatprep.subr.mxu0 0.0
        %1088 = vmatpush1.msra.mxu0 0.0
        %1089 = vmatprep.subr.mxu0 0.0
        %1090 = vmatpush1.msra.mxu0 0.0
        %1091 = vmatprep.subr.mxu0 0.0
        %1092 = vmatpush1.msra.mxu0 0.0
        %1093 = vmatprep.subr.mxu0 0.0
        %1094 = vmatpush1.msra.mxu0 0.0
        %1095 = vmatprep.subr.mxu0 0.0
        %1096 = vmatpush1.msra.mxu0 0.0
        %1097 = vmatprep.subr.mxu0 0.0
        %1098 = vmatpush1.msra.mxu0 0.0
        %1099 = vmatprep.subr.mxu0 0.0
        %1100 = vmatpush1.msra.mxu0 0.0
        %1101 = vmatprep.subr.mxu0 0.0
        %1102 = vmatpush1.msra.mxu0 0.0
        %1103 = vmatprep.mubr.f32.mxu0 0.0
        %1104 = vmatmul.mubr.f32.gmra.mrb[0].mxu0 %v1031
        %v1105 = vpop.f32.mrb[0].mxu0
        %v1106 = vadd.f32 0.0, %v1105
        %v1107 = vpop.f32.mrb[0].mxu0
        %1108 = vmatprep.mubr.f32.mxu0 0.0
        %1109 = vmatmul.mubr.f32.gmra.mrb[0].mxu0 %v1033
        %v1110 = vpop.f32.mrb[0].mxu0
        %v1111 = vadd.f32 0.0, %v1110
        %v1112 = vpop.f32.mrb[0].mxu0
        %1113 = vmatprep.mubr.f32.mxu0 0.0
        %1114 = vmatmul.mubr.f32.gmra.mrb[0].mxu0 %v1035
        %v1115 = vpop.f32.mrb[0].mxu0
        %v1116 = vadd.f32 0.0, %v1115
        %v1117 = vpop.f32.mrb[0].mxu0
        %1118 = vmatprep.mubr.f32.mxu0 0.0
        %1119 = vmatmul.mubr.f32.gmra.mrb[0].mxu0 %v1037
        %v1120 = vpop.f32.mrb[0].mxu0
        %v1121 = vadd.f32 0.0, %v1120
        %v1122 = vpop.f32.mrb[0].mxu0
        %1123 = vdwg.mxu0
        %v1124 = vadd.f32 %v1027, %v1106
        %v1125 = vadd.f32 %v1028, %v1111
        %v1126 = vadd.f32 %v1029, %v1116
        %v1127 = vadd.f32 %v1030, %v1121
        %v1128 = vxor.u32 %v1124, 2147483648
        %v1129 = vxor.u32 %v1125, 2147483648
        %v1130 = vxor.u32 %v1126, 2147483648
        %v1131 = vxor.u32 %v1127, 2147483648
        %v1132 = vmul.f32 %v1128, 1.442695
        %v1133 = vpow.pop %v1132
        %v1134 = vmul.f32 %v1129, 1.442695
        %v1135 = vpow.pop %v1134
        %v1136 = vmul.f32 %v1130, 1.442695
        %v1137 = vpow.pop %v1136
        %v1138 = vmul.f32 %v1131, 1.442695
        %v1139 = vpow.pop %v1138
        %v1140 = vadd.f32 %v1133, 1.0
        %v1141 = vadd.f32 %v1135, 1.0
        %v1142 = vadd.f32 %v1137, 1.0
        %v1143 = vadd.f32 %v1139, 1.0
        %v1144 = vrcp.pop %v1140
        %v1145 = vmul.f32 1.0, %v1144
        %v1146 = vrcp.pop %v1141
        %v1147 = vmul.f32 1.0, %v1146
        %v1148 = vrcp.pop %v1142
        %v1149 = vmul.f32 1.0, %v1148
        %v1150 = vrcp.pop %v1143
        %v1151 = vmul.f32 1.0, %v1150
        %v1152 = vtanh.pop %v1124
        %v1153 = vtanh.pop %v1125
        %v1154 = vtanh.pop %v1126
        %v1155 = vtanh.pop %v1127
        %v1156 = vmul.f32 %v1145, %v978
        %v1157 = vmul.f32 %v1147, %v979
        %v1158 = vmul.f32 %v1149, %v980
        %v1159 = vmul.f32 %v1151, %v981
        %1164 = vrot.lane.b32.xlu0 %v1152, 64
        %v1165 = vpop.permute.xlu0 %1164
        %1166 = vrot.lane.b32.xlu0 %v1153, 64
        %v1167 = vpop.permute.xlu0 %1166
        %1168 = vrot.lane.b32.xlu0 %v1154, 64
        %v1169 = vpop.permute.xlu0 %1168
        %1170 = vrot.lane.b32.xlu0 %v1155, 64
        %v1171 = vpop.permute.xlu0 %1170
        %v1176 = vmul.f32 %v1145, %v1165
        %v1177 = vmul.f32 %v1147, %v1167
        %v1178 = vmul.f32 %v1149, %v1169
        %v1179 = vmul.f32 %v1151, %v1171
        %1184 = vrot.lane.b32.xlu0 %v1176, 32
        %v1185 = vpop.permute.xlu0 %1184
        %1186 = vrot.lane.b32.xlu0 %v1177, 32
        %v1187 = vpop.permute.xlu0 %1186
        %1188 = vrot.lane.b32.xlu0 %v1178, 32
        %v1189 = vpop.permute.xlu0 %1188
        %1190 = vrot.lane.b32.xlu0 %v1179, 32
        %v1191 = vpop.permute.xlu0 %1190
        %v1196 = vadd.f32 %v1156, %v1185
        %v1197 = vadd.f32 %v1157, %v1187
        %v1198 = vadd.f32 %v1158, %v1189
        %v1199 = vadd.f32 %v1159, %v1191
        %v1200 = vtanh.pop %v1196
        %v1201 = vtanh.pop %v1197
        %v1202 = vtanh.pop %v1198
        %v1203 = vtanh.pop %v1199
        %1208 = vrot.lane.b32.xlu0 %v1200, 64
        %v1209 = vpop.permute.xlu0 %1208
        %1210 = vrot.lane.b32.xlu0 %v1201, 64
        %v1211 = vpop.permute.xlu0 %1210
        %1212 = vrot.lane.b32.xlu0 %v1202, 64
        %v1213 = vpop.permute.xlu0 %1212
        %1214 = vrot.lane.b32.xlu0 %v1203, 64
        %v1215 = vpop.permute.xlu0 %1214
        %v1220 = vmul.f32 %v1145, %v1209
        %v1221 = vmul.f32 %v1147, %v1211
        %v1222 = vmul.f32 %v1149, %v1213
        %v1223 = vmul.f32 %v1151, %v1215
        %1228 = vrot.lane.b32.xlu0 %v1220, 32
        %v1229 = vpop.permute.xlu0 %1228
        %1230 = vrot.lane.b32.xlu0 %v1221, 32
        %v1231 = vpop.permute.xlu0 %1230
        %1232 = vrot.lane.b32.xlu0 %v1222, 32
        %v1233 = vpop.permute.xlu0 %1232
        %1234 = vrot.lane.b32.xlu0 %v1223, 32
        %v1235 = vpop.permute.xlu0 %1234
        %s1240 = scalar_lea.vmem [#allocation3], 32
        %1241 = vst.msk [vmem:[%s1240] sm:$0xff] %vm817, %v1229
        %1242 = vst.msk [vmem:[%s1240 + $0x8] sm:$0xff] %vm817, %v1231
        %1243 = vst.msk [vmem:[%s1240 + $0x10] sm:$0xff] %vm817, %v1233
        %1244 = vst.msk [vmem:[%s1240 + $0x18] sm:$0xff] %vm817, %v1235
        %s1245 = scalar_lea.vmem [#allocation2], 64
        %v1246 = vld [vmem:[%s1245] sm:$0xff]
        %v1247 = vld [vmem:[%s1245 + $0x8] sm:$0xff]
        %v1248 = vld [vmem:[%s1245 + $0x10] sm:$0xff]
        %v1249 = vld [vmem:[%s1245 + $0x18] sm:$0xff]
        %v1250 = vsel %vm817, %v1229, 0
        %v1252 = vsel %vm817, %v1231, 0
        %v1254 = vsel %vm817, %v1233, 0
        %v1256 = vsel %vm817, %v1235, 0
        %1258 = vmatprep.subr.mxu0 0.0
        %1259 = vmatpush1.msra.mxu0 %v809
        %1260 = vmatprep.subr.mxu0 0.0
        %1261 = vmatpush1.msra.mxu0 %v810
        %1262 = vmatprep.subr.mxu0 0.0
        %1263 = vmatpush1.msra.mxu0 %v811
        %1264 = vmatprep.subr.mxu0 0.0
        %1265 = vmatpush1.msra.mxu0 %v812
        %1266 = vmatprep.subr.mxu0 0.0
        %1267 = vmatpush1.msra.mxu0 0.0
        %1268 = vmatprep.subr.mxu0 0.0
        %1269 = vmatpush1.msra.mxu0 0.0
        %1270 = vmatprep.subr.mxu0 0.0
        %1271 = vmatpush1.msra.mxu0 0.0
        %1272 = vmatprep.subr.mxu0 0.0
        %1273 = vmatpush1.msra.mxu0 0.0
        %1274 = vmatprep.subr.mxu0 0.0
        %1275 = vmatpush1.msra.mxu0 0.0
        %1276 = vmatprep.subr.mxu0 0.0
        %1277 = vmatpush1.msra.mxu0 0.0
        %1278 = vmatprep.subr.mxu0 0.0
        %1279 = vmatpush1.msra.mxu0 0.0
        %1280 = vmatprep.subr.mxu0 0.0
        %1281 = vmatpush1.msra.mxu0 0.0
        %1282 = vmatprep.subr.mxu0 0.0
        %1283 = vmatpush1.msra.mxu0 0.0
        %1284 = vmatprep.subr.mxu0 0.0
        %1285 = vmatpush1.msra.mxu0 0.0
        %1286 = vmatprep.subr.mxu0 0.0
        %1287 = vmatpush1.msra.mxu0 0.0
        %1288 = vmatprep.subr.mxu0 0.0
        %1289 = vmatpush1.msra.mxu0 0.0
        %1290 = vmatprep.subr.mxu0 0.0
        %1291 = vmatpush1.msra.mxu0 0.0
        %1292 = vmatprep.subr.mxu0 0.0
        %1293 = vmatpush1.msra.mxu0 0.0
        %1294 = vmatprep.subr.mxu0 0.0
        %1295 = vmatpush1.msra.mxu0 0.0
        %1296 = vmatprep.subr.mxu0 0.0
        %1297 = vmatpush1.msra.mxu0 0.0
        %1298 = vmatprep.subr.mxu0 0.0
        %1299 = vmatpush1.msra.mxu0 0.0
        %1300 = vmatprep.subr.mxu0 0.0
        %1301 = vmatpush1.msra.mxu0 0.0
        %1302 = vmatprep.subr.mxu0 0.0
        %1303 = vmatpush1.msra.mxu0 0.0
        %1304 = vmatprep.subr.mxu0 0.0
        %1305 = vmatpush1.msra.mxu0 0.0
        %1306 = vmatprep.subr.mxu0 0.0
        %1307 = vmatpush1.msra.mxu0 0.0
        %1308 = vmatprep.subr.mxu0 0.0
        %1309 = vmatpush1.msra.mxu0 0.0
        %1310 = vmatprep.subr.mxu0 0.0
        %1311 = vmatpush1.msra.mxu0 0.0
        %1312 = vmatprep.subr.mxu0 0.0
        %1313 = vmatpush1.msra.mxu0 0.0
        %1314 = vmatprep.subr.mxu0 0.0
        %1315 = vmatpush1.msra.mxu0 0.0
        %1316 = vmatprep.subr.mxu0 0.0
        %1317 = vmatpush1.msra.mxu0 0.0
        %1318 = vmatprep.subr.mxu0 0.0
        %1319 = vmatpush1.msra.mxu0 0.0
        %1320 = vmatprep.subr.mxu0 0.0
        %1321 = vmatpush1.msra.mxu0 0.0
        %1322 = vmatprep.mubr.f32.mxu0 0.0
        %1323 = vmatmul.mubr.f32.gmra.mrb[0].mxu0 %v1250
        %v1324 = vpop.f32.mrb[0].mxu0
        %v1325 = vadd.f32 0.0, %v1324
        %v1326 = vpop.f32.mrb[0].mxu0
        %1327 = vmatprep.mubr.f32.mxu0 0.0
        %1328 = vmatmul.mubr.f32.gmra.mrb[0].mxu0 %v1252
        %v1329 = vpop.f32.mrb[0].mxu0
        %v1330 = vadd.f32 0.0, %v1329
        %v1331 = vpop.f32.mrb[0].mxu0
        %1332 = vmatprep.mubr.f32.mxu0 0.0
        %1333 = vmatmul.mubr.f32.gmra.mrb[0].mxu0 %v1254
        %v1334 = vpop.f32.mrb[0].mxu0
        %v1335 = vadd.f32 0.0, %v1334
        %v1336 = vpop.f32.mrb[0].mxu0
        %1337 = vmatprep.mubr.f32.mxu0 0.0
        %1338 = vmatmul.mubr.f32.gmra.mrb[0].mxu0 %v1256
        %v1339 = vpop.f32.mrb[0].mxu0
        %v1340 = vadd.f32 0.0, %v1339
        %v1341 = vpop.f32.mrb[0].mxu0
        %1342 = vdwg.mxu0
        %v1343 = vadd.f32 %v1246, %v1325
        %v1344 = vadd.f32 %v1247, %v1330
        %v1345 = vadd.f32 %v1248, %v1335
        %v1346 = vadd.f32 %v1249, %v1340
        %v1347 = vxor.u32 %v1343, 2147483648
        %v1348 = vxor.u32 %v1344, 2147483648
        %v1349 = vxor.u32 %v1345, 2147483648
        %v1350 = vxor.u32 %v1346, 2147483648
        %v1351 = vmul.f32 %v1347, 1.442695
        %v1352 = vpow.pop %v1351
        %v1353 = vmul.f32 %v1348, 1.442695
        %v1354 = vpow.pop %v1353
        %v1355 = vmul.f32 %v1349, 1.442695
        %v1356 = vpow.pop %v1355
        %v1357 = vmul.f32 %v1350, 1.442695
        %v1358 = vpow.pop %v1357
        %v1359 = vadd.f32 %v1352, 1.0
        %v1360 = vadd.f32 %v1354, 1.0
        %v1361 = vadd.f32 %v1356, 1.0
        %v1362 = vadd.f32 %v1358, 1.0
        %v1363 = vrcp.pop %v1359
        %v1364 = vmul.f32 1.0, %v1363
        %v1365 = vrcp.pop %v1360
        %v1366 = vmul.f32 1.0, %v1365
        %v1367 = vrcp.pop %v1361
        %v1368 = vmul.f32 1.0, %v1367
        %v1369 = vrcp.pop %v1362
        %v1370 = vmul.f32 1.0, %v1369
        %v1371 = vtanh.pop %v1343
        %v1372 = vtanh.pop %v1344
        %v1373 = vtanh.pop %v1345
        %v1374 = vtanh.pop %v1346
        %v1375 = vmul.f32 %v1364, %v1196
        %v1376 = vmul.f32 %v1366, %v1197
        %v1377 = vmul.f32 %v1368, %v1198
        %v1378 = vmul.f32 %v1370, %v1199
        %1383 = vrot.lane.b32.xlu0 %v1371, 64
        %v1384 = vpop.permute.xlu0 %1383
        %1385 = vrot.lane.b32.xlu0 %v1372, 64
        %v1386 = vpop.permute.xlu0 %1385
        %1387 = vrot.lane.b32.xlu0 %v1373, 64
        %v1388 = vpop.permute.xlu0 %1387
        %1389 = vrot.lane.b32.xlu0 %v1374, 64
        %v1390 = vpop.permute.xlu0 %1389
        %v1395 = vmul.f32 %v1364, %v1384
        %v1396 = vmul.f32 %v1366, %v1386
        %v1397 = vmul.f32 %v1368, %v1388
        %v1398 = vmul.f32 %v1370, %v1390
        %1403 = vrot.lane.b32.xlu0 %v1395, 32
        %v1404 = vpop.permute.xlu0 %1403
        %1405 = vrot.lane.b32.xlu0 %v1396, 32
        %v1406 = vpop.permute.xlu0 %1405
        %1407 = vrot.lane.b32.xlu0 %v1397, 32
        %v1408 = vpop.permute.xlu0 %1407
        %1409 = vrot.lane.b32.xlu0 %v1398, 32
        %v1410 = vpop.permute.xlu0 %1409
        %v1415 = vadd.f32 %v1375, %v1404
        %v1416 = vadd.f32 %v1376, %v1406
        %v1417 = vadd.f32 %v1377, %v1408
        %v1418 = vadd.f32 %v1378, %v1410
        %v1419 = vtanh.pop %v1415
        %v1420 = vtanh.pop %v1416
        %v1421 = vtanh.pop %v1417
        %v1422 = vtanh.pop %v1418
        %1427 = vrot.lane.b32.xlu0 %v1419, 64
        %v1428 = vpop.permute.xlu0 %1427
        %1429 = vrot.lane.b32.xlu0 %v1420, 64
        %v1430 = vpop.permute.xlu0 %1429
        %1431 = vrot.lane.b32.xlu0 %v1421, 64
        %v1432 = vpop.permute.xlu0 %1431
        %1433 = vrot.lane.b32.xlu0 %v1422, 64
        %v1434 = vpop.permute.xlu0 %1433
        %v1439 = vmul.f32 %v1364, %v1428
        %v1440 = vmul.f32 %v1366, %v1430
        %v1441 = vmul.f32 %v1368, %v1432
        %v1442 = vmul.f32 %v1370, %v1434
        %1447 = vrot.lane.b32.xlu0 %v1439, 32
        %v1448 = vpop.permute.xlu0 %1447
        %1449 = vrot.lane.b32.xlu0 %v1440, 32
        %v1450 = vpop.permute.xlu0 %1449
        %1451 = vrot.lane.b32.xlu0 %v1441, 32
        %v1452 = vpop.permute.xlu0 %1451
        %1453 = vrot.lane.b32.xlu0 %v1442, 32
        %v1454 = vpop.permute.xlu0 %1453
        %s1459 = scalar_lea.vmem [#allocation3], 64
        %1460 = vst.msk [vmem:[%s1459] sm:$0xff] %vm817, %v1448
        %1461 = vst.msk [vmem:[%s1459 + $0x8] sm:$0xff] %vm817, %v1450
        %1462 = vst.msk [vmem:[%s1459 + $0x10] sm:$0xff] %vm817, %v1452
        %1463 = vst.msk [vmem:[%s1459 + $0x18] sm:$0xff] %vm817, %v1454
        %s1464 = scalar_lea.vmem [#allocation2], 96
        %v1465 = vld [vmem:[%s1464] sm:$0xff]
        %v1466 = vld [vmem:[%s1464 + $0x8] sm:$0xff]
        %v1467 = vld [vmem:[%s1464 + $0x10] sm:$0xff]
        %v1468 = vld [vmem:[%s1464 + $0x18] sm:$0xff]
        %v1469 = vsel %vm817, %v1448, 0
        %v1471 = vsel %vm817, %v1450, 0
        %v1473 = vsel %vm817, %v1452, 0
        %v1475 = vsel %vm817, %v1454, 0
        %1477 = vmatprep.subr.mxu0 0.0
        %1478 = vmatpush1.msra.mxu0 %v809
        %1479 = vmatprep.subr.mxu0 0.0
        %1480 = vmatpush1.msra.mxu0 %v810
        %1481 = vmatprep.subr.mxu0 0.0
        %1482 = vmatpush1.msra.mxu0 %v811
        %1483 = vmatprep.subr.mxu0 0.0
        %1484 = vmatpush1.msra.mxu0 %v812
        %1485 = vmatprep.subr.mxu0 0.0
        %1486 = vmatpush1.msra.mxu0 0.0
        %1487 = vmatprep.subr.mxu0 0.0
        %1488 = vmatpush1.msra.mxu0 0.0
        %1489 = vmatprep.subr.mxu0 0.0
        %1490 = vmatpush1.msra.mxu0 0.0
        %1491 = vmatprep.subr.mxu0 0.0
        %1492 = vmatpush1.msra.mxu0 0.0
        %1493 = vmatprep.subr.mxu0 0.0
        %1494 = vmatpush1.msra.mxu0 0.0
        %1495 = vmatprep.subr.mxu0 0.0
        %1496 = vmatpush1.msra.mxu0 0.0
        %1497 = vmatprep.subr.mxu0 0.0
        %1498 = vmatpush1.msra.mxu0 0.0
        %1499 = vmatprep.subr.mxu0 0.0
        %1500 = vmatpush1.msra.mxu0 0.0
        %1501 = vmatprep.subr.mxu0 0.0
        %1502 = vmatpush1.msra.mxu0 0.0
        %1503 = vmatprep.subr.mxu0 0.0
        %1504 = vmatpush1.msra.mxu0 0.0
        %1505 = vmatprep.subr.mxu0 0.0
        %1506 = vmatpush1.msra.mxu0 0.0
        %1507 = vmatprep.subr.mxu0 0.0
        %1508 = vmatpush1.msra.mxu0 0.0
        %1509 = vmatprep.subr.mxu0 0.0
        %1510 = vmatpush1.msra.mxu0 0.0
        %1511 = vmatprep.subr.mxu0 0.0
        %1512 = vmatpush1.msra.mxu0 0.0
        %1513 = vmatprep.subr.mxu0 0.0
        %1514 = vmatpush1.msra.mxu0 0.0
        %1515 = vmatprep.subr.mxu0 0.0
        %1516 = vmatpush1.msra.mxu0 0.0
        %1517 = vmatprep.subr.mxu0 0.0
        %1518 = vmatpush1.msra.mxu0 0.0
        %1519 = vmatprep.subr.mxu0 0.0
        %1520 = vmatpush1.msra.mxu0 0.0
        %1521 = vmatprep.subr.mxu0 0.0
        %1522 = vmatpush1.msra.mxu0 0.0
        %1523 = vmatprep.subr.mxu0 0.0
        %1524 = vmatpush1.msra.mxu0 0.0
        %1525 = vmatprep.subr.mxu0 0.0
        %1526 = vmatpush1.msra.mxu0 0.0
        %1527 = vmatprep.subr.mxu0 0.0
        %1528 = vmatpush1.msra.mxu0 0.0
        %1529 = vmatprep.subr.mxu0 0.0
        %1530 = vmatpush1.msra.mxu0 0.0
        %1531 = vmatprep.subr.mxu0 0.0
        %1532 = vmatpush1.msra.mxu0 0.0
        %1533 = vmatprep.subr.mxu0 0.0
        %1534 = vmatpush1.msra.mxu0 0.0
        %1535 = vmatprep.subr.mxu0 0.0
        %1536 = vmatpush1.msra.mxu0 0.0
        %1537 = vmatprep.subr.mxu0 0.0
        %1538 = vmatpush1.msra.mxu0 0.0
        %1539 = vmatprep.subr.mxu0 0.0
        %1540 = vmatpush1.msra.mxu0 0.0
        %1541 = vmatprep.mubr.f32.mxu0 0.0
        %1542 = vmatmul.mubr.f32.gmra.mrb[0].mxu0 %v1469
        %v1543 = vpop.f32.mrb[0].mxu0
        %v1544 = vadd.f32 0.0, %v1543
        %v1545 = vpop.f32.mrb[0].mxu0
        %1546 = vmatprep.mubr.f32.mxu0 0.0
        %1547 = vmatmul.mubr.f32.gmra.mrb[0].mxu0 %v1471
        %v1548 = vpop.f32.mrb[0].mxu0
        %v1549 = vadd.f32 0.0, %v1548
        %v1550 = vpop.f32.mrb[0].mxu0
        %1551 = vmatprep.mubr.f32.mxu0 0.0
        %1552 = vmatmul.mubr.f32.gmra.mrb[0].mxu0 %v1473
        %v1553 = vpop.f32.mrb[0].mxu0
        %v1554 = vadd.f32 0.0, %v1553
        %v1555 = vpop.f32.mrb[0].mxu0
        %1556 = vmatprep.mubr.f32.mxu0 0.0
        %1557 = vmatmul.mubr.f32.gmra.mrb[0].mxu0 %v1475
        %v1558 = vpop.f32.mrb[0].mxu0
        %v1559 = vadd.f32 0.0, %v1558
        %v1560 = vpop.f32.mrb[0].mxu0
        %1561 = vdwg.mxu0
        %v1562 = vadd.f32 %v1465, %v1544
        %v1563 = vadd.f32 %v1466, %v1549
        %v1564 = vadd.f32 %v1467, %v1554
        %v1565 = vadd.f32 %v1468, %v1559
        %v1566 = vxor.u32 %v1562, 2147483648
        %v1567 = vxor.u32 %v1563, 2147483648
        %v1568 = vxor.u32 %v1564, 2147483648
        %v1569 = vxor.u32 %v1565, 2147483648
        %v1570 = vmul.f32 %v1566, 1.442695
        %v1571 = vpow.pop %v1570
        %v1572 = vmul.f32 %v1567, 1.442695
        %v1573 = vpow.pop %v1572
        %v1574 = vmul.f32 %v1568, 1.442695
        %v1575 = vpow.pop %v1574
        %v1576 = vmul.f32 %v1569, 1.442695
        %v1577 = vpow.pop %v1576
        %v1578 = vadd.f32 %v1571, 1.0
        %v1579 = vadd.f32 %v1573, 1.0
        %v1580 = vadd.f32 %v1575, 1.0
        %v1581 = vadd.f32 %v1577, 1.0
        %v1582 = vrcp.pop %v1578
        %v1583 = vmul.f32 1.0, %v1582
        %v1584 = vrcp.pop %v1579
        %v1585 = vmul.f32 1.0, %v1584
        %v1586 = vrcp.pop %v1580
        %v1587 = vmul.f32 1.0, %v1586
        %v1588 = vrcp.pop %v1581
        %v1589 = vmul.f32 1.0, %v1588
        %v1590 = vtanh.pop %v1562
        %v1591 = vtanh.pop %v1563
        %v1592 = vtanh.pop %v1564
        %v1593 = vtanh.pop %v1565
        %v1594 = vmul.f32 %v1583, %v1415
        %v1595 = vmul.f32 %v1585, %v1416
        %v1596 = vmul.f32 %v1587, %v1417
        %v1597 = vmul.f32 %v1589, %v1418
        %1602 = vrot.lane.b32.xlu0 %v1590, 64
        %v1603 = vpop.permute.xlu0 %1602
        %1604 = vrot.lane.b32.xlu0 %v1591, 64
        %v1605 = vpop.permute.xlu0 %1604
        %1606 = vrot.lane.b32.xlu0 %v1592, 64
        %v1607 = vpop.permute.xlu0 %1606
        %1608 = vrot.lane.b32.xlu0 %v1593, 64
        %v1609 = vpop.permute.xlu0 %1608
        %v1614 = vmul.f32 %v1583, %v1603
        %v1615 = vmul.f32 %v1585, %v1605
        %v1616 = vmul.f32 %v1587, %v1607
        %v1617 = vmul.f32 %v1589, %v1609
        %1622 = vrot.lane.b32.xlu0 %v1614, 32
        %v1623 = vpop.permute.xlu0 %1622
        %1624 = vrot.lane.b32.xlu0 %v1615, 32
        %v1625 = vpop.permute.xlu0 %1624
        %1626 = vrot.lane.b32.xlu0 %v1616, 32
        %v1627 = vpop.permute.xlu0 %1626
        %1628 = vrot.lane.b32.xlu0 %v1617, 32
        %v1629 = vpop.permute.xlu0 %1628
        %v1634 = vadd.f32 %v1594, %v1623
        %v1635 = vadd.f32 %v1595, %v1625
        %v1636 = vadd.f32 %v1596, %v1627
        %v1637 = vadd.f32 %v1597, %v1629
        %v1638 = vtanh.pop %v1634
        %v1639 = vtanh.pop %v1635
        %v1640 = vtanh.pop %v1636
        %v1641 = vtanh.pop %v1637
        %1646 = vrot.lane.b32.xlu0 %v1638, 64
        %v1647 = vpop.permute.xlu0 %1646
        %1648 = vrot.lane.b32.xlu0 %v1639, 64
        %v1649 = vpop.permute.xlu0 %1648
        %1650 = vrot.lane.b32.xlu0 %v1640, 64
        %v1651 = vpop.permute.xlu0 %1650
        %1652 = vrot.lane.b32.xlu0 %v1641, 64
        %v1653 = vpop.permute.xlu0 %1652
        %v1658 = vmul.f32 %v1583, %v1647
        %v1659 = vmul.f32 %v1585, %v1649
        %v1660 = vmul.f32 %v1587, %v1651
        %v1661 = vmul.f32 %v1589, %v1653
        %1666 = vrot.lane.b32.xlu0 %v1658, 32
        %v1667 = vpop.permute.xlu0 %1666
        %1668 = vrot.lane.b32.xlu0 %v1659, 32
        %v1669 = vpop.permute.xlu0 %1668
        %1670 = vrot.lane.b32.xlu0 %v1660, 32
        %v1671 = vpop.permute.xlu0 %1670
        %1672 = vrot.lane.b32.xlu0 %v1661, 32
        %v1673 = vpop.permute.xlu0 %1672
        %s1678 = scalar_lea.vmem [#allocation3], 96
        %1679 = vst.msk [vmem:[%s1678] sm:$0xff] %vm817, %v1667
        %1680 = vst.msk [vmem:[%s1678 + $0x8] sm:$0xff] %vm817, %v1669
        %1681 = vst.msk [vmem:[%s1678 + $0x10] sm:$0xff] %vm817, %v1671
        %1682 = vst.msk [vmem:[%s1678 + $0x18] sm:$0xff] %vm817, %v1673
        %s1683 = scalar_lea.vmem [#allocation2], 128
        %v1684 = vld [vmem:[%s1683] sm:$0xff]
        %v1685 = vld [vmem:[%s1683 + $0x8] sm:$0xff]
        %v1686 = vld [vmem:[%s1683 + $0x10] sm:$0xff]
        %v1687 = vld [vmem:[%s1683 + $0x18] sm:$0xff]
        %v1688 = vsel %vm817, %v1667, 0
        %v1690 = vsel %vm817, %v1669, 0
        %v1692 = vsel %vm817, %v1671, 0
        %v1694 = vsel %vm817, %v1673, 0
        %1696 = vmatprep.subr.mxu0 0.0
        %1697 = vmatpush1.msra.mxu0 %v809
        %1698 = vmatprep.subr.mxu0 0.0
        %1699 = vmatpush1.msra.mxu0 %v810
        %1700 = vmatprep.subr.mxu0 0.0
        %1701 = vmatpush1.msra.mxu0 %v811
        %1702 = vmatprep.subr.mxu0 0.0
        %1703 = vmatpush1.msra.mxu0 %v812
        %1704 = vmatprep.subr.mxu0 0.0
        %1705 = vmatpush1.msra.mxu0 0.0
        %1706 = vmatprep.subr.mxu0 0.0
        %1707 = vmatpush1.msra.mxu0 0.0
        %1708 = vmatprep.subr.mxu0 0.0
        %1709 = vmatpush1.msra.mxu0 0.0
        %1710 = vmatprep.subr.mxu0 0.0
        %1711 = vmatpush1.msra.mxu0 0.0
        %1712 = vmatprep.subr.mxu0 0.0
        %1713 = vmatpush1.msra.mxu0 0.0
        %1714 = vmatprep.subr.mxu0 0.0
        %1715 = vmatpush1.msra.mxu0 0.0
        %1716 = vmatprep.subr.mxu0 0.0
        %1717 = vmatpush1.msra.mxu0 0.0
        %1718 = vmatprep.subr.mxu0 0.0
        %1719 = vmatpush1.msra.mxu0 0.0
        %1720 = vmatprep.subr.mxu0 0.0
        %1721 = vmatpush1.msra.mxu0 0.0
        %1722 = vmatprep.subr.mxu0 0.0
        %1723 = vmatpush1.msra.mxu0 0.0
        %1724 = vmatprep.subr.mxu0 0.0
        %1725 = vmatpush1.msra.mxu0 0.0
        %1726 = vmatprep.subr.mxu0 0.0
        %1727 = vmatpush1.msra.mxu0 0.0
        %1728 = vmatprep.subr.mxu0 0.0
        %1729 = vmatpush1.msra.mxu0 0.0
        %1730 = vmatprep.subr.mxu0 0.0
        %1731 = vmatpush1.msra.mxu0 0.0
        %1732 = vmatprep.subr.mxu0 0.0
        %1733 = vmatpush1.msra.mxu0 0.0
        %1734 = vmatprep.subr.mxu0 0.0
        %1735 = vmatpush1.msra.mxu0 0.0
        %1736 = vmatprep.subr.mxu0 0.0
        %1737 = vmatpush1.msra.mxu0 0.0
        %1738 = vmatprep.subr.mxu0 0.0
        %1739 = vmatpush1.msra.mxu0 0.0
        %1740 = vmatprep.subr.mxu0 0.0
        %1741 = vmatpush1.msra.mxu0 0.0
        %1742 = vmatprep.subr.mxu0 0.0
        %1743 = vmatpush1.msra.mxu0 0.0
        %1744 = vmatprep.subr.mxu0 0.0
        %1745 = vmatpush1.msra.mxu0 0.0
        %1746 = vmatprep.subr.mxu0 0.0
        %1747 = vmatpush1.msra.mxu0 0.0
        %1748 = vmatprep.subr.mxu0 0.0
        %1749 = vmatpush1.msra.mxu0 0.0
        %1750 = vmatprep.subr.mxu0 0.0
        %1751 = vmatpush1.msra.mxu0 0.0
        %1752 = vmatprep.subr.mxu0 0.0
        %1753 = vmatpush1.msra.mxu0 0.0
        %1754 = vmatprep.subr.mxu0 0.0
        %1755 = vmatpush1.msra.mxu0 0.0
        %1756 = vmatprep.subr.mxu0 0.0
        %1757 = vmatpush1.msra.mxu0 0.0
        %1758 = vmatprep.subr.mxu0 0.0
        %1759 = vmatpush1.msra.mxu0 0.0
        %1760 = vmatprep.mubr.f32.mxu0 0.0
        %1761 = vmatmul.mubr.f32.gmra.mrb[0].mxu0 %v1688
        %v1762 = vpop.f32.mrb[0].mxu0
        %v1763 = vadd.f32 0.0, %v1762
        %v1764 = vpop.f32.mrb[0].mxu0
        %1765 = vmatprep.mubr.f32.mxu0 0.0
        %1766 = vmatmul.mubr.f32.gmra.mrb[0].mxu0 %v1690
        %v1767 = vpop.f32.mrb[0].mxu0
        %v1768 = vadd.f32 0.0, %v1767
        %v1769 = vpop.f32.mrb[0].mxu0
        %1770 = vmatprep.mubr.f32.mxu0 0.0
        %1771 = vmatmul.mubr.f32.gmra.mrb[0].mxu0 %v1692
        %v1772 = vpop.f32.mrb[0].mxu0
        %v1773 = vadd.f32 0.0, %v1772
        %v1774 = vpop.f32.mrb[0].mxu0
        %1775 = vmatprep.mubr.f32.mxu0 0.0
        %1776 = vmatmul.mubr.f32.gmra.mrb[0].mxu0 %v1694
        %v1777 = vpop.f32.mrb[0].mxu0
        %v1778 = vadd.f32 0.0, %v1777
        %v1779 = vpop.f32.mrb[0].mxu0
        %1780 = vdwg.mxu0
        %v1781 = vadd.f32 %v1684, %v1763
        %v1782 = vadd.f32 %v1685, %v1768
        %v1783 = vadd.f32 %v1686, %v1773
        %v1784 = vadd.f32 %v1687, %v1778
        %v1785 = vxor.u32 %v1781, 2147483648
        %v1786 = vxor.u32 %v1782, 2147483648
        %v1787 = vxor.u32 %v1783, 2147483648
        %v1788 = vxor.u32 %v1784, 2147483648
        %v1789 = vmul.f32 %v1785, 1.442695
        %v1790 = vpow.pop %v1789
        %v1791 = vmul.f32 %v1786, 1.442695
        %v1792 = vpow.pop %v1791
        %v1793 = vmul.f32 %v1787, 1.442695
        %v1794 = vpow.pop %v1793
        %v1795 = vmul.f32 %v1788, 1.442695
        %v1796 = vpow.pop %v1795
        %v1797 = vadd.f32 %v1790, 1.0
        %v1798 = vadd.f32 %v1792, 1.0
        %v1799 = vadd.f32 %v1794, 1.0
        %v1800 = vadd.f32 %v1796, 1.0
        %v1801 = vrcp.pop %v1797
        %v1802 = vmul.f32 1.0, %v1801
        %v1803 = vrcp.pop %v1798
        %v1804 = vmul.f32 1.0, %v1803
        %v1805 = vrcp.pop %v1799
        %v1806 = vmul.f32 1.0, %v1805
        %v1807 = vrcp.pop %v1800
        %v1808 = vmul.f32 1.0, %v1807
        %v1809 = vtanh.pop %v1781
        %v1810 = vtanh.pop %v1782
        %v1811 = vtanh.pop %v1783
        %v1812 = vtanh.pop %v1784
        %v1813 = vmul.f32 %v1802, %v1634
        %v1814 = vmul.f32 %v1804, %v1635
        %v1815 = vmul.f32 %v1806, %v1636
        %v1816 = vmul.f32 %v1808, %v1637
        %1821 = vrot.lane.b32.xlu0 %v1809, 64
        %v1822 = vpop.permute.xlu0 %1821
        %1823 = vrot.lane.b32.xlu0 %v1810, 64
        %v1824 = vpop.permute.xlu0 %1823
        %1825 = vrot.lane.b32.xlu0 %v1811, 64
        %v1826 = vpop.permute.xlu0 %1825
        %1827 = vrot.lane.b32.xlu0 %v1812, 64
        %v1828 = vpop.permute.xlu0 %1827
        %v1833 = vmul.f32 %v1802, %v1822
        %v1834 = vmul.f32 %v1804, %v1824
        %v1835 = vmul.f32 %v1806, %v1826
        %v1836 = vmul.f32 %v1808, %v1828
        %1841 = vrot.lane.b32.xlu0 %v1833, 32
        %v1842 = vpop.permute.xlu0 %1841
        %1843 = vrot.lane.b32.xlu0 %v1834, 32
        %v1844 = vpop.permute.xlu0 %1843
        %1845 = vrot.lane.b32.xlu0 %v1835, 32
        %v1846 = vpop.permute.xlu0 %1845
        %1847 = vrot.lane.b32.xlu0 %v1836, 32
        %v1848 = vpop.permute.xlu0 %1847
        %v1853 = vadd.f32 %v1813, %v1842
        %v1854 = vadd.f32 %v1814, %v1844
        %v1855 = vadd.f32 %v1815, %v1846
        %v1856 = vadd.f32 %v1816, %v1848
        %v1857 = vtanh.pop %v1853
        %v1858 = vtanh.pop %v1854
        %v1859 = vtanh.pop %v1855
        %v1860 = vtanh.pop %v1856
        %1865 = vrot.lane.b32.xlu0 %v1857, 64
        %v1866 = vpop.permute.xlu0 %1865
        %1867 = vrot.lane.b32.xlu0 %v1858, 64
        %v1868 = vpop.permute.xlu0 %1867
        %1869 = vrot.lane.b32.xlu0 %v1859, 64
        %v1870 = vpop.permute.xlu0 %1869
        %1871 = vrot.lane.b32.xlu0 %v1860, 64
        %v1872 = vpop.permute.xlu0 %1871
        %v1877 = vmul.f32 %v1802, %v1866
        %v1878 = vmul.f32 %v1804, %v1868
        %v1879 = vmul.f32 %v1806, %v1870
        %v1880 = vmul.f32 %v1808, %v1872
        %1885 = vrot.lane.b32.xlu0 %v1877, 32
        %v1886 = vpop.permute.xlu0 %1885
        %1887 = vrot.lane.b32.xlu0 %v1878, 32
        %v1888 = vpop.permute.xlu0 %1887
        %1889 = vrot.lane.b32.xlu0 %v1879, 32
        %v1890 = vpop.permute.xlu0 %1889
        %1891 = vrot.lane.b32.xlu0 %v1880, 32
        %v1892 = vpop.permute.xlu0 %1891
        %s1897 = scalar_lea.vmem [#allocation3], 128
        %1898 = vst.msk [vmem:[%s1897] sm:$0xff] %vm817, %v1886
        %1899 = vst.msk [vmem:[%s1897 + $0x8] sm:$0xff] %vm817, %v1888
        %1900 = vst.msk [vmem:[%s1897 + $0x10] sm:$0xff] %vm817, %v1890
        %1901 = vst.msk [vmem:[%s1897 + $0x18] sm:$0xff] %vm817, %v1892
        %s1902 = scalar_lea.vmem [#allocation2], 160
        %v1903 = vld [vmem:[%s1902] sm:$0xff]
        %v1904 = vld [vmem:[%s1902 + $0x8] sm:$0xff]
        %v1905 = vld [vmem:[%s1902 + $0x10] sm:$0xff]
        %v1906 = vld [vmem:[%s1902 + $0x18] sm:$0xff]
        %v1907 = vsel %vm817, %v1886, 0
        %v1909 = vsel %vm817, %v1888, 0
        %v1911 = vsel %vm817, %v1890, 0
        %v1913 = vsel %vm817, %v1892, 0
        %1915 = vmatprep.subr.mxu0 0.0
        %1916 = vmatpush1.msra.mxu0 %v809
        %1917 = vmatprep.subr.mxu0 0.0
        %1918 = vmatpush1.msra.mxu0 %v810
        %1919 = vmatprep.subr.mxu0 0.0
        %1920 = vmatpush1.msra.mxu0 %v811
        %1921 = vmatprep.subr.mxu0 0.0
        %1922 = vmatpush1.msra.mxu0 %v812
        %1923 = vmatprep.subr.mxu0 0.0
        %1924 = vmatpush1.msra.mxu0 0.0
        %1925 = vmatprep.subr.mxu0 0.0
        %1926 = vmatpush1.msra.mxu0 0.0
        %1927 = vmatprep.subr.mxu0 0.0
        %1928 = vmatpush1.msra.mxu0 0.0
        %1929 = vmatprep.subr.mxu0 0.0
        %1930 = vmatpush1.msra.mxu0 0.0
        %1931 = vmatprep.subr.mxu0 0.0
        %1932 = vmatpush1.msra.mxu0 0.0
        %1933 = vmatprep.subr.mxu0 0.0
        %1934 = vmatpush1.msra.mxu0 0.0
        %1935 = vmatprep.subr.mxu0 0.0
        %1936 = vmatpush1.msra.mxu0 0.0
        %1937 = vmatprep.subr.mxu0 0.0
        %1938 = vmatpush1.msra.mxu0 0.0
        %1939 = vmatprep.subr.mxu0 0.0
        %1940 = vmatpush1.msra.mxu0 0.0
        %1941 = vmatprep.subr.mxu0 0.0
        %1942 = vmatpush1.msra.mxu0 0.0
        %1943 = vmatprep.subr.mxu0 0.0
        %1944 = vmatpush1.msra.mxu0 0.0
        %1945 = vmatprep.subr.mxu0 0.0
        %1946 = vmatpush1.msra.mxu0 0.0
        %1947 = vmatprep.subr.mxu0 0.0
        %1948 = vmatpush1.msra.mxu0 0.0
        %1949 = vmatprep.subr.mxu0 0.0
        %1950 = vmatpush1.msra.mxu0 0.0
        %1951 = vmatprep.subr.mxu0 0.0
        %1952 = vmatpush1.msra.mxu0 0.0
        %1953 = vmatprep.subr.mxu0 0.0
        %1954 = vmatpush1.msra.mxu0 0.0
        %1955 = vmatprep.subr.mxu0 0.0
        %1956 = vmatpush1.msra.mxu0 0.0
        %1957 = vmatprep.subr.mxu0 0.0
        %1958 = vmatpush1.msra.mxu0 0.0
        %1959 = vmatprep.subr.mxu0 0.0
        %1960 = vmatpush1.msra.mxu0 0.0
        %1961 = vmatprep.subr.mxu0 0.0
        %1962 = vmatpush1.msra.mxu0 0.0
        %1963 = vmatprep.subr.mxu0 0.0
        %1964 = vmatpush1.msra.mxu0 0.0
        %1965 = vmatprep.subr.mxu0 0.0
        %1966 = vmatpush1.msra.mxu0 0.0
        %1967 = vmatprep.subr.mxu0 0.0
        %1968 = vmatpush1.msra.mxu0 0.0
        %1969 = vmatprep.subr.mxu0 0.0
        %1970 = vmatpush1.msra.mxu0 0.0
        %1971 = vmatprep.subr.mxu0 0.0
        %1972 = vmatpush1.msra.mxu0 0.0
        %1973 = vmatprep.subr.mxu0 0.0
        %1974 = vmatpush1.msra.mxu0 0.0
        %1975 = vmatprep.subr.mxu0 0.0
        %1976 = vmatpush1.msra.mxu0 0.0
        %1977 = vmatprep.subr.mxu0 0.0
        %1978 = vmatpush1.msra.mxu0 0.0
        %1979 = vmatprep.mubr.f32.mxu0 0.0
        %1980 = vmatmul.mubr.f32.gmra.mrb[0].mxu0 %v1907
        %v1981 = vpop.f32.mrb[0].mxu0
        %v1982 = vadd.f32 0.0, %v1981
        %v1983 = vpop.f32.mrb[0].mxu0
        %1984 = vmatprep.mubr.f32.mxu0 0.0
        %1985 = vmatmul.mubr.f32.gmra.mrb[0].mxu0 %v1909
        %v1986 = vpop.f32.mrb[0].mxu0
        %v1987 = vadd.f32 0.0, %v1986
        %v1988 = vpop.f32.mrb[0].mxu0
        %1989 = vmatprep.mubr.f32.mxu0 0.0
        %1990 = vmatmul.mubr.f32.gmra.mrb[0].mxu0 %v1911
        %v1991 = vpop.f32.mrb[0].mxu0
        %v1992 = vadd.f32 0.0, %v1991
        %v1993 = vpop.f32.mrb[0].mxu0
        %1994 = vmatprep.mubr.f32.mxu0 0.0
        %1995 = vmatmul.mubr.f32.gmra.mrb[0].mxu0 %v1913
        %v1996 = vpop.f32.mrb[0].mxu0
        %v1997 = vadd.f32 0.0, %v1996
        %v1998 = vpop.f32.mrb[0].mxu0
        %1999 = vdwg.mxu0
        %v2000 = vadd.f32 %v1903, %v1982
        %v2001 = vadd.f32 %v1904, %v1987
        %v2002 = vadd.f32 %v1905, %v1992
        %v2003 = vadd.f32 %v1906, %v1997
        %v2004 = vxor.u32 %v2000, 2147483648
        %v2005 = vxor.u32 %v2001, 2147483648
        %v2006 = vxor.u32 %v2002, 2147483648
        %v2007 = vxor.u32 %v2003, 2147483648
        %v2008 = vmul.f32 %v2004, 1.442695
        %v2009 = vpow.pop %v2008
        %v2010 = vmul.f32 %v2005, 1.442695
        %v2011 = vpow.pop %v2010
        %v2012 = vmul.f32 %v2006, 1.442695
        %v2013 = vpow.pop %v2012
        %v2014 = vmul.f32 %v2007, 1.442695
        %v2015 = vpow.pop %v2014
        %v2016 = vadd.f32 %v2009, 1.0
        %v2017 = vadd.f32 %v2011, 1.0
        %v2018 = vadd.f32 %v2013, 1.0
        %v2019 = vadd.f32 %v2015, 1.0
        %v2020 = vrcp.pop %v2016
        %v2021 = vmul.f32 1.0, %v2020
        %v2022 = vrcp.pop %v2017
        %v2023 = vmul.f32 1.0, %v2022
        %v2024 = vrcp.pop %v2018
        %v2025 = vmul.f32 1.0, %v2024
        %v2026 = vrcp.pop %v2019
        %v2027 = vmul.f32 1.0, %v2026
        %v2028 = vtanh.pop %v2000
        %v2029 = vtanh.pop %v2001
        %v2030 = vtanh.pop %v2002
        %v2031 = vtanh.pop %v2003
        %v2032 = vmul.f32 %v2021, %v1853
        %v2033 = vmul.f32 %v2023, %v1854
        %v2034 = vmul.f32 %v2025, %v1855
        %v2035 = vmul.f32 %v2027, %v1856
        %2040 = vrot.lane.b32.xlu0 %v2028, 64
        %v2041 = vpop.permute.xlu0 %2040
        %2042 = vrot.lane.b32.xlu0 %v2029, 64
        %v2043 = vpop.permute.xlu0 %2042
        %2044 = vrot.lane.b32.xlu0 %v2030, 64
        %v2045 = vpop.permute.xlu0 %2044
        %2046 = vrot.lane.b32.xlu0 %v2031, 64
        %v2047 = vpop.permute.xlu0 %2046
        %v2052 = vmul.f32 %v2021, %v2041
        %v2053 = vmul.f32 %v2023, %v2043
        %v2054 = vmul.f32 %v2025, %v2045
        %v2055 = vmul.f32 %v2027, %v2047
        %2060 = vrot.lane.b32.xlu0 %v2052, 32
        %v2061 = vpop.permute.xlu0 %2060
        %2062 = vrot.lane.b32.xlu0 %v2053, 32
        %v2063 = vpop.permute.xlu0 %2062
        %2064 = vrot.lane.b32.xlu0 %v2054, 32
        %v2065 = vpop.permute.xlu0 %2064
        %2066 = vrot.lane.b32.xlu0 %v2055, 32
        %v2067 = vpop.permute.xlu0 %2066
        %v2072 = vadd.f32 %v2032, %v2061
        %v2073 = vadd.f32 %v2033, %v2063
        %v2074 = vadd.f32 %v2034, %v2065
        %v2075 = vadd.f32 %v2035, %v2067
        %v2076 = vtanh.pop %v2072
        %v2077 = vtanh.pop %v2073
        %v2078 = vtanh.pop %v2074
        %v2079 = vtanh.pop %v2075
        %2084 = vrot.lane.b32.xlu0 %v2076, 64
        %v2085 = vpop.permute.xlu0 %2084
        %2086 = vrot.lane.b32.xlu0 %v2077, 64
        %v2087 = vpop.permute.xlu0 %2086
        %2088 = vrot.lane.b32.xlu0 %v2078, 64
        %v2089 = vpop.permute.xlu0 %2088
        %2090 = vrot.lane.b32.xlu0 %v2079, 64
        %v2091 = vpop.permute.xlu0 %2090
        %v2096 = vmul.f32 %v2021, %v2085
        %v2097 = vmul.f32 %v2023, %v2087
        %v2098 = vmul.f32 %v2025, %v2089
        %v2099 = vmul.f32 %v2027, %v2091
        %2104 = vrot.lane.b32.xlu0 %v2096, 32
        %v2105 = vpop.permute.xlu0 %2104
        %2106 = vrot.lane.b32.xlu0 %v2097, 32
        %v2107 = vpop.permute.xlu0 %2106
        %2108 = vrot.lane.b32.xlu0 %v2098, 32
        %v2109 = vpop.permute.xlu0 %2108
        %2110 = vrot.lane.b32.xlu0 %v2099, 32
        %v2111 = vpop.permute.xlu0 %2110
        %s2116 = scalar_lea.vmem [#allocation3], 160
        %2117 = vst.msk [vmem:[%s2116] sm:$0xff] %vm817, %v2105
        %2118 = vst.msk [vmem:[%s2116 + $0x8] sm:$0xff] %vm817, %v2107
        %2119 = vst.msk [vmem:[%s2116 + $0x10] sm:$0xff] %vm817, %v2109
        %2120 = vst.msk [vmem:[%s2116 + $0x18] sm:$0xff] %vm817, %v2111
        %s2121 = scalar_lea.vmem [#allocation2], 192
        %v2122 = vld [vmem:[%s2121] sm:$0xff]
        %v2123 = vld [vmem:[%s2121 + $0x8] sm:$0xff]
        %v2124 = vld [vmem:[%s2121 + $0x10] sm:$0xff]
        %v2125 = vld [vmem:[%s2121 + $0x18] sm:$0xff]
        %v2126 = vsel %vm817, %v2105, 0
        %v2128 = vsel %vm817, %v2107, 0
        %v2130 = vsel %vm817, %v2109, 0
        %v2132 = vsel %vm817, %v2111, 0
        %2134 = vmatprep.subr.mxu0 0.0
        %2135 = vmatpush1.msra.mxu0 %v809
        %2136 = vmatprep.subr.mxu0 0.0
        %2137 = vmatpush1.msra.mxu0 %v810
        %2138 = vmatprep.subr.mxu0 0.0
        %2139 = vmatpush1.msra.mxu0 %v811
        %2140 = vmatprep.subr.mxu0 0.0
        %2141 = vmatpush1.msra.mxu0 %v812
        %2142 = vmatprep.subr.mxu0 0.0
        %2143 = vmatpush1.msra.mxu0 0.0
        %2144 = vmatprep.subr.mxu0 0.0
        %2145 = vmatpush1.msra.mxu0 0.0
        %2146 = vmatprep.subr.mxu0 0.0
        %2147 = vmatpush1.msra.mxu0 0.0
        %2148 = vmatprep.subr.mxu0 0.0
        %2149 = vmatpush1.msra.mxu0 0.0
        %2150 = vmatprep.subr.mxu0 0.0
        %2151 = vmatpush1.msra.mxu0 0.0
        %2152 = vmatprep.subr.mxu0 0.0
        %2153 = vmatpush1.msra.mxu0 0.0
        %2154 = vmatprep.subr.mxu0 0.0
        %2155 = vmatpush1.msra.mxu0 0.0
        %2156 = vmatprep.subr.mxu0 0.0
        %2157 = vmatpush1.msra.mxu0 0.0
        %2158 = vmatprep.subr.mxu0 0.0
        %2159 = vmatpush1.msra.mxu0 0.0
        %2160 = vmatprep.subr.mxu0 0.0
        %2161 = vmatpush1.msra.mxu0 0.0
        %2162 = vmatprep.subr.mxu0 0.0
        %2163 = vmatpush1.msra.mxu0 0.0
        %2164 = vmatprep.subr.mxu0 0.0
        %2165 = vmatpush1.msra.mxu0 0.0
        %2166 = vmatprep.subr.mxu0 0.0
        %2167 = vmatpush1.msra.mxu0 0.0
        %2168 = vmatprep.subr.mxu0 0.0
        %2169 = vmatpush1.msra.mxu0 0.0
        %2170 = vmatprep.subr.mxu0 0.0
        %2171 = vmatpush1.msra.mxu0 0.0
        %2172 = vmatprep.subr.mxu0 0.0
        %2173 = vmatpush1.msra.mxu0 0.0
        %2174 = vmatprep.subr.mxu0 0.0
        %2175 = vmatpush1.msra.mxu0 0.0
        %2176 = vmatprep.subr.mxu0 0.0
        %2177 = vmatpush1.msra.mxu0 0.0
        %2178 = vmatprep.subr.mxu0 0.0
        %2179 = vmatpush1.msra.mxu0 0.0
        %2180 = vmatprep.subr.mxu0 0.0
        %2181 = vmatpush1.msra.mxu0 0.0
        %2182 = vmatprep.subr.mxu0 0.0
        %2183 = vmatpush1.msra.mxu0 0.0
        %2184 = vmatprep.subr.mxu0 0.0
        %2185 = vmatpush1.msra.mxu0 0.0
        %2186 = vmatprep.subr.mxu0 0.0
        %2187 = vmatpush1.msra.mxu0 0.0
        %2188 = vmatprep.subr.mxu0 0.0
        %2189 = vmatpush1.msra.mxu0 0.0
        %2190 = vmatprep.subr.mxu0 0.0
        %2191 = vmatpush1.msra.mxu0 0.0
        %2192 = vmatprep.subr.mxu0 0.0
        %2193 = vmatpush1.msra.mxu0 0.0
        %2194 = vmatprep.subr.mxu0 0.0
        %2195 = vmatpush1.msra.mxu0 0.0
        %2196 = vmatprep.subr.mxu0 0.0
        %2197 = vmatpush1.msra.mxu0 0.0
        %2198 = vmatprep.mubr.f32.mxu0 0.0
        %2199 = vmatmul.mubr.f32.gmra.mrb[0].mxu0 %v2126
        %v2200 = vpop.f32.mrb[0].mxu0
        %v2201 = vadd.f32 0.0, %v2200
        %v2202 = vpop.f32.mrb[0].mxu0
        %2203 = vmatprep.mubr.f32.mxu0 0.0
        %2204 = vmatmul.mubr.f32.gmra.mrb[0].mxu0 %v2128
        %v2205 = vpop.f32.mrb[0].mxu0
        %v2206 = vadd.f32 0.0, %v2205
        %v2207 = vpop.f32.mrb[0].mxu0
        %2208 = vmatprep.mubr.f32.mxu0 0.0
        %2209 = vmatmul.mubr.f32.gmra.mrb[0].mxu0 %v2130
        %v2210 = vpop.f32.mrb[0].mxu0
        %v2211 = vadd.f32 0.0, %v2210
        %v2212 = vpop.f32.mrb[0].mxu0
        %2213 = vmatprep.mubr.f32.mxu0 0.0
        %2214 = vmatmul.mubr.f32.gmra.mrb[0].mxu0 %v2132
        %v2215 = vpop.f32.mrb[0].mxu0
        %v2216 = vadd.f32 0.0, %v2215
        %v2217 = vpop.f32.mrb[0].mxu0
        %2218 = vdwg.mxu0
        %v2219 = vadd.f32 %v2122, %v2201
        %v2220 = vadd.f32 %v2123, %v2206
        %v2221 = vadd.f32 %v2124, %v2211
        %v2222 = vadd.f32 %v2125, %v2216
        %v2223 = vxor.u32 %v2219, 2147483648
        %v2224 = vxor.u32 %v2220, 2147483648
        %v2225 = vxor.u32 %v2221, 2147483648
        %v2226 = vxor.u32 %v2222, 2147483648
        %v2227 = vmul.f32 %v2223, 1.442695
        %v2228 = vpow.pop %v2227
        %v2229 = vmul.f32 %v2224, 1.442695
        %v2230 = vpow.pop %v2229
        %v2231 = vmul.f32 %v2225, 1.442695
        %v2232 = vpow.pop %v2231
        %v2233 = vmul.f32 %v2226, 1.442695
        %v2234 = vpow.pop %v2233
        %v2235 = vadd.f32 %v2228, 1.0
        %v2236 = vadd.f32 %v2230, 1.0
        %v2237 = vadd.f32 %v2232, 1.0
        %v2238 = vadd.f32 %v2234, 1.0
        %v2239 = vrcp.pop %v2235
        %v2240 = vmul.f32 1.0, %v2239
        %v2241 = vrcp.pop %v2236
        %v2242 = vmul.f32 1.0, %v2241
        %v2243 = vrcp.pop %v2237
        %v2244 = vmul.f32 1.0, %v2243
        %v2245 = vrcp.pop %v2238
        %v2246 = vmul.f32 1.0, %v2245
        %v2247 = vtanh.pop %v2219
        %v2248 = vtanh.pop %v2220
        %v2249 = vtanh.pop %v2221
        %v2250 = vtanh.pop %v2222
        %v2251 = vmul.f32 %v2240, %v2072
        %v2252 = vmul.f32 %v2242, %v2073
        %v2253 = vmul.f32 %v2244, %v2074
        %v2254 = vmul.f32 %v2246, %v2075
        %2259 = vrot.lane.b32.xlu0 %v2247, 64
        %v2260 = vpop.permute.xlu0 %2259
        %2261 = vrot.lane.b32.xlu0 %v2248, 64
        %v2262 = vpop.permute.xlu0 %2261
        %2263 = vrot.lane.b32.xlu0 %v2249, 64
        %v2264 = vpop.permute.xlu0 %2263
        %2265 = vrot.lane.b32.xlu0 %v2250, 64
        %v2266 = vpop.permute.xlu0 %2265
        %v2271 = vmul.f32 %v2240, %v2260
        %v2272 = vmul.f32 %v2242, %v2262
        %v2273 = vmul.f32 %v2244, %v2264
        %v2274 = vmul.f32 %v2246, %v2266
        %2279 = vrot.lane.b32.xlu0 %v2271, 32
        %v2280 = vpop.permute.xlu0 %2279
        %2281 = vrot.lane.b32.xlu0 %v2272, 32
        %v2282 = vpop.permute.xlu0 %2281
        %2283 = vrot.lane.b32.xlu0 %v2273, 32
        %v2284 = vpop.permute.xlu0 %2283
        %2285 = vrot.lane.b32.xlu0 %v2274, 32
        %v2286 = vpop.permute.xlu0 %2285
        %v2291 = vadd.f32 %v2251, %v2280
        %v2292 = vadd.f32 %v2252, %v2282
        %v2293 = vadd.f32 %v2253, %v2284
        %v2294 = vadd.f32 %v2254, %v2286
        %v2295 = vtanh.pop %v2291
        %v2296 = vtanh.pop %v2292
        %v2297 = vtanh.pop %v2293
        %v2298 = vtanh.pop %v2294
        %2303 = vrot.lane.b32.xlu0 %v2295, 64
        %v2304 = vpop.permute.xlu0 %2303
        %2305 = vrot.lane.b32.xlu0 %v2296, 64
        %v2306 = vpop.permute.xlu0 %2305
        %2307 = vrot.lane.b32.xlu0 %v2297, 64
        %v2308 = vpop.permute.xlu0 %2307
        %2309 = vrot.lane.b32.xlu0 %v2298, 64
        %v2310 = vpop.permute.xlu0 %2309
        %v2315 = vmul.f32 %v2240, %v2304
        %v2316 = vmul.f32 %v2242, %v2306
        %v2317 = vmul.f32 %v2244, %v2308
        %v2318 = vmul.f32 %v2246, %v2310
        %2323 = vrot.lane.b32.xlu0 %v2315, 32
        %v2324 = vpop.permute.xlu0 %2323
        %2325 = vrot.lane.b32.xlu0 %v2316, 32
        %v2326 = vpop.permute.xlu0 %2325
        %2327 = vrot.lane.b32.xlu0 %v2317, 32
        %v2328 = vpop.permute.xlu0 %2327
        %2329 = vrot.lane.b32.xlu0 %v2318, 32
        %v2330 = vpop.permute.xlu0 %2329
        %s2335 = scalar_lea.vmem [#allocation3], 192
        %2336 = vst.msk [vmem:[%s2335] sm:$0xff] %vm817, %v2324
        %2337 = vst.msk [vmem:[%s2335 + $0x8] sm:$0xff] %vm817, %v2326
        %2338 = vst.msk [vmem:[%s2335 + $0x10] sm:$0xff] %vm817, %v2328
        %2339 = vst.msk [vmem:[%s2335 + $0x18] sm:$0xff] %vm817, %v2330
        %s2340 = scalar_lea.vmem [#allocation2], 224
        %v2341 = vld [vmem:[%s2340] sm:$0xff]
        %v2342 = vld [vmem:[%s2340 + $0x8] sm:$0xff]
        %v2343 = vld [vmem:[%s2340 + $0x10] sm:$0xff]
        %v2344 = vld [vmem:[%s2340 + $0x18] sm:$0xff]
        %v2345 = vsel %vm817, %v2324, 0
        %v2347 = vsel %vm817, %v2326, 0
        %v2349 = vsel %vm817, %v2328, 0
        %v2351 = vsel %vm817, %v2330, 0
        %2353 = vmatprep.subr.mxu0 0.0
        %2354 = vmatpush1.msra.mxu0 %v809
        %2355 = vmatprep.subr.mxu0 0.0
        %2356 = vmatpush1.msra.mxu0 %v810
        %2357 = vmatprep.subr.mxu0 0.0
        %2358 = vmatpush1.msra.mxu0 %v811
        %2359 = vmatprep.subr.mxu0 0.0
        %2360 = vmatpush1.msra.mxu0 %v812
        %2361 = vmatprep.subr.mxu0 0.0
        %2362 = vmatpush1.msra.mxu0 0.0
        %2363 = vmatprep.subr.mxu0 0.0
        %2364 = vmatpush1.msra.mxu0 0.0
        %2365 = vmatprep.subr.mxu0 0.0
        %2366 = vmatpush1.msra.mxu0 0.0
        %2367 = vmatprep.subr.mxu0 0.0
        %2368 = vmatpush1.msra.mxu0 0.0
        %2369 = vmatprep.subr.mxu0 0.0
        %2370 = vmatpush1.msra.mxu0 0.0
        %2371 = vmatprep.subr.mxu0 0.0
        %2372 = vmatpush1.msra.mxu0 0.0
        %2373 = vmatprep.subr.mxu0 0.0
        %2374 = vmatpush1.msra.mxu0 0.0
        %2375 = vmatprep.subr.mxu0 0.0
        %2376 = vmatpush1.msra.mxu0 0.0
        %2377 = vmatprep.subr.mxu0 0.0
        %2378 = vmatpush1.msra.mxu0 0.0
        %2379 = vmatprep.subr.mxu0 0.0
        %2380 = vmatpush1.msra.mxu0 0.0
        %2381 = vmatprep.subr.mxu0 0.0
        %2382 = vmatpush1.msra.mxu0 0.0
        %2383 = vmatprep.subr.mxu0 0.0
        %2384 = vmatpush1.msra.mxu0 0.0
        %2385 = vmatprep.subr.mxu0 0.0
        %2386 = vmatpush1.msra.mxu0 0.0
        %2387 = vmatprep.subr.mxu0 0.0
        %2388 = vmatpush1.msra.mxu0 0.0
        %2389 = vmatprep.subr.mxu0 0.0
        %2390 = vmatpush1.msra.mxu0 0.0
        %2391 = vmatprep.subr.mxu0 0.0
        %2392 = vmatpush1.msra.mxu0 0.0
        %2393 = vmatprep.subr.mxu0 0.0
        %2394 = vmatpush1.msra.mxu0 0.0
        %2395 = vmatprep.subr.mxu0 0.0
        %2396 = vmatpush1.msra.mxu0 0.0
        %2397 = vmatprep.subr.mxu0 0.0
        %2398 = vmatpush1.msra.mxu0 0.0
        %2399 = vmatprep.subr.mxu0 0.0
        %2400 = vmatpush1.msra.mxu0 0.0
        %2401 = vmatprep.subr.mxu0 0.0
        %2402 = vmatpush1.msra.mxu0 0.0
        %2403 = vmatprep.subr.mxu0 0.0
        %2404 = vmatpush1.msra.mxu0 0.0
        %2405 = vmatprep.subr.mxu0 0.0
        %2406 = vmatpush1.msra.mxu0 0.0
        %2407 = vmatprep.subr.mxu0 0.0
        %2408 = vmatpush1.msra.mxu0 0.0
        %2409 = vmatprep.subr.mxu0 0.0
        %2410 = vmatpush1.msra.mxu0 0.0
        %2411 = vmatprep.subr.mxu0 0.0
        %2412 = vmatpush1.msra.mxu0 0.0
        %2413 = vmatprep.subr.mxu0 0.0
        %2414 = vmatpush1.msra.mxu0 0.0
        %2415 = vmatprep.subr.mxu0 0.0
        %2416 = vmatpush1.msra.mxu0 0.0
        %2417 = vmatprep.mubr.f32.mxu0 0.0
        %2418 = vmatmul.mubr.f32.gmra.mrb[0].mxu0 %v2345
        %v2419 = vpop.f32.mrb[0].mxu0
        %v2420 = vadd.f32 0.0, %v2419
        %v2421 = vpop.f32.mrb[0].mxu0
        %2422 = vmatprep.mubr.f32.mxu0 0.0
        %2423 = vmatmul.mubr.f32.gmra.mrb[0].mxu0 %v2347
        %v2424 = vpop.f32.mrb[0].mxu0
        %v2425 = vadd.f32 0.0, %v2424
        %v2426 = vpop.f32.mrb[0].mxu0
        %2427 = vmatprep.mubr.f32.mxu0 0.0
        %2428 = vmatmul.mubr.f32.gmra.mrb[0].mxu0 %v2349
        %v2429 = vpop.f32.mrb[0].mxu0
        %v2430 = vadd.f32 0.0, %v2429
        %v2431 = vpop.f32.mrb[0].mxu0
        %2432 = vmatprep.mubr.f32.mxu0 0.0
        %2433 = vmatmul.mubr.f32.gmra.mrb[0].mxu0 %v2351
        %v2434 = vpop.f32.mrb[0].mxu0
        %v2435 = vadd.f32 0.0, %v2434
        %v2436 = vpop.f32.mrb[0].mxu0
        %2437 = vdwg.mxu0
        %v2438 = vadd.f32 %v2341, %v2420
        %v2439 = vadd.f32 %v2342, %v2425
        %v2440 = vadd.f32 %v2343, %v2430
        %v2441 = vadd.f32 %v2344, %v2435
        %v2442 = vxor.u32 %v2438, 2147483648
        %v2443 = vxor.u32 %v2439, 2147483648
        %v2444 = vxor.u32 %v2440, 2147483648
        %v2445 = vxor.u32 %v2441, 2147483648
        %v2446 = vmul.f32 %v2442, 1.442695
        %v2447 = vpow.pop %v2446
        %v2448 = vmul.f32 %v2443, 1.442695
        %v2449 = vpow.pop %v2448
        %v2450 = vmul.f32 %v2444, 1.442695
        %v2451 = vpow.pop %v2450
        %v2452 = vmul.f32 %v2445, 1.442695
        %v2453 = vpow.pop %v2452
        %v2454 = vadd.f32 %v2447, 1.0
        %v2455 = vadd.f32 %v2449, 1.0
        %v2456 = vadd.f32 %v2451, 1.0
        %v2457 = vadd.f32 %v2453, 1.0
        %v2458 = vrcp.pop %v2454
        %v2459 = vmul.f32 1.0, %v2458
        %v2460 = vrcp.pop %v2455
        %v2461 = vmul.f32 1.0, %v2460
        %v2462 = vrcp.pop %v2456
        %v2463 = vmul.f32 1.0, %v2462
        %v2464 = vrcp.pop %v2457
        %v2465 = vmul.f32 1.0, %v2464
        %v2466 = vtanh.pop %v2438
        %v2467 = vtanh.pop %v2439
        %v2468 = vtanh.pop %v2440
        %v2469 = vtanh.pop %v2441
        %v2470 = vmul.f32 %v2459, %v2291
        %v2471 = vmul.f32 %v2461, %v2292
        %v2472 = vmul.f32 %v2463, %v2293
        %v2473 = vmul.f32 %v2465, %v2294
        %2478 = vrot.lane.b32.xlu0 %v2466, 64
        %v2479 = vpop.permute.xlu0 %2478
        %2480 = vrot.lane.b32.xlu0 %v2467, 64
        %v2481 = vpop.permute.xlu0 %2480
        %2482 = vrot.lane.b32.xlu0 %v2468, 64
        %v2483 = vpop.permute.xlu0 %2482
        %2484 = vrot.lane.b32.xlu0 %v2469, 64
        %v2485 = vpop.permute.xlu0 %2484
        %v2490 = vmul.f32 %v2459, %v2479
        %v2491 = vmul.f32 %v2461, %v2481
        %v2492 = vmul.f32 %v2463, %v2483
        %v2493 = vmul.f32 %v2465, %v2485
        %2498 = vrot.lane.b32.xlu0 %v2490, 32
        %v2499 = vpop.permute.xlu0 %2498
        %2500 = vrot.lane.b32.xlu0 %v2491, 32
        %v2501 = vpop.permute.xlu0 %2500
        %2502 = vrot.lane.b32.xlu0 %v2492, 32
        %v2503 = vpop.permute.xlu0 %2502
        %2504 = vrot.lane.b32.xlu0 %v2493, 32
        %v2505 = vpop.permute.xlu0 %2504
        %v2510 = vadd.f32 %v2470, %v2499
        %v2511 = vadd.f32 %v2471, %v2501
        %v2512 = vadd.f32 %v2472, %v2503
        %v2513 = vadd.f32 %v2473, %v2505
        %v2514 = vtanh.pop %v2510
        %v2515 = vtanh.pop %v2511
        %v2516 = vtanh.pop %v2512
        %v2517 = vtanh.pop %v2513
        %2522 = vrot.lane.b32.xlu0 %v2514, 64
        %v2523 = vpop.permute.xlu0 %2522
        %2524 = vrot.lane.b32.xlu0 %v2515, 64
        %v2525 = vpop.permute.xlu0 %2524
        %2526 = vrot.lane.b32.xlu0 %v2516, 64
        %v2527 = vpop.permute.xlu0 %2526
        %2528 = vrot.lane.b32.xlu0 %v2517, 64
        %v2529 = vpop.permute.xlu0 %2528
        %v2534 = vmul.f32 %v2459, %v2523
        %v2535 = vmul.f32 %v2461, %v2525
        %v2536 = vmul.f32 %v2463, %v2527
        %v2537 = vmul.f32 %v2465, %v2529
        %2542 = vrot.lane.b32.xlu0 %v2534, 32
        %v2543 = vpop.permute.xlu0 %2542
        %2544 = vrot.lane.b32.xlu0 %v2535, 32
        %v2545 = vpop.permute.xlu0 %2544
        %2546 = vrot.lane.b32.xlu0 %v2536, 32
        %v2547 = vpop.permute.xlu0 %2546
        %2548 = vrot.lane.b32.xlu0 %v2537, 32
        %v2549 = vpop.permute.xlu0 %2548
        %s2554 = scalar_lea.vmem [#allocation3], 224
        %2555 = vst.msk [vmem:[%s2554] sm:$0xff] %vm817, %v2543
        %2556 = vst.msk [vmem:[%s2554 + $0x8] sm:$0xff] %vm817, %v2545
        %2557 = vst.msk [vmem:[%s2554 + $0x10] sm:$0xff] %vm817, %v2547
        %2558 = vst.msk [vmem:[%s2554 + $0x18] sm:$0xff] %vm817, %v2549
        %v2559 = vld [vmem:[#allocation3] sm:$0xff]
        %v2560 = vld [vmem:[#allocation3 + $0x8] sm:$0xff]
        %v2561 = vld [vmem:[#allocation3 + $0x10] sm:$0xff]
        %v2562 = vld [vmem:[#allocation3 + $0x18] sm:$0xff]
        %v2563 = vld [vmem:[%s4] sm:$0xff]
        %v2564 = vld [vmem:[%s4 + $0x8] sm:$0xff]
        %v2565 = vld [vmem:[%s4 + $0x10] sm:$0xff]
        %v2566 = vld [vmem:[%s4 + $0x18] sm:$0xff]
        %v2567 = vld [vmem:[%s1240] sm:$0xff]
        %v2568 = vld [vmem:[%s1240 + $0x8] sm:$0xff]
        %v2569 = vld [vmem:[%s1240 + $0x10] sm:$0xff]
        %v2570 = vld [vmem:[%s1240 + $0x18] sm:$0xff]
        %s2571 = scalar_lea.vmem %s4, 32
        %v2572 = vld [vmem:[%s2571] sm:$0xff]
        %v2573 = vld [vmem:[%s2571 + $0x8] sm:$0xff]
        %v2574 = vld [vmem:[%s2571 + $0x10] sm:$0xff]
        %v2575 = vld [vmem:[%s2571 + $0x18] sm:$0xff]
        %v2577 = vsel %vm817, %v2567, 0
        %v2580 = vsel %vm817, %v2568, 0
        %v2583 = vsel %vm817, %v2569, 0
        %v2586 = vsel %vm817, %v2570, 0
        %2588 = vmatprep.subr.mxu0 0.0
        %2589 = vmatpush1.msra.mxu0 %v2572
        %2590 = vmatprep.subr.mxu0 0.0
        %2591 = vmatpush1.msra.mxu0 %v2573
        %2592 = vmatprep.subr.mxu0 0.0
        %2593 = vmatpush1.msra.mxu0 %v2574
        %2594 = vmatprep.subr.mxu0 0.0
        %2595 = vmatpush1.msra.mxu0 %v2575
        %2596 = vmatprep.subr.mxu0 0.0
        %2597 = vmatpush1.msra.mxu0 0.0
        %2598 = vmatprep.subr.mxu0 0.0
        %2599 = vmatpush1.msra.mxu0 0.0
        %2600 = vmatprep.subr.mxu0 0.0
        %2601 = vmatpush1.msra.mxu0 0.0
        %2602 = vmatprep.subr.mxu0 0.0
        %2603 = vmatpush1.msra.mxu0 0.0
        %2604 = vmatprep.subr.mxu0 0.0
        %2605 = vmatpush1.msra.mxu0 0.0
        %2606 = vmatprep.subr.mxu0 0.0
        %2607 = vmatpush1.msra.mxu0 0.0
        %2608 = vmatprep.subr.mxu0 0.0
        %2609 = vmatpush1.msra.mxu0 0.0
        %2610 = vmatprep.subr.mxu0 0.0
        %2611 = vmatpush1.msra.mxu0 0.0
        %2612 = vmatprep.subr.mxu0 0.0
        %2613 = vmatpush1.msra.mxu0 0.0
        %2614 = vmatprep.subr.mxu0 0.0
        %2615 = vmatpush1.msra.mxu0 0.0
        %2616 = vmatprep.subr.mxu0 0.0
        %2617 = vmatpush1.msra.mxu0 0.0
        %2618 = vmatprep.subr.mxu0 0.0
        %2619 = vmatpush1.msra.mxu0 0.0
        %2620 = vmatprep.subr.mxu0 0.0
        %2621 = vmatpush1.msra.mxu0 0.0
        %2622 = vmatprep.subr.mxu0 0.0
        %2623 = vmatpush1.msra.mxu0 0.0
        %2624 = vmatprep.subr.mxu0 0.0
        %2625 = vmatpush1.msra.mxu0 0.0
        %2626 = vmatprep.subr.mxu0 0.0
        %2627 = vmatpush1.msra.mxu0 0.0
        %2628 = vmatprep.subr.mxu0 0.0
        %2629 = vmatpush1.msra.mxu0 0.0
        %2630 = vmatprep.subr.mxu0 0.0
        %2631 = vmatpush1.msra.mxu0 0.0
        %2632 = vmatprep.subr.mxu0 0.0
        %2633 = vmatpush1.msra.mxu0 0.0
        %2634 = vmatprep.subr.mxu0 0.0
        %2635 = vmatpush1.msra.mxu0 0.0
        %2636 = vmatprep.subr.mxu0 0.0
        %2637 = vmatpush1.msra.mxu0 0.0
        %2638 = vmatprep.subr.mxu0 0.0
        %2639 = vmatpush1.msra.mxu0 0.0
        %2640 = vmatprep.subr.mxu0 0.0
        %2641 = vmatpush1.msra.mxu0 0.0
        %2642 = vmatprep.subr.mxu0 0.0
        %2643 = vmatpush1.msra.mxu0 0.0
        %2644 = vmatprep.subr.mxu0 0.0
        %2645 = vmatpush1.msra.mxu0 0.0
        %2646 = vmatprep.subr.mxu0 0.0
        %2647 = vmatpush1.msra.mxu0 0.0
        %2648 = vmatprep.subr.mxu0 0.0
        %2649 = vmatpush1.msra.mxu0 0.0
        %2650 = vmatprep.subr.mxu0 0.0
        %2651 = vmatpush1.msra.mxu0 0.0
        %2652 = vmatprep.mubr.f32.mxu0 0.0
        %2653 = vmatmul.mubr.f32.gmra.mrb[0].mxu0 %v2577
        %v2654 = vpop.f32.mrb[0].mxu0
        %v2655 = vadd.f32 0.0, %v2654
        %v2656 = vpop.f32.mrb[0].mxu0
        %2657 = vmatprep.mubr.f32.mxu0 0.0
        %2658 = vmatmul.mubr.f32.gmra.mrb[0].mxu0 %v2580
        %v2659 = vpop.f32.mrb[0].mxu0
        %v2660 = vadd.f32 0.0, %v2659
        %v2661 = vpop.f32.mrb[0].mxu0
        %2662 = vmatprep.mubr.f32.mxu0 0.0
        %2663 = vmatmul.mubr.f32.gmra.mrb[0].mxu0 %v2583
        %v2664 = vpop.f32.mrb[0].mxu0
        %v2665 = vadd.f32 0.0, %v2664
        %v2666 = vpop.f32.mrb[0].mxu0
        %2667 = vmatprep.mubr.f32.mxu0 0.0
        %2668 = vmatmul.mubr.f32.gmra.mrb[0].mxu0 %v2586
        %v2669 = vpop.f32.mrb[0].mxu0
        %v2670 = vadd.f32 0.0, %v2669
        %v2671 = vpop.f32.mrb[0].mxu0
        %2672 = vdwg.mxu0
        %v2674 = vsel %vm817, %v2559, 0
        %v2677 = vsel %vm817, %v2560, 0
        %v2680 = vsel %vm817, %v2561, 0
        %v2683 = vsel %vm817, %v2562, 0
        %2685 = vmatprep.subr.mxu0 0.0
        %2686 = vmatpush1.msra.mxu0 %v2563
        %2687 = vmatprep.subr.mxu0 0.0
        %2688 = vmatpush1.msra.mxu0 %v2564
        %2689 = vmatprep.subr.mxu0 0.0
        %2690 = vmatpush1.msra.mxu0 %v2565
        %2691 = vmatprep.subr.mxu0 0.0
        %2692 = vmatpush1.msra.mxu0 %v2566
        %2693 = vmatprep.subr.mxu0 0.0
        %2694 = vmatpush1.msra.mxu0 0.0
        %2695 = vmatprep.subr.mxu0 0.0
        %2696 = vmatpush1.msra.mxu0 0.0
        %2697 = vmatprep.subr.mxu0 0.0
        %2698 = vmatpush1.msra.mxu0 0.0
        %2699 = vmatprep.subr.mxu0 0.0
        %2700 = vmatpush1.msra.mxu0 0.0
        %2701 = vmatprep.subr.mxu0 0.0
        %2702 = vmatpush1.msra.mxu0 0.0
        %2703 = vmatprep.subr.mxu0 0.0
        %2704 = vmatpush1.msra.mxu0 0.0
        %2705 = vmatprep.subr.mxu0 0.0
        %2706 = vmatpush1.msra.mxu0 0.0
        %2707 = vmatprep.subr.mxu0 0.0
        %2708 = vmatpush1.msra.mxu0 0.0
        %2709 = vmatprep.subr.mxu0 0.0
        %2710 = vmatpush1.msra.mxu0 0.0
        %2711 = vmatprep.subr.mxu0 0.0
        %2712 = vmatpush1.msra.mxu0 0.0
        %2713 = vmatprep.subr.mxu0 0.0
        %2714 = vmatpush1.msra.mxu0 0.0
        %2715 = vmatprep.subr.mxu0 0.0
        %2716 = vmatpush1.msra.mxu0 0.0
        %2717 = vmatprep.subr.mxu0 0.0
        %2718 = vmatpush1.msra.mxu0 0.0
        %2719 = vmatprep.subr.mxu0 0.0
        %2720 = vmatpush1.msra.mxu0 0.0
        %2721 = vmatprep.subr.mxu0 0.0
        %2722 = vmatpush1.msra.mxu0 0.0
        %2723 = vmatprep.subr.mxu0 0.0
        %2724 = vmatpush1.msra.mxu0 0.0
        %2725 = vmatprep.subr.mxu0 0.0
        %2726 = vmatpush1.msra.mxu0 0.0
        %2727 = vmatprep.subr.mxu0 0.0
        %2728 = vmatpush1.msra.mxu0 0.0
        %2729 = vmatprep.subr.mxu0 0.0
        %2730 = vmatpush1.msra.mxu0 0.0
        %2731 = vmatprep.subr.mxu0 0.0
        %2732 = vmatpush1.msra.mxu0 0.0
        %2733 = vmatprep.subr.mxu0 0.0
        %2734 = vmatpush1.msra.mxu0 0.0
        %2735 = vmatprep.subr.mxu0 0.0
        %2736 = vmatpush1.msra.mxu0 0.0
        %2737 = vmatprep.subr.mxu0 0.0
        %2738 = vmatpush1.msra.mxu0 0.0
        %2739 = vmatprep.subr.mxu0 0.0
        %2740 = vmatpush1.msra.mxu0 0.0
        %2741 = vmatprep.subr.mxu0 0.0
        %2742 = vmatpush1.msra.mxu0 0.0
        %2743 = vmatprep.subr.mxu0 0.0
        %2744 = vmatpush1.msra.mxu0 0.0
        %2745 = vmatprep.subr.mxu0 0.0
        %2746 = vmatpush1.msra.mxu0 0.0
        %2747 = vmatprep.subr.mxu0 0.0
        %2748 = vmatpush1.msra.mxu0 0.0
        %2749 = vmatprep.mubr.f32.mxu0 0.0
        %2750 = vmatmul.mubr.f32.gmra.mrb[0].mxu0 %v2674
        %v2751 = vpop.f32.mrb[0].mxu0
        %v2752 = vadd.f32 %v2655, %v2751
        %v2753 = vpop.f32.mrb[0].mxu0
        %2754 = vmatprep.mubr.f32.mxu0 0.0
        %2755 = vmatmul.mubr.f32.gmra.mrb[0].mxu0 %v2677
        %v2756 = vpop.f32.mrb[0].mxu0
        %v2757 = vadd.f32 %v2660, %v2756
        %v2758 = vpop.f32.mrb[0].mxu0
        %2759 = vmatprep.mubr.f32.mxu0 0.0
        %2760 = vmatmul.mubr.f32.gmra.mrb[0].mxu0 %v2680
        %v2761 = vpop.f32.mrb[0].mxu0
        %v2762 = vadd.f32 %v2665, %v2761
        %v2763 = vpop.f32.mrb[0].mxu0
        %2764 = vmatprep.mubr.f32.mxu0 0.0
        %2765 = vmatmul.mubr.f32.gmra.mrb[0].mxu0 %v2683
        %v2766 = vpop.f32.mrb[0].mxu0
        %v2767 = vadd.f32 %v2670, %v2766
        %v2768 = vpop.f32.mrb[0].mxu0
        %2769 = vdwg.mxu0
        %v2770 = vld [vmem:[%s1459] sm:$0xff]
        %v2771 = vld [vmem:[%s1459 + $0x8] sm:$0xff]
        %v2772 = vld [vmem:[%s1459 + $0x10] sm:$0xff]
        %v2773 = vld [vmem:[%s1459 + $0x18] sm:$0xff]
        %s2774 = scalar_lea.vmem %s4, 64
        %v2775 = vld [vmem:[%s2774] sm:$0xff]
        %v2776 = vld [vmem:[%s2774 + $0x8] sm:$0xff]
        %v2777 = vld [vmem:[%s2774 + $0x10] sm:$0xff]
        %v2778 = vld [vmem:[%s2774 + $0x18] sm:$0xff]
        %v2780 = vsel %vm817, %v2770, 0
        %v2783 = vsel %vm817, %v2771, 0
        %v2786 = vsel %vm817, %v2772, 0
        %v2789 = vsel %vm817, %v2773, 0
        %2791 = vmatprep.subr.mxu0 0.0
        %2792 = vmatpush1.msra.mxu0 %v2775
        %2793 = vmatprep.subr.mxu0 0.0
        %2794 = vmatpush1.msra.mxu0 %v2776
        %2795 = vmatprep.subr.mxu0 0.0
        %2796 = vmatpush1.msra.mxu0 %v2777
        %2797 = vmatprep.subr.mxu0 0.0
        %2798 = vmatpush1.msra.mxu0 %v2778
        %2799 = vmatprep.subr.mxu0 0.0
        %2800 = vmatpush1.msra.mxu0 0.0
        %2801 = vmatprep.subr.mxu0 0.0
        %2802 = vmatpush1.msra.mxu0 0.0
        %2803 = vmatprep.subr.mxu0 0.0
        %2804 = vmatpush1.msra.mxu0 0.0
        %2805 = vmatprep.subr.mxu0 0.0
        %2806 = vmatpush1.msra.mxu0 0.0
        %2807 = vmatprep.subr.mxu0 0.0
        %2808 = vmatpush1.msra.mxu0 0.0
        %2809 = vmatprep.subr.mxu0 0.0
        %2810 = vmatpush1.msra.mxu0 0.0
        %2811 = vmatprep.subr.mxu0 0.0
        %2812 = vmatpush1.msra.mxu0 0.0
        %2813 = vmatprep.subr.mxu0 0.0
        %2814 = vmatpush1.msra.mxu0 0.0
        %2815 = vmatprep.subr.mxu0 0.0
        %2816 = vmatpush1.msra.mxu0 0.0
        %2817 = vmatprep.subr.mxu0 0.0
        %2818 = vmatpush1.msra.mxu0 0.0
        %2819 = vmatprep.subr.mxu0 0.0
        %2820 = vmatpush1.msra.mxu0 0.0
        %2821 = vmatprep.subr.mxu0 0.0
        %2822 = vmatpush1.msra.mxu0 0.0
        %2823 = vmatprep.subr.mxu0 0.0
        %2824 = vmatpush1.msra.mxu0 0.0
        %2825 = vmatprep.subr.mxu0 0.0
        %2826 = vmatpush1.msra.mxu0 0.0
        %2827 = vmatprep.subr.mxu0 0.0
        %2828 = vmatpush1.msra.mxu0 0.0
        %2829 = vmatprep.subr.mxu0 0.0
        %2830 = vmatpush1.msra.mxu0 0.0
        %2831 = vmatprep.subr.mxu0 0.0
        %2832 = vmatpush1.msra.mxu0 0.0
        %2833 = vmatprep.subr.mxu0 0.0
        %2834 = vmatpush1.msra.mxu0 0.0
        %2835 = vmatprep.subr.mxu0 0.0
        %2836 = vmatpush1.msra.mxu0 0.0
        %2837 = vmatprep.subr.mxu0 0.0
        %2838 = vmatpush1.msra.mxu0 0.0
        %2839 = vmatprep.subr.mxu0 0.0
        %2840 = vmatpush1.msra.mxu0 0.0
        %2841 = vmatprep.subr.mxu0 0.0
        %2842 = vmatpush1.msra.mxu0 0.0
        %2843 = vmatprep.subr.mxu0 0.0
        %2844 = vmatpush1.msra.mxu0 0.0
        %2845 = vmatprep.subr.mxu0 0.0
        %2846 = vmatpush1.msra.mxu0 0.0
        %2847 = vmatprep.subr.mxu0 0.0
        %2848 = vmatpush1.msra.mxu0 0.0
        %2849 = vmatprep.subr.mxu0 0.0
        %2850 = vmatpush1.msra.mxu0 0.0
        %2851 = vmatprep.subr.mxu0 0.0
        %2852 = vmatpush1.msra.mxu0 0.0
        %2853 = vmatprep.subr.mxu0 0.0
        %2854 = vmatpush1.msra.mxu0 0.0
        %2855 = vmatprep.mubr.f32.mxu0 0.0
        %2856 = vmatmul.mubr.f32.gmra.mrb[0].mxu0 %v2780
        %v2857 = vpop.f32.mrb[0].mxu0
        %v2858 = vadd.f32 0.0, %v2857
        %v2859 = vpop.f32.mrb[0].mxu0
        %2860 = vmatprep.mubr.f32.mxu0 0.0
        %2861 = vmatmul.mubr.f32.gmra.mrb[0].mxu0 %v2783
        %v2862 = vpop.f32.mrb[0].mxu0
        %v2863 = vadd.f32 0.0, %v2862
        %v2864 = vpop.f32.mrb[0].mxu0
        %2865 = vmatprep.mubr.f32.mxu0 0.0
        %2866 = vmatmul.mubr.f32.gmra.mrb[0].mxu0 %v2786
        %v2867 = vpop.f32.mrb[0].mxu0
        %v2868 = vadd.f32 0.0, %v2867
        %v2869 = vpop.f32.mrb[0].mxu0
        %2870 = vmatprep.mubr.f32.mxu0 0.0
        %2871 = vmatmul.mubr.f32.gmra.mrb[0].mxu0 %v2789
        %v2872 = vpop.f32.mrb[0].mxu0
        %v2873 = vadd.f32 0.0, %v2872
        %v2874 = vpop.f32.mrb[0].mxu0
        %2875 = vdwg.mxu0
        %v2876 = vadd.f32 %v2752, %v2858
        %v2877 = vadd.f32 %v2757, %v2863
        %v2878 = vadd.f32 %v2762, %v2868
        %v2879 = vadd.f32 %v2767, %v2873
        %v2880 = vld [vmem:[%s1678] sm:$0xff]
        %v2881 = vld [vmem:[%s1678 + $0x8] sm:$0xff]
        %v2882 = vld [vmem:[%s1678 + $0x10] sm:$0xff]
        %v2883 = vld [vmem:[%s1678 + $0x18] sm:$0xff]
        %s2884 = scalar_lea.vmem %s4, 96
        %v2885 = vld [vmem:[%s2884] sm:$0xff]
        %v2886 = vld [vmem:[%s2884 + $0x8] sm:$0xff]
        %v2887 = vld [vmem:[%s2884 + $0x10] sm:$0xff]
        %v2888 = vld [vmem:[%s2884 + $0x18] sm:$0xff]
        %v2890 = vsel %vm817, %v2880, 0
        %v2893 = vsel %vm817, %v2881, 0
        %v2896 = vsel %vm817, %v2882, 0
        %v2899 = vsel %vm817, %v2883, 0
        %2901 = vmatprep.subr.mxu0 0.0
        %2902 = vmatpush1.msra.mxu0 %v2885
        %2903 = vmatprep.subr.mxu0 0.0
        %2904 = vmatpush1.msra.mxu0 %v2886
        %2905 = vmatprep.subr.mxu0 0.0
        %2906 = vmatpush1.msra.mxu0 %v2887
        %2907 = vmatprep.subr.mxu0 0.0
        %2908 = vmatpush1.msra.mxu0 %v2888
        %2909 = vmatprep.subr.mxu0 0.0
        %2910 = vmatpush1.msra.mxu0 0.0
        %2911 = vmatprep.subr.mxu0 0.0
        %2912 = vmatpush1.msra.mxu0 0.0
        %2913 = vmatprep.subr.mxu0 0.0
        %2914 = vmatpush1.msra.mxu0 0.0
        %2915 = vmatprep.subr.mxu0 0.0
        %2916 = vmatpush1.msra.mxu0 0.0
        %2917 = vmatprep.subr.mxu0 0.0
        %2918 = vmatpush1.msra.mxu0 0.0
        %2919 = vmatprep.subr.mxu0 0.0
        %2920 = vmatpush1.msra.mxu0 0.0
        %2921 = vmatprep.subr.mxu0 0.0
        %2922 = vmatpush1.msra.mxu0 0.0
        %2923 = vmatprep.subr.mxu0 0.0
        %2924 = vmatpush1.msra.mxu0 0.0
        %2925 = vmatprep.subr.mxu0 0.0
        %2926 = vmatpush1.msra.mxu0 0.0
        %2927 = vmatprep.subr.mxu0 0.0
        %2928 = vmatpush1.msra.mxu0 0.0
        %2929 = vmatprep.subr.mxu0 0.0
        %2930 = vmatpush1.msra.mxu0 0.0
        %2931 = vmatprep.subr.mxu0 0.0
        %2932 = vmatpush1.msra.mxu0 0.0
        %2933 = vmatprep.subr.mxu0 0.0
        %2934 = vmatpush1.msra.mxu0 0.0
        %2935 = vmatprep.subr.mxu0 0.0
        %2936 = vmatpush1.msra.mxu0 0.0
        %2937 = vmatprep.subr.mxu0 0.0
        %2938 = vmatpush1.msra.mxu0 0.0
        %2939 = vmatprep.subr.mxu0 0.0
        %2940 = vmatpush1.msra.mxu0 0.0
        %2941 = vmatprep.subr.mxu0 0.0
        %2942 = vmatpush1.msra.mxu0 0.0
        %2943 = vmatprep.subr.mxu0 0.0
        %2944 = vmatpush1.msra.mxu0 0.0
        %2945 = vmatprep.subr.mxu0 0.0
        %2946 = vmatpush1.msra.mxu0 0.0
        %2947 = vmatprep.subr.mxu0 0.0
        %2948 = vmatpush1.msra.mxu0 0.0
        %2949 = vmatprep.subr.mxu0 0.0
        %2950 = vmatpush1.msra.mxu0 0.0
        %2951 = vmatprep.subr.mxu0 0.0
        %2952 = vmatpush1.msra.mxu0 0.0
        %2953 = vmatprep.subr.mxu0 0.0
        %2954 = vmatpush1.msra.mxu0 0.0
        %2955 = vmatprep.subr.mxu0 0.0
        %2956 = vmatpush1.msra.mxu0 0.0
        %2957 = vmatprep.subr.mxu0 0.0
        %2958 = vmatpush1.msra.mxu0 0.0
        %2959 = vmatprep.subr.mxu0 0.0
        %2960 = vmatpush1.msra.mxu0 0.0
        %2961 = vmatprep.subr.mxu0 0.0
        %2962 = vmatpush1.msra.mxu0 0.0
        %2963 = vmatprep.subr.mxu0 0.0
        %2964 = vmatpush1.msra.mxu0 0.0
        %2965 = vmatprep.mubr.f32.mxu0 0.0
        %2966 = vmatmul.mubr.f32.gmra.mrb[0].mxu0 %v2890
        %v2967 = vpop.f32.mrb[0].mxu0
        %v2968 = vadd.f32 0.0, %v2967
        %v2969 = vpop.f32.mrb[0].mxu0
        %2970 = vmatprep.mubr.f32.mxu0 0.0
        %2971 = vmatmul.mubr.f32.gmra.mrb[0].mxu0 %v2893
        %v2972 = vpop.f32.mrb[0].mxu0
        %v2973 = vadd.f32 0.0, %v2972
        %v2974 = vpop.f32.mrb[0].mxu0
        %2975 = vmatprep.mubr.f32.mxu0 0.0
        %2976 = vmatmul.mubr.f32.gmra.mrb[0].mxu0 %v2896
        %v2977 = vpop.f32.mrb[0].mxu0
        %v2978 = vadd.f32 0.0, %v2977
        %v2979 = vpop.f32.mrb[0].mxu0
        %2980 = vmatprep.mubr.f32.mxu0 0.0
        %2981 = vmatmul.mubr.f32.gmra.mrb[0].mxu0 %v2899
        %v2982 = vpop.f32.mrb[0].mxu0
        %v2983 = vadd.f32 0.0, %v2982
        %v2984 = vpop.f32.mrb[0].mxu0
        %2985 = vdwg.mxu0
        %v2986 = vadd.f32 %v2876, %v2968
        %v2987 = vadd.f32 %v2877, %v2973
        %v2988 = vadd.f32 %v2878, %v2978
        %v2989 = vadd.f32 %v2879, %v2983
        %v2990 = vld [vmem:[%s1897] sm:$0xff]
        %v2991 = vld [vmem:[%s1897 + $0x8] sm:$0xff]
        %v2992 = vld [vmem:[%s1897 + $0x10] sm:$0xff]
        %v2993 = vld [vmem:[%s1897 + $0x18] sm:$0xff]
        %s2994 = scalar_lea.vmem %s4, 128
        %v2995 = vld [vmem:[%s2994] sm:$0xff]
        %v2996 = vld [vmem:[%s2994 + $0x8] sm:$0xff]
        %v2997 = vld [vmem:[%s2994 + $0x10] sm:$0xff]
        %v2998 = vld [vmem:[%s2994 + $0x18] sm:$0xff]
        %v3000 = vsel %vm817, %v2990, 0
        %v3003 = vsel %vm817, %v2991, 0
        %v3006 = vsel %vm817, %v2992, 0
        %v3009 = vsel %vm817, %v2993, 0
        %3011 = vmatprep.subr.mxu0 0.0
        %3012 = vmatpush1.msra.mxu0 %v2995
        %3013 = vmatprep.subr.mxu0 0.0
        %3014 = vmatpush1.msra.mxu0 %v2996
        %3015 = vmatprep.subr.mxu0 0.0
        %3016 = vmatpush1.msra.mxu0 %v2997
        %3017 = vmatprep.subr.mxu0 0.0
        %3018 = vmatpush1.msra.mxu0 %v2998
        %3019 = vmatprep.subr.mxu0 0.0
        %3020 = vmatpush1.msra.mxu0 0.0
        %3021 = vmatprep.subr.mxu0 0.0
        %3022 = vmatpush1.msra.mxu0 0.0
        %3023 = vmatprep.subr.mxu0 0.0
        %3024 = vmatpush1.msra.mxu0 0.0
        %3025 = vmatprep.subr.mxu0 0.0
        %3026 = vmatpush1.msra.mxu0 0.0
        %3027 = vmatprep.subr.mxu0 0.0
        %3028 = vmatpush1.msra.mxu0 0.0
        %3029 = vmatprep.subr.mxu0 0.0
        %3030 = vmatpush1.msra.mxu0 0.0
        %3031 = vmatprep.subr.mxu0 0.0
        %3032 = vmatpush1.msra.mxu0 0.0
        %3033 = vmatprep.subr.mxu0 0.0
        %3034 = vmatpush1.msra.mxu0 0.0
        %3035 = vmatprep.subr.mxu0 0.0
        %3036 = vmatpush1.msra.mxu0 0.0
        %3037 = vmatprep.subr.mxu0 0.0
        %3038 = vmatpush1.msra.mxu0 0.0
        %3039 = vmatprep.subr.mxu0 0.0
        %3040 = vmatpush1.msra.mxu0 0.0
        %3041 = vmatprep.subr.mxu0 0.0
        %3042 = vmatpush1.msra.mxu0 0.0
        %3043 = vmatprep.subr.mxu0 0.0
        %3044 = vmatpush1.msra.mxu0 0.0
        %3045 = vmatprep.subr.mxu0 0.0
        %3046 = vmatpush1.msra.mxu0 0.0
        %3047 = vmatprep.subr.mxu0 0.0
        %3048 = vmatpush1.msra.mxu0 0.0
        %3049 = vmatprep.subr.mxu0 0.0
        %3050 = vmatpush1.msra.mxu0 0.0
        %3051 = vmatprep.subr.mxu0 0.0
        %3052 = vmatpush1.msra.mxu0 0.0
        %3053 = vmatprep.subr.mxu0 0.0
        %3054 = vmatpush1.msra.mxu0 0.0
        %3055 = vmatprep.subr.mxu0 0.0
        %3056 = vmatpush1.msra.mxu0 0.0
        %3057 = vmatprep.subr.mxu0 0.0
        %3058 = vmatpush1.msra.mxu0 0.0
        %3059 = vmatprep.subr.mxu0 0.0
        %3060 = vmatpush1.msra.mxu0 0.0
        %3061 = vmatprep.subr.mxu0 0.0
        %3062 = vmatpush1.msra.mxu0 0.0
        %3063 = vmatprep.subr.mxu0 0.0
        %3064 = vmatpush1.msra.mxu0 0.0
        %3065 = vmatprep.subr.mxu0 0.0
        %3066 = vmatpush1.msra.mxu0 0.0
        %3067 = vmatprep.subr.mxu0 0.0
        %3068 = vmatpush1.msra.mxu0 0.0
        %3069 = vmatprep.subr.mxu0 0.0
        %3070 = vmatpush1.msra.mxu0 0.0
        %3071 = vmatprep.subr.mxu0 0.0
        %3072 = vmatpush1.msra.mxu0 0.0
        %3073 = vmatprep.subr.mxu0 0.0
        %3074 = vmatpush1.msra.mxu0 0.0
        %3075 = vmatprep.mubr.f32.mxu0 0.0
        %3076 = vmatmul.mubr.f32.gmra.mrb[0].mxu0 %v3000
        %v3077 = vpop.f32.mrb[0].mxu0
        %v3078 = vadd.f32 0.0, %v3077
        %v3079 = vpop.f32.mrb[0].mxu0
        %3080 = vmatprep.mubr.f32.mxu0 0.0
        %3081 = vmatmul.mubr.f32.gmra.mrb[0].mxu0 %v3003
        %v3082 = vpop.f32.mrb[0].mxu0
        %v3083 = vadd.f32 0.0, %v3082
        %v3084 = vpop.f32.mrb[0].mxu0
        %3085 = vmatprep.mubr.f32.mxu0 0.0
        %3086 = vmatmul.mubr.f32.gmra.mrb[0].mxu0 %v3006
        %v3087 = vpop.f32.mrb[0].mxu0
        %v3088 = vadd.f32 0.0, %v3087
        %v3089 = vpop.f32.mrb[0].mxu0
        %3090 = vmatprep.mubr.f32.mxu0 0.0
        %3091 = vmatmul.mubr.f32.gmra.mrb[0].mxu0 %v3009
        %v3092 = vpop.f32.mrb[0].mxu0
        %v3093 = vadd.f32 0.0, %v3092
        %v3094 = vpop.f32.mrb[0].mxu0
        %3095 = vdwg.mxu0
        %v3096 = vadd.f32 %v2986, %v3078
        %v3097 = vadd.f32 %v2987, %v3083
        %v3098 = vadd.f32 %v2988, %v3088
        %v3099 = vadd.f32 %v2989, %v3093
        %v3100 = vld [vmem:[%s2116] sm:$0xff]
        %v3101 = vld [vmem:[%s2116 + $0x8] sm:$0xff]
        %v3102 = vld [vmem:[%s2116 + $0x10] sm:$0xff]
        %v3103 = vld [vmem:[%s2116 + $0x18] sm:$0xff]
        %s3104 = scalar_lea.vmem %s4, 160
        %v3105 = vld [vmem:[%s3104] sm:$0xff]
        %v3106 = vld [vmem:[%s3104 + $0x8] sm:$0xff]
        %v3107 = vld [vmem:[%s3104 + $0x10] sm:$0xff]
        %v3108 = vld [vmem:[%s3104 + $0x18] sm:$0xff]
        %v3110 = vsel %vm817, %v3100, 0
        %v3113 = vsel %vm817, %v3101, 0
        %v3116 = vsel %vm817, %v3102, 0
        %v3119 = vsel %vm817, %v3103, 0
        %3121 = vmatprep.subr.mxu0 0.0
        %3122 = vmatpush1.msra.mxu0 %v3105
        %3123 = vmatprep.subr.mxu0 0.0
        %3124 = vmatpush1.msra.mxu0 %v3106
        %3125 = vmatprep.subr.mxu0 0.0
        %3126 = vmatpush1.msra.mxu0 %v3107
        %3127 = vmatprep.subr.mxu0 0.0
        %3128 = vmatpush1.msra.mxu0 %v3108
        %3129 = vmatprep.subr.mxu0 0.0
        %3130 = vmatpush1.msra.mxu0 0.0
        %3131 = vmatprep.subr.mxu0 0.0
        %3132 = vmatpush1.msra.mxu0 0.0
        %3133 = vmatprep.subr.mxu0 0.0
        %3134 = vmatpush1.msra.mxu0 0.0
        %3135 = vmatprep.subr.mxu0 0.0
        %3136 = vmatpush1.msra.mxu0 0.0
        %3137 = vmatprep.subr.mxu0 0.0
        %3138 = vmatpush1.msra.mxu0 0.0
        %3139 = vmatprep.subr.mxu0 0.0
        %3140 = vmatpush1.msra.mxu0 0.0
        %3141 = vmatprep.subr.mxu0 0.0
        %3142 = vmatpush1.msra.mxu0 0.0
        %3143 = vmatprep.subr.mxu0 0.0
        %3144 = vmatpush1.msra.mxu0 0.0
        %3145 = vmatprep.subr.mxu0 0.0
        %3146 = vmatpush1.msra.mxu0 0.0
        %3147 = vmatprep.subr.mxu0 0.0
        %3148 = vmatpush1.msra.mxu0 0.0
        %3149 = vmatprep.subr.mxu0 0.0
        %3150 = vmatpush1.msra.mxu0 0.0
        %3151 = vmatprep.subr.mxu0 0.0
        %3152 = vmatpush1.msra.mxu0 0.0
        %3153 = vmatprep.subr.mxu0 0.0
        %3154 = vmatpush1.msra.mxu0 0.0
        %3155 = vmatprep.subr.mxu0 0.0
        %3156 = vmatpush1.msra.mxu0 0.0
        %3157 = vmatprep.subr.mxu0 0.0
        %3158 = vmatpush1.msra.mxu0 0.0
        %3159 = vmatprep.subr.mxu0 0.0
        %3160 = vmatpush1.msra.mxu0 0.0
        %3161 = vmatprep.subr.mxu0 0.0
        %3162 = vmatpush1.msra.mxu0 0.0
        %3163 = vmatprep.subr.mxu0 0.0
        %3164 = vmatpush1.msra.mxu0 0.0
        %3165 = vmatprep.subr.mxu0 0.0
        %3166 = vmatpush1.msra.mxu0 0.0
        %3167 = vmatprep.subr.mxu0 0.0
        %3168 = vmatpush1.msra.mxu0 0.0
        %3169 = vmatprep.subr.mxu0 0.0
        %3170 = vmatpush1.msra.mxu0 0.0
        %3171 = vmatprep.subr.mxu0 0.0
        %3172 = vmatpush1.msra.mxu0 0.0
        %3173 = vmatprep.subr.mxu0 0.0
        %3174 = vmatpush1.msra.mxu0 0.0
        %3175 = vmatprep.subr.mxu0 0.0
        %3176 = vmatpush1.msra.mxu0 0.0
        %3177 = vmatprep.subr.mxu0 0.0
        %3178 = vmatpush1.msra.mxu0 0.0
        %3179 = vmatprep.subr.mxu0 0.0
        %3180 = vmatpush1.msra.mxu0 0.0
        %3181 = vmatprep.subr.mxu0 0.0
        %3182 = vmatpush1.msra.mxu0 0.0
        %3183 = vmatprep.subr.mxu0 0.0
        %3184 = vmatpush1.msra.mxu0 0.0
        %3185 = vmatprep.mubr.f32.mxu0 0.0
        %3186 = vmatmul.mubr.f32.gmra.mrb[0].mxu0 %v3110
        %v3187 = vpop.f32.mrb[0].mxu0
        %v3188 = vadd.f32 0.0, %v3187
        %v3189 = vpop.f32.mrb[0].mxu0
        %3190 = vmatprep.mubr.f32.mxu0 0.0
        %3191 = vmatmul.mubr.f32.gmra.mrb[0].mxu0 %v3113
        %v3192 = vpop.f32.mrb[0].mxu0
        %v3193 = vadd.f32 0.0, %v3192
        %v3194 = vpop.f32.mrb[0].mxu0
        %3195 = vmatprep.mubr.f32.mxu0 0.0
        %3196 = vmatmul.mubr.f32.gmra.mrb[0].mxu0 %v3116
        %v3197 = vpop.f32.mrb[0].mxu0
        %v3198 = vadd.f32 0.0, %v3197
        %v3199 = vpop.f32.mrb[0].mxu0
        %3200 = vmatprep.mubr.f32.mxu0 0.0
        %3201 = vmatmul.mubr.f32.gmra.mrb[0].mxu0 %v3119
        %v3202 = vpop.f32.mrb[0].mxu0
        %v3203 = vadd.f32 0.0, %v3202
        %v3204 = vpop.f32.mrb[0].mxu0
        %3205 = vdwg.mxu0
        %v3206 = vadd.f32 %v3096, %v3188
        %v3207 = vadd.f32 %v3097, %v3193
        %v3208 = vadd.f32 %v3098, %v3198
        %v3209 = vadd.f32 %v3099, %v3203
        %v3210 = vld [vmem:[%s2335] sm:$0xff]
        %v3211 = vld [vmem:[%s2335 + $0x8] sm:$0xff]
        %v3212 = vld [vmem:[%s2335 + $0x10] sm:$0xff]
        %v3213 = vld [vmem:[%s2335 + $0x18] sm:$0xff]
        %s3214 = scalar_lea.vmem %s4, 192
        %v3215 = vld [vmem:[%s3214] sm:$0xff]
        %v3216 = vld [vmem:[%s3214 + $0x8] sm:$0xff]
        %v3217 = vld [vmem:[%s3214 + $0x10] sm:$0xff]
        %v3218 = vld [vmem:[%s3214 + $0x18] sm:$0xff]
        %v3220 = vsel %vm817, %v3210, 0
        %v3223 = vsel %vm817, %v3211, 0
        %v3226 = vsel %vm817, %v3212, 0
        %v3229 = vsel %vm817, %v3213, 0
        %3231 = vmatprep.subr.mxu0 0.0
        %3232 = vmatpush1.msra.mxu0 %v3215
        %3233 = vmatprep.subr.mxu0 0.0
        %3234 = vmatpush1.msra.mxu0 %v3216
        %3235 = vmatprep.subr.mxu0 0.0
        %3236 = vmatpush1.msra.mxu0 %v3217
        %3237 = vmatprep.subr.mxu0 0.0
        %3238 = vmatpush1.msra.mxu0 %v3218
        %3239 = vmatprep.subr.mxu0 0.0
        %3240 = vmatpush1.msra.mxu0 0.0
        %3241 = vmatprep.subr.mxu0 0.0
        %3242 = vmatpush1.msra.mxu0 0.0
        %3243 = vmatprep.subr.mxu0 0.0
        %3244 = vmatpush1.msra.mxu0 0.0
        %3245 = vmatprep.subr.mxu0 0.0
        %3246 = vmatpush1.msra.mxu0 0.0
        %3247 = vmatprep.subr.mxu0 0.0
        %3248 = vmatpush1.msra.mxu0 0.0
        %3249 = vmatprep.subr.mxu0 0.0
        %3250 = vmatpush1.msra.mxu0 0.0
        %3251 = vmatprep.subr.mxu0 0.0
        %3252 = vmatpush1.msra.mxu0 0.0
        %3253 = vmatprep.subr.mxu0 0.0
        %3254 = vmatpush1.msra.mxu0 0.0
        %3255 = vmatprep.subr.mxu0 0.0
        %3256 = vmatpush1.msra.mxu0 0.0
        %3257 = vmatprep.subr.mxu0 0.0
        %3258 = vmatpush1.msra.mxu0 0.0
        %3259 = vmatprep.subr.mxu0 0.0
        %3260 = vmatpush1.msra.mxu0 0.0
        %3261 = vmatprep.subr.mxu0 0.0
        %3262 = vmatpush1.msra.mxu0 0.0
        %3263 = vmatprep.subr.mxu0 0.0
        %3264 = vmatpush1.msra.mxu0 0.0
        %3265 = vmatprep.subr.mxu0 0.0
        %3266 = vmatpush1.msra.mxu0 0.0
        %3267 = vmatprep.subr.mxu0 0.0
        %3268 = vmatpush1.msra.mxu0 0.0
        %3269 = vmatprep.subr.mxu0 0.0
        %3270 = vmatpush1.msra.mxu0 0.0
        %3271 = vmatprep.subr.mxu0 0.0
        %3272 = vmatpush1.msra.mxu0 0.0
        %3273 = vmatprep.subr.mxu0 0.0
        %3274 = vmatpush1.msra.mxu0 0.0
        %3275 = vmatprep.subr.mxu0 0.0
        %3276 = vmatpush1.msra.mxu0 0.0
        %3277 = vmatprep.subr.mxu0 0.0
        %3278 = vmatpush1.msra.mxu0 0.0
        %3279 = vmatprep.subr.mxu0 0.0
        %3280 = vmatpush1.msra.mxu0 0.0
        %3281 = vmatprep.subr.mxu0 0.0
        %3282 = vmatpush1.msra.mxu0 0.0
        %3283 = vmatprep.subr.mxu0 0.0
        %3284 = vmatpush1.msra.mxu0 0.0
        %3285 = vmatprep.subr.mxu0 0.0
        %3286 = vmatpush1.msra.mxu0 0.0
        %3287 = vmatprep.subr.mxu0 0.0
        %3288 = vmatpush1.msra.mxu0 0.0
        %3289 = vmatprep.subr.mxu0 0.0
        %3290 = vmatpush1.msra.mxu0 0.0
        %3291 = vmatprep.subr.mxu0 0.0
        %3292 = vmatpush1.msra.mxu0 0.0
        %3293 = vmatprep.subr.mxu0 0.0
        %3294 = vmatpush1.msra.mxu0 0.0
        %3295 = vmatprep.mubr.f32.mxu0 0.0
        %3296 = vmatmul.mubr.f32.gmra.mrb[0].mxu0 %v3220
        %v3297 = vpop.f32.mrb[0].mxu0
        %v3298 = vadd.f32 0.0, %v3297
        %v3299 = vpop.f32.mrb[0].mxu0
        %3300 = vmatprep.mubr.f32.mxu0 0.0
        %3301 = vmatmul.mubr.f32.gmra.mrb[0].mxu0 %v3223
        %v3302 = vpop.f32.mrb[0].mxu0
        %v3303 = vadd.f32 0.0, %v3302
        %v3304 = vpop.f32.mrb[0].mxu0
        %3305 = vmatprep.mubr.f32.mxu0 0.0
        %3306 = vmatmul.mubr.f32.gmra.mrb[0].mxu0 %v3226
        %v3307 = vpop.f32.mrb[0].mxu0
        %v3308 = vadd.f32 0.0, %v3307
        %v3309 = vpop.f32.mrb[0].mxu0
        %3310 = vmatprep.mubr.f32.mxu0 0.0
        %3311 = vmatmul.mubr.f32.gmra.mrb[0].mxu0 %v3229
        %v3312 = vpop.f32.mrb[0].mxu0
        %v3313 = vadd.f32 0.0, %v3312
        %v3314 = vpop.f32.mrb[0].mxu0
        %3315 = vdwg.mxu0
        %v3316 = vadd.f32 %v3206, %v3298
        %v3317 = vadd.f32 %v3207, %v3303
        %v3318 = vadd.f32 %v3208, %v3308
        %v3319 = vadd.f32 %v3209, %v3313
        %v3320 = vld [vmem:[%s2554] sm:$0xff]
        %v3321 = vld [vmem:[%s2554 + $0x8] sm:$0xff]
        %v3322 = vld [vmem:[%s2554 + $0x10] sm:$0xff]
        %v3323 = vld [vmem:[%s2554 + $0x18] sm:$0xff]
        %s3324 = scalar_lea.vmem %s4, 224
        %v3325 = vld [vmem:[%s3324] sm:$0xff]
        %v3326 = vld [vmem:[%s3324 + $0x8] sm:$0xff]
        %v3327 = vld [vmem:[%s3324 + $0x10] sm:$0xff]
        %v3328 = vld [vmem:[%s3324 + $0x18] sm:$0xff]
        %v3330 = vsel %vm817, %v3320, 0
        %v3333 = vsel %vm817, %v3321, 0
        %v3336 = vsel %vm817, %v3322, 0
        %v3339 = vsel %vm817, %v3323, 0
        %3341 = vmatprep.subr.mxu0 0.0
        %3342 = vmatpush1.msra.mxu0 %v3325
        %3343 = vmatprep.subr.mxu0 0.0
        %3344 = vmatpush1.msra.mxu0 %v3326
        %3345 = vmatprep.subr.mxu0 0.0
        %3346 = vmatpush1.msra.mxu0 %v3327
        %3347 = vmatprep.subr.mxu0 0.0
        %3348 = vmatpush1.msra.mxu0 %v3328
        %3349 = vmatprep.subr.mxu0 0.0
        %3350 = vmatpush1.msra.mxu0 0.0
        %3351 = vmatprep.subr.mxu0 0.0
        %3352 = vmatpush1.msra.mxu0 0.0
        %3353 = vmatprep.subr.mxu0 0.0
        %3354 = vmatpush1.msra.mxu0 0.0
        %3355 = vmatprep.subr.mxu0 0.0
        %3356 = vmatpush1.msra.mxu0 0.0
        %3357 = vmatprep.subr.mxu0 0.0
        %3358 = vmatpush1.msra.mxu0 0.0
        %3359 = vmatprep.subr.mxu0 0.0
        %3360 = vmatpush1.msra.mxu0 0.0
        %3361 = vmatprep.subr.mxu0 0.0
        %3362 = vmatpush1.msra.mxu0 0.0
        %3363 = vmatprep.subr.mxu0 0.0
        %3364 = vmatpush1.msra.mxu0 0.0
        %3365 = vmatprep.subr.mxu0 0.0
        %3366 = vmatpush1.msra.mxu0 0.0
        %3367 = vmatprep.subr.mxu0 0.0
        %3368 = vmatpush1.msra.mxu0 0.0
        %3369 = vmatprep.subr.mxu0 0.0
        %3370 = vmatpush1.msra.mxu0 0.0
        %3371 = vmatprep.subr.mxu0 0.0
        %3372 = vmatpush1.msra.mxu0 0.0
        %3373 = vmatprep.subr.mxu0 0.0
        %3374 = vmatpush1.msra.mxu0 0.0
        %3375 = vmatprep.subr.mxu0 0.0
        %3376 = vmatpush1.msra.mxu0 0.0
        %3377 = vmatprep.subr.mxu0 0.0
        %3378 = vmatpush1.msra.mxu0 0.0
        %3379 = vmatprep.subr.mxu0 0.0
        %3380 = vmatpush1.msra.mxu0 0.0
        %3381 = vmatprep.subr.mxu0 0.0
        %3382 = vmatpush1.msra.mxu0 0.0
        %3383 = vmatprep.subr.mxu0 0.0
        %3384 = vmatpush1.msra.mxu0 0.0
        %3385 = vmatprep.subr.mxu0 0.0
        %3386 = vmatpush1.msra.mxu0 0.0
        %3387 = vmatprep.subr.mxu0 0.0
        %3388 = vmatpush1.msra.mxu0 0.0
        %3389 = vmatprep.subr.mxu0 0.0
        %3390 = vmatpush1.msra.mxu0 0.0
        %3391 = vmatprep.subr.mxu0 0.0
        %3392 = vmatpush1.msra.mxu0 0.0
        %3393 = vmatprep.subr.mxu0 0.0
        %3394 = vmatpush1.msra.mxu0 0.0
        %3395 = vmatprep.subr.mxu0 0.0
        %3396 = vmatpush1.msra.mxu0 0.0
        %3397 = vmatprep.subr.mxu0 0.0
        %3398 = vmatpush1.msra.mxu0 0.0
        %3399 = vmatprep.subr.mxu0 0.0
        %3400 = vmatpush1.msra.mxu0 0.0
        %3401 = vmatprep.subr.mxu0 0.0
        %3402 = vmatpush1.msra.mxu0 0.0
        %3403 = vmatprep.subr.mxu0 0.0
        %3404 = vmatpush1.msra.mxu0 0.0
        %3405 = vmatprep.mubr.f32.mxu0 0.0
        %3406 = vmatmul.mubr.f32.gmra.mrb[0].mxu0 %v3330
        %v3407 = vpop.f32.mrb[0].mxu0
        %v3408 = vadd.f32 0.0, %v3407
        %v3409 = vpop.f32.mrb[0].mxu0
        %3410 = vmatprep.mubr.f32.mxu0 0.0
        %3411 = vmatmul.mubr.f32.gmra.mrb[0].mxu0 %v3333
        %v3412 = vpop.f32.mrb[0].mxu0
        %v3413 = vadd.f32 0.0, %v3412
        %v3414 = vpop.f32.mrb[0].mxu0
        %3415 = vmatprep.mubr.f32.mxu0 0.0
        %3416 = vmatmul.mubr.f32.gmra.mrb[0].mxu0 %v3336
        %v3417 = vpop.f32.mrb[0].mxu0
        %v3418 = vadd.f32 0.0, %v3417
        %v3419 = vpop.f32.mrb[0].mxu0
        %3420 = vmatprep.mubr.f32.mxu0 0.0
        %3421 = vmatmul.mubr.f32.gmra.mrb[0].mxu0 %v3339
        %v3422 = vpop.f32.mrb[0].mxu0
        %v3423 = vadd.f32 0.0, %v3422
        %v3424 = vpop.f32.mrb[0].mxu0
        %3425 = vdwg.mxu0
        %v3426 = vadd.f32 %v3316, %v3408
        %v3427 = vadd.f32 %v3317, %v3413
        %v3428 = vadd.f32 %v3318, %v3418
        %v3429 = vadd.f32 %v3319, %v3423
        %v3430 = vld [vmem:[%s5] sm:$0x1]
        %v3432 = vlaneseq
        %v3433 = vshrl.u32 %v3432, 7
        %v3434 = vsub.s32 0, %v3433
        %v3435 = vrot.slane %v3430, %v3434
        %v3437 = vadd.f32 %v3426, %v3435
        %v3438 = vadd.f32 %v3427, %v3435
        %v3439 = vadd.f32 %v3428, %v3435
        %v3440 = vadd.f32 %v3429, %v3435
        %3441 = vst [vmem:[%s408] sm:$0xff] %v3437
        %3442 = vst [vmem:[%s408 + $0x8] sm:$0xff] %v3438
        %3443 = vst [vmem:[%s408 + $0x10] sm:$0xff] %v3439
        %3444 = vst [vmem:[%s408 + $0x18] sm:$0xff] %v3440
        %s3445 = sand.u32 %s159, 1
        %s3446 = scalar_lea.sflag [#allocation6], %s3445
        %s3447 = sand.u32 %s159, 1
        %s3448 = smul.addr %s3447, 32
        %s3449 = scalar_lea.vmem [#allocation5], %s3448
        // Predicated region
        $region83: #{tpu_custom_call.1} parent=77 // pred_check
          %p3450 = pneg %p169
        $region84: #{tpu_custom_call.1} parent=77 // pred_check_branch
          %3452 = sbr.rel (%p3450) target = $region86
        $region85: #{tpu_custom_call.1} parent=77 // pred_region
          %s3453 = smul.u32 4, %s20
          %s3455 = ssub.s32 512, 512
          %3456 = vsyncadd %s3446, %s3455
          %s3457 = smul.addr %s3453, 128
          %s3458 = scalar_lea.hbm %s6, %s3457
          %s3459 = sshll.u32 %s3449, 4
          %s3460 = int_to_ptr.vmem [resolvable:$true] %s3459
          %3465 = dma.vmem_to_hbm [thread:$0]  %s3460, 512, %s3458, %s3446, 128, 128, 8
        $region86: #{tpu_custom_call.1} parent=77 // pred_fallthru
          _
      $region78: #{tpu_custom_call.1} parent=5 // pred_fallthru
        _
      %p3466 = scmp.le.s32.totalorder 2, %s15
      // Predicated region
      $region87: #{tpu_custom_call.1} parent=5 // pred_check
        %p3467 = pneg %p3466
      $region88: #{tpu_custom_call.1} parent=5 // pred_check_branch
        %3469 = sbr.rel (%p3467) target = $region90
      $region89: #{tpu_custom_call.1} parent=5 // pred_region
        %s3470 = ssub.s32 %s15, 2
        // Predicated region
        $region91: #{tpu_custom_call.1} parent=89 // pred_check
          %p3471 = pneg %p175
        $region92: #{tpu_custom_call.1} parent=89 // pred_check_branch
          %3473 = sbr.rel (%p3471) target = $region94
        $region93: #{tpu_custom_call.1} parent=89 // pred_region
          %s3474 = sand.u32 %s160, 1
          %s3475 = scalar_lea.sflag [#allocation6], %s3474
          %s3476 = sand.u32 %s160, 1
          %s3477 = smul.addr %s3476, 32
          %s3478 = scalar_lea.vmem [#allocation5], %s3477
          %3479 = dma.done %s3475, 512
        $region94: #{tpu_custom_call.1} parent=89 // pred_fallthru
          _
      $region90: #{tpu_custom_call.1} parent=5 // pred_fallthru
        _
    $region6: #{tpu_custom_call.1} parent=1 // loop_footer
      %s19 = sadd.s32 1, %s15
    $region7: #{tpu_custom_call.1} parent=1 // loop_footer_branch
      %14 = sbr.rel target = $region3
    $region8: #{tpu_custom_call.1} parent=1 // loop_exit
      _
    %3480 = vsyncpa [#allocation6], 1
    %s3481 = scalar_lea.sflag [#allocation6], 1
    %3482 = vsyncpa %s3481, 1

</llo_original>
